<compile_context>
chip_gen: v6e
topology: v6e:2x2x1
jax: 0.10.0
libtpu: 0.0.40
codegen_flags: <defaults>
</compile_context>

<pallas_src>
import functools

import jax
import jax.numpy as jnp
import numpy as np
from jax.experimental import pallas as pl
from jax.experimental.pallas import tpu as pltpu

NEG_SLOPE = 0.01   # nn.LeakyReLU() default negative_slope
LANE = 128         # TPU lane width; one packed output row is exactly one lane row


def _leaky_relu(v):
    return jnp.where(v > 0, v, NEG_SLOPE * v)


def _round_up(n, m):
    return ((n + m - 1) // m) * m


def decoder_fwd_kernel(x_ref, w1_ref, w2_ref, w3_ref, bias_ref, out_ref, *,
                       p_hidden, p_latent, p_out):
    """One batch tile of the packed decoder.

    x_ref   : [TB, P*latent] bf16 (P batch rows packed per lane-dense row)
    w*_ref  : block-diagonal weights kron(I_P, W), VMEM-resident
    bias_ref: [3, width] f32; row 0 = tiled b1, row 1 = tiled b2, row 2 = tiled b3
    out_ref : [TB, 128] f32 (lanes 4j:4j+4 = attr vector of packed batch row j)
    """
    b_all = bias_ref[...]
    b1 = b_all[0:1, :p_hidden]
    b2 = b_all[1:2, :p_latent]
    b3 = b_all[2:3, :p_out]

    # common_branch: mlp + LeakyReLU  (bf16 MXU inputs, f32 accumulation/activations)
    h = jnp.dot(x_ref[...], w1_ref[...], preferred_element_type=jnp.float32)
    h = _leaky_relu(h + b1)                         # [TB, P*hidden] f32

    # attr_branch: mlp2 + LeakyReLU
    z = jnp.dot(h.astype(w2_ref.dtype), w2_ref[...],
                preferred_element_type=jnp.float32)
    z = _leaky_relu(z + b2)                         # [TB, P*latent] f32

    # attr_branch: mlp3 + LeakyReLU -> fully useful 128-lane output row
    a = jnp.dot(z.astype(w3_ref.dtype), w3_ref[...],
                preferred_element_type=jnp.float32)
    a = _leaky_relu(a + b3)                         # [TB, 128] f32
    out_ref[...] = a.astype(out_ref.dtype)


def decoder_forward(x, params, *, block_rows=256, target_steps=4,
                    compute_dtype=jnp.bfloat16):
    """x: [B, latent] -> attr_vector [B, 4] (float32)."""
    w1, b1, w2, b2, w3, b3 = params
    latent, hidden = w1.shape
    n_out = w3.shape[1]
    B = x.shape[0]

    # ---- packing factor: P batch rows per 128-lane output row ----
    assert LANE % n_out == 0, f"n_out={n_out} must divide {LANE}"
    P = LANE // n_out                               # 32 for the 4-wide attr head
    p_latent, p_hidden, p_out = P * latent, P * hidden, P * n_out
    # Fail loudly instead of silently building huge block-diagonal weights.
    assert max(p_latent, p_hidden) <= 4096, (
        "block-diagonal packing assumes small per-layer widths "
        f"(got latent={latent}, hidden={hidden}, P={P})")

    # ---- block-diagonal packed weights: kron(I_P, W); tiny, VMEM-resident ----
    eye = jnp.eye(P, dtype=jnp.float32)
    w1_bd = jnp.kron(eye, w1.astype(jnp.float32)).astype(compute_dtype)  # [P*lat, P*hid]
    w2_bd = jnp.kron(eye, w2.astype(jnp.float32)).astype(compute_dtype)  # [P*hid, P*lat]
    w3_bd = jnp.kron(eye, w3.astype(jnp.float32)).astype(compute_dtype)  # [P*lat, 128]

    # ---- pack the (tiled) biases into one f32 array -> single tiny input ----
    bias_w = max(p_hidden, p_latent, p_out)
    bias_pack = jnp.zeros((3, bias_w), jnp.float32)
    bias_pack = bias_pack.at[0, :p_hidden].set(
        jnp.tile(b1.reshape(-1).astype(jnp.float32), P))
    bias_pack = bias_pack.at[1, :p_latent].set(
        jnp.tile(b2.reshape(-1).astype(jnp.float32), P))
    bias_pack = bias_pack.at[2, :p_out].set(
        jnp.tile(b3.reshape(-1).astype(jnp.float32), P))

    # ---- pack the batch: pad to a multiple of P rows, reshape lane-dense ----
    x_c = x.astype(compute_dtype)
    b_pad = _round_up(max(B, 1), P)
    if b_pad != B:
        x_c = jnp.zeros((b_pad, latent), compute_dtype).at[:B].set(x_c)
    rows = b_pad // P
    xp = x_c.reshape(rows, p_latent)                # free contiguous reshape

    # ---- packed-row tiling: large tiles amortize ~0.35us/step; cap so large
    #      batches keep >= target_steps grid steps for v7x's two TensorCores.
    #      Tile rows multiple of 16 (bf16 sublane packing on the input). ----
    ROW_ALIGN = 16
    tile_rows = min(block_rows,
                    max(ROW_ALIGN, _round_up(pl.cdiv(rows, target_steps), ROW_ALIGN)))
    rows_pad = _round_up(rows, tile_rows)
    if rows_pad != rows:
        xp = jnp.zeros((rows_pad, p_latent), compute_dtype).at[:rows].set(xp)
    grid = (rows_pad // tile_rows,)

    itemsize = jnp.dtype(compute_dtype).itemsize
    flops = 2 * rows_pad * (p_latent * p_hidden + p_hidden * p_latent + p_latent * p_out)
    bytes_accessed = (rows_pad * p_latent * itemsize                 # packed x stream
                      + (w1_bd.size + w2_bd.size + w3_bd.size) * itemsize
                      + bias_pack.size * 4
                      + rows_pad * p_out * 4)                        # packed output

    out = pl.pallas_call(
        functools.partial(decoder_fwd_kernel,
                          p_hidden=p_hidden, p_latent=p_latent, p_out=p_out),
        out_shape=jax.ShapeDtypeStruct((rows_pad, p_out), jnp.float32),
        grid=grid,
        in_specs=[
            pl.BlockSpec((tile_rows, p_latent), lambda i: (i, 0)),   # x: pipelined per tile
            pl.BlockSpec((p_latent, p_hidden), lambda i: (0, 0)),    # w1_bd: resident
            pl.BlockSpec((p_hidden, p_latent), lambda i: (0, 0)),    # w2_bd: resident
            pl.BlockSpec((p_latent, p_out), lambda i: (0, 0)),       # w3_bd: resident
            pl.BlockSpec((3, bias_w), lambda i: (0, 0)),             # packed biases: resident
        ],
        out_specs=pl.BlockSpec((tile_rows, p_out), lambda i: (i, 0)),
        compiler_params=pltpu.CompilerParams(
            dimension_semantics=("parallel",)),                      # shard batch across TCs
        cost_estimate=pl.CostEstimate(
            flops=flops, transcendentals=0, bytes_accessed=bytes_accessed),
    )(xp, w1_bd, w2_bd, w3_bd, bias_pack)

    # [rows, 128] -> [b_pad, 4] is a free contiguous reshape; slice off padding.
    return out[:rows].reshape(b_pad, n_out)[:B]
    # TODO(synk): forward1/forward2 (mlp_left*, mlp_right* branches) follow the same
    # Linear+LeakyReLU pattern and can be fused into this kernel with extra resident
    # block-diagonal weights and additional lane-dense output slabs if needed.


def init_decoder_params(key, latent_size, hidden_size):
    """Deterministic init mimicking PyTorch nn.Linear default (uniform +-1/sqrt(fan_in)).
    Weights stored as [in_features, out_features]; biases as [1, out_features]."""
    def linear(k, fan_in, fan_out):
        kw, kb = jax.random.split(k)
        bound = 1.0 / np.sqrt(fan_in)
        w = jax.random.uniform(kw, (fan_in, fan_out), jnp.float32, -bound, bound)
        b = jax.random.uniform(kb, (1, fan_out), jnp.float32, -bound, bound)
        return w, b

    k1, k2, k3 = jax.random.split(key, 3)
    w1, b1 = linear(k1, latent_size, hidden_size)   # mlp
    w2, b2 = linear(k2, hidden_size, latent_size)   # mlp2
    w3, b3 = linear(k3, latent_size, 4)             # mlp3
    return (w1, b1, w2, b2, w3, b3)


def decoder_forward_ref(x, params, compute_dtype=jnp.bfloat16):
    """Pure-JAX reference mirroring the kernel's bf16-input / f32-accumulate path."""
    w1, b1, w2, b2, w3, b3 = params
    h = _leaky_relu(jnp.dot(x.astype(compute_dtype), w1.astype(compute_dtype),
                            preferred_element_type=jnp.float32) + b1)
    z = _leaky_relu(jnp.dot(h.astype(compute_dtype), w2.astype(compute_dtype),
                            preferred_element_type=jnp.float32) + b2)
    a = _leaky_relu(jnp.dot(z.astype(compute_dtype), w3.astype(compute_dtype),
                            preferred_element_type=jnp.float32) + b3)
    return a


if __name__ == "__main__":
    latent_size, hidden_size = 16, 32
    key = jax.random.PRNGKey(0)
    kx, kp = jax.random.split(key)
    params = init_decoder_params(kp, latent_size, hidden_size)

    # Small batch (single padded tile), mid-size ragged batch (multi-step grid),
    # and a larger batch (several full tiles) to exercise padding + pipelining.
    for batch in (8, 600, 4096):
        x = jax.random.normal(jax.random.fold_in(kx, batch),
                              (batch, latent_size), jnp.float32)
        out = decoder_forward(x, params)
        out = jax.block_until_ready(out)
        assert out.shape == (batch, 4), out.shape

        ref = decoder_forward_ref(x, params)
        np.testing.assert_allclose(np.asarray(out), np.asarray(ref),
                                   rtol=2e-2, atol=2e-2)

    print("KERNEL_OK")
</pallas_src>

<mosaic_0001>
module attributes {stable_mosaic.version = 11 : i64} {
  func.func @decoder_fwd_kernel(%arg0: i32, %arg1: memref<16x512xbf16, #tpu.memory_space<vmem>>, %arg2: memref<512x1024xbf16, #tpu.memory_space<vmem>>, %arg3: memref<1024x512xbf16, #tpu.memory_space<vmem>>, %arg4: memref<512x128xbf16, #tpu.memory_space<vmem>>, %arg5: memref<3x1024xf32, #tpu.memory_space<vmem>>, %arg6: memref<16x128xf32, #tpu.memory_space<vmem>>) attributes {dimension_semantics = [#tpu.dimension_semantics<parallel>], iteration_bounds = array<i64: 1>, scalar_prefetch = 0 : i64, scratch_operands = 0 : i64, tpu.core_type = #tpu.core_type<tc>, window_params = [{transform_indices = @transform_0, window_bounds = array<i64: 16, 512>}, {pipeline_mode = #tpu.pipeline_mode<synchronous>, transform_indices = @transform_1, window_bounds = array<i64: 512, 1024>}, {pipeline_mode = #tpu.pipeline_mode<synchronous>, transform_indices = @transform_2, window_bounds = array<i64: 1024, 512>}, {pipeline_mode = #tpu.pipeline_mode<synchronous>, transform_indices = @transform_3, window_bounds = array<i64: 512, 128>}, {pipeline_mode = #tpu.pipeline_mode<synchronous>, transform_indices = @transform_4, window_bounds = array<i64: 3, 1024>}, {transform_indices = @transform_5, window_bounds = array<i64: 16, 128>}]} {
    %c0 = arith.constant 0 : index
    %c0_0 = arith.constant 0 : index
    %0 = vector.load %arg5[%c0, %c0_0] : memref<3x1024xf32, #tpu.memory_space<vmem>>, vector<3x1024xf32>
    %1 = vector.extract_strided_slice %0 {offsets = [0, 0], sizes = [1, 1024], strides = [1, 1]} : vector<3x1024xf32> to vector<1x1024xf32>
    %2 = vector.extract_strided_slice %0 {offsets = [1, 0], sizes = [1, 512], strides = [1, 1]} : vector<3x1024xf32> to vector<1x512xf32>
    %3 = vector.extract_strided_slice %0 {offsets = [2, 0], sizes = [1, 128], strides = [1, 1]} : vector<3x1024xf32> to vector<1x128xf32>
    %c0_1 = arith.constant 0 : index
    %c0_2 = arith.constant 0 : index
    %4 = vector.load %arg1[%c0_1, %c0_2] : memref<16x512xbf16, #tpu.memory_space<vmem>>, vector<16x512xbf16>
    %c0_3 = arith.constant 0 : index
    %c0_4 = arith.constant 0 : index
    %5 = vector.load %arg2[%c0_3, %c0_4] : memref<512x1024xbf16, #tpu.memory_space<vmem>>, vector<512x1024xbf16>
    %cst = arith.constant dense<0.000000e+00> : vector<16x1024xf32>
    %6 = tpu.matmul %4, %5, %cst {dimension_numbers = #tpu.dot_dimension_numbers<[1], [0], [0], [1], [0, 0, 1, 1], [], []>} : vector<16x512xbf16>, vector<512x1024xbf16>, vector<16x1024xf32> -> vector<16x1024xf32>
    %7 = vector.broadcast %1 : vector<1x1024xf32> to vector<16x1024xf32>
    %8 = arith.addf %6, %7 : vector<16x1024xf32>
    %cst_5 = arith.constant 0.000000e+00 : f32
    %9 = vector.broadcast %cst_5 : f32 to vector<16x1024xf32>
    %10 = arith.cmpf ogt, %8, %9 : vector<16x1024xf32>
    %cst_6 = arith.constant 0.00999999977 : f32
    %11 = vector.broadcast %cst_6 : f32 to vector<16x1024xf32>
    %12 = arith.mulf %11, %8 : vector<16x1024xf32>
    %13 = arith.select %10, %8, %12 : vector<16x1024xi1>, vector<16x1024xf32>
    %14 = arith.truncf %13 : vector<16x1024xf32> to vector<16x1024xbf16>
    %c0_7 = arith.constant 0 : index
    %c0_8 = arith.constant 0 : index
    %15 = vector.load %arg3[%c0_7, %c0_8] : memref<1024x512xbf16, #tpu.memory_space<vmem>>, vector<1024x512xbf16>
    %cst_9 = arith.constant dense<0.000000e+00> : vector<16x512xf32>
    %16 = tpu.matmul %14, %15, %cst_9 {dimension_numbers = #tpu.dot_dimension_numbers<[1], [0], [0], [1], [0, 0, 1, 1], [], []>} : vector<16x1024xbf16>, vector<1024x512xbf16>, vector<16x512xf32> -> vector<16x512xf32>
    %17 = vector.broadcast %2 : vector<1x512xf32> to vector<16x512xf32>
    %18 = arith.addf %16, %17 : vector<16x512xf32>
    %cst_10 = arith.constant 0.000000e+00 : f32
    %19 = vector.broadcast %cst_10 : f32 to vector<16x512xf32>
    %20 = arith.cmpf ogt, %18, %19 : vector<16x512xf32>
    %cst_11 = arith.constant 0.00999999977 : f32
    %21 = vector.broadcast %cst_11 : f32 to vector<16x512xf32>
    %22 = arith.mulf %21, %18 : vector<16x512xf32>
    %23 = arith.select %20, %18, %22 : vector<16x512xi1>, vector<16x512xf32>
    %24 = arith.truncf %23 : vector<16x512xf32> to vector<16x512xbf16>
    %c0_12 = arith.constant 0 : index
    %c0_13 = arith.constant 0 : index
    %25 = vector.load %arg4[%c0_12, %c0_13] : memref<512x128xbf16, #tpu.memory_space<vmem>>, vector<512x128xbf16>
    %cst_14 = arith.constant dense<0.000000e+00> : vector<16x128xf32>
    %26 = tpu.matmul %24, %25, %cst_14 {dimension_numbers = #tpu.dot_dimension_numbers<[1], [0], [0], [1], [0, 0, 1, 1], [], []>} : vector<16x512xbf16>, vector<512x128xbf16>, vector<16x128xf32> -> vector<16x128xf32>
    %27 = vector.broadcast %3 : vector<1x128xf32> to vector<16x128xf32>
    %28 = arith.addf %26, %27 : vector<16x128xf32>
    %cst_15 = arith.constant 0.000000e+00 : f32
    %29 = vector.broadcast %cst_15 : f32 to vector<16x128xf32>
    %30 = arith.cmpf ogt, %28, %29 : vector<16x128xf32>
    %cst_16 = arith.constant 0.00999999977 : f32
    %31 = vector.broadcast %cst_16 : f32 to vector<16x128xf32>
    %32 = arith.mulf %31, %28 : vector<16x128xf32>
    %33 = arith.select %30, %28, %32 : vector<16x128xi1>, vector<16x128xf32>
    %c0_17 = arith.constant 0 : index
    %c0_18 = arith.constant 0 : index
    %34 = vector.load %arg6[%c0_17, %c0_18] : memref<16x128xf32, #tpu.memory_space<vmem>>, vector<16x128xf32>
    tpu.vector_store %arg6[%c0_17, %c0_18], %33 {strides = array<i32>} : memref<16x128xf32, #tpu.memory_space<vmem>>, vector<16x128xf32>,
    return
  }
  func.func @transform_0(%arg0: i32) -> (i32, i32) {
    %c0_i32 = arith.constant 0 : i32
    %c0_i32_0 = arith.constant 0 : i32
    return %arg0, %c0_i32 : i32, i32
  }
  func.func @transform_1(%arg0: i32) -> (i32, i32) {
    %c0_i32 = arith.constant 0 : i32
    %c0_i32_0 = arith.constant 0 : i32
    %c0_i32_1 = arith.constant 0 : i32
    return %c0_i32, %c0_i32_0 : i32, i32
  }
  func.func @transform_2(%arg0: i32) -> (i32, i32) {
    %c0_i32 = arith.constant 0 : i32
    %c0_i32_0 = arith.constant 0 : i32
    %c0_i32_1 = arith.constant 0 : i32
    return %c0_i32, %c0_i32_0 : i32, i32
  }
  func.func @transform_3(%arg0: i32) -> (i32, i32) {
    %c0_i32 = arith.constant 0 : i32
    %c0_i32_0 = arith.constant 0 : i32
    %c0_i32_1 = arith.constant 0 : i32
    return %c0_i32, %c0_i32_0 : i32, i32
  }
  func.func @transform_4(%arg0: i32) -> (i32, i32) {
    %c0_i32 = arith.constant 0 : i32
    %c0_i32_0 = arith.constant 0 : i32
    %c0_i32_1 = arith.constant 0 : i32
    return %c0_i32, %c0_i32_0 : i32, i32
  }
  func.func @transform_5(%arg0: i32) -> (i32, i32) {
    %c0_i32 = arith.constant 0 : i32
    %c0_i32_0 = arith.constant 0 : i32
    return %arg0, %c0_i32 : i32, i32
  }
}

</mosaic_0001>

<llo_original>
// kernel: tpu_custom_call.1
$region0: #{tpu_custom_call.1}
  #allocation0 [shape = 'u32[]', space=smem, size = 0x4, offset = 0x4, fixed_abs, tag = 'smem constant byte address 0x4 - core index']
  #allocation1 [shape = 'u32[144,128]{1,0:T(1,128)}', space=vmem, size = 0x12000, scoped, tag = 'internal scratch']
  %s0 = inlined_call_operand.hbm [shape: bf16[16,512], index: 0, kind: input, shape index: {}]
  %s1 = inlined_call_operand.hbm [shape: bf16[512,1024], index: 1, kind: input, shape index: {}]
  %s2 = inlined_call_operand.hbm [shape: bf16[1024,512], index: 2, kind: input, shape index: {}]
  %s3 = inlined_call_operand.hbm [shape: bf16[512,128], index: 3, kind: input, shape index: {}]
  %s4 = inlined_call_operand.hbm [shape: f32[3,1024], index: 4, kind: input, shape index: {}]
  %s5 = inlined_call_operand.hbm [shape: f32[16,128], index: 5, kind: output, shape index: {}]
  %s6 = sld [smem:[#allocation0]]
  $region50: #{tpu_custom_call.1} parent=0
    _
  %s8 = ssub.s32 1, %s6
  %s9 = scalar_select 0, %s8, %s6
  $region1: #{tpu_custom_call.1} parent=0
    #allocation2 [shape = 'u8[16384]{0}', space=vmem, size = 0x4000, scoped, tag = 'input window, operand 0, single buffered']
    #allocation3 [shape = 's32[1]{0}', space=sflag, size = 0x4, scoped, tag = 'scoped memory for tpu_custom_call.1']
    #allocation4 [shape = 's32[1]{0}', space=sflag, size = 0x4, scoped, tag = 'scoped memory for tpu_custom_call.1']
    #allocation5 [shape = 'u8[1048576]{0}', space=vmem, size = 0x100000, scoped, tag = 'input window, operand 1, single buffered']
    #allocation6 [shape = 's32[1]{0}', space=sflag, size = 0x4, scoped, tag = 'scoped memory for tpu_custom_call.1']
    #allocation7 [shape = 'u8[1048576]{0}', space=vmem, size = 0x100000, scoped, tag = 'input window, operand 2, single buffered']
    #allocation8 [shape = 'u8[131072]{0}', space=vmem, size = 0x20000, scoped, tag = 'input window, operand 3, single buffered']
    #allocation9 [shape = 's32[1]{0}', space=sflag, size = 0x4, scoped, tag = 'scoped memory for tpu_custom_call.1']
    #allocation10 [shape = 'u8[16384]{0}', space=vmem, size = 0x4000, scoped, tag = 'input window, operand 4, single buffered']
    #allocation11 [shape = 'u8[8192]{0}', space=vmem, size = 0x2000, scoped, tag = 'output window, operand 0, single buffered']
    %10 = vsyncpa [#allocation3], 0
    %11 = vsyncpa [#allocation6], 0
    %12 = vsyncpa [#allocation9], 0
    %13 = vsyncpa [#allocation4], 0
    // Predicated region
    $region2: #{tpu_custom_call.1} parent=1 // pred_check
      _
    $region3: #{tpu_custom_call.1} parent=1 // pred_check_branch
      %15 = sbr.rel (0) target = $region5
    $region4: #{tpu_custom_call.1} parent=1 // pred_region
      %s17 = ssub.s32 512, 512
      %18 = vsyncadd [#allocation3], %s17
      %s19 = sshll.u32 [#allocation2], 4
      %s20 = int_to_ptr.vmem [resolvable:$true] %s19
      %25 = dma.hbm_to_vmem [thread:$0]  %s0, 512, %s20, [#allocation3], 256, 256, 16
    $region5: #{tpu_custom_call.1} parent=1 // pred_fallthru
      _
    // Predicated region
    $region6: #{tpu_custom_call.1} parent=1 // pred_check
      _
    $region7: #{tpu_custom_call.1} parent=1 // pred_check_branch
      %27 = sbr.rel (0) target = $region9
    $region8: #{tpu_custom_call.1} parent=1 // pred_region
      %s29 = ssub.s32 32768, 32768
      %30 = vsyncadd [#allocation6], %s29
      %s31 = sshll.u32 [#allocation5], 4
      %s32 = int_to_ptr.vmem [resolvable:$true] %s31
      %37 = dma.hbm_to_vmem [thread:$0]  %s1, 32768, %s32, [#allocation6], 512, 512, 32
    $region9: #{tpu_custom_call.1} parent=1 // pred_fallthru
      _
    // Predicated region
    $region10: #{tpu_custom_call.1} parent=1 // pred_check
      _
    $region11: #{tpu_custom_call.1} parent=1 // pred_check_branch
      %39 = sbr.rel (0) target = $region13
    $region12: #{tpu_custom_call.1} parent=1 // pred_region
      %s41 = ssub.s32 32768, 32768
      %42 = vsyncadd [#allocation6], %s41
      %s43 = sshll.u32 [#allocation7], 4
      %s44 = int_to_ptr.vmem [resolvable:$true] %s43
      %49 = dma.hbm_to_vmem [thread:$0]  %s2, 32768, %s44, [#allocation6], 256, 256, 16
    $region13: #{tpu_custom_call.1} parent=1 // pred_fallthru
      _
    // Predicated region
    $region14: #{tpu_custom_call.1} parent=1 // pred_check
      _
    $region15: #{tpu_custom_call.1} parent=1 // pred_check_branch
      %51 = sbr.rel (0) target = $region17
    $region16: #{tpu_custom_call.1} parent=1 // pred_region
      %s53 = ssub.s32 4096, 4096
      %54 = vsyncadd [#allocation9], %s53
      %s55 = sshll.u32 [#allocation8], 4
      %s56 = int_to_ptr.vmem [resolvable:$true] %s55
      %61 = dma.hbm_to_vmem [thread:$0]  %s3, 4096, %s56, [#allocation9], 64, 64, 4
    $region17: #{tpu_custom_call.1} parent=1 // pred_fallthru
      _
    // Predicated region
    $region18: #{tpu_custom_call.1} parent=1 // pred_check
      _
    $region19: #{tpu_custom_call.1} parent=1 // pred_check_branch
      %63 = sbr.rel (0) target = $region21
    $region20: #{tpu_custom_call.1} parent=1 // pred_region
      %s65 = ssub.s32 512, 512
      %66 = vsyncadd [#allocation9], %s65
      %s68 = sshll.u32 [#allocation10], 4
      %s69 = int_to_ptr.vmem [resolvable:$true] %s68
      %71 = dma.hbm_to_vmem [thread:$0]  %s4, 512, %s69, [#allocation9]
    $region21: #{tpu_custom_call.1} parent=1 // pred_fallthru
      _
    // Predicated region
    $region22: #{tpu_custom_call.1} parent=1 // pred_check
      _
    $region23: #{tpu_custom_call.1} parent=1 // pred_check_branch
      %73 = sbr.rel (0) target = $region25
    $region24: #{tpu_custom_call.1} parent=1 // pred_region
      %74 = dma.done [#allocation3], 512
    $region25: #{tpu_custom_call.1} parent=1 // pred_fallthru
      _
    // Predicated region
    $region26: #{tpu_custom_call.1} parent=1 // pred_check
      _
    $region27: #{tpu_custom_call.1} parent=1 // pred_check_branch
      %76 = sbr.rel (0) target = $region29
    $region28: #{tpu_custom_call.1} parent=1 // pred_region
      %77 = dma.done [#allocation6], 32768
    $region29: #{tpu_custom_call.1} parent=1 // pred_fallthru
      _
    // Predicated region
    $region30: #{tpu_custom_call.1} parent=1 // pred_check
      _
    $region31: #{tpu_custom_call.1} parent=1 // pred_check_branch
      %79 = sbr.rel (0) target = $region33
    $region32: #{tpu_custom_call.1} parent=1 // pred_region
      %80 = dma.done [#allocation6], 32768
    $region33: #{tpu_custom_call.1} parent=1 // pred_fallthru
      _
    // Predicated region
    $region34: #{tpu_custom_call.1} parent=1 // pred_check
      _
    $region35: #{tpu_custom_call.1} parent=1 // pred_check_branch
      %82 = sbr.rel (0) target = $region37
    $region36: #{tpu_custom_call.1} parent=1 // pred_region
      %83 = dma.done [#allocation9], 4096
    $region37: #{tpu_custom_call.1} parent=1 // pred_fallthru
      _
    // Predicated region
    $region38: #{tpu_custom_call.1} parent=1 // pred_check
      _
    $region39: #{tpu_custom_call.1} parent=1 // pred_check_branch
      %85 = sbr.rel (0) target = $region41
    $region40: #{tpu_custom_call.1} parent=1 // pred_region
      %86 = dma.done [#allocation9], 512
    $region41: #{tpu_custom_call.1} parent=1 // pred_fallthru
      _
    %v88 = vld [vmem:[#allocation10] sm:$0x77]
    %v89 = vld [vmem:[#allocation10 + $0x8] sm:$0x77]
    %v90 = vld [vmem:[#allocation10 + $0x10] sm:$0x77]
    %v91 = vld [vmem:[#allocation10 + $0x18] sm:$0x77]
    %v92 = vld [vmem:[#allocation2] sm:$0xff]
    %v93 = vld [vmem:[#allocation2 + $0x8] sm:$0xff]
    %v94 = vld [vmem:[#allocation2 + $0x10] sm:$0xff]
    %v95 = vld [vmem:[#allocation2 + $0x18] sm:$0xff]
    %v96 = vld [vmem:[#allocation5] sm:$0xff]
    %v97 = vld [vmem:[#allocation5 + $0x8] sm:$0xff]
    %v98 = vld [vmem:[#allocation5 + $0x10] sm:$0xff]
    %v99 = vld [vmem:[#allocation5 + $0x18] sm:$0xff]
    %v100 = vld [vmem:[#allocation5 + $0x20] sm:$0xff]
    %v101 = vld [vmem:[#allocation5 + $0x28] sm:$0xff]
    %v102 = vld [vmem:[#allocation5 + $0x30] sm:$0xff]
    %v103 = vld [vmem:[#allocation5 + $0x38] sm:$0xff]
    %v104 = vld [vmem:[#allocation5 + $0x40] sm:$0xff]
    %v105 = vld [vmem:[#allocation5 + $0x48] sm:$0xff]
    %v106 = vld [vmem:[#allocation5 + $0x50] sm:$0xff]
    %v107 = vld [vmem:[#allocation5 + $0x58] sm:$0xff]
    %v108 = vld [vmem:[#allocation5 + $0x60] sm:$0xff]
    %v109 = vld [vmem:[#allocation5 + $0x68] sm:$0xff]
    %v110 = vld [vmem:[#allocation5 + $0x70] sm:$0xff]
    %v111 = vld [vmem:[#allocation5 + $0x78] sm:$0xff]
    %v112 = vld [vmem:[#allocation5 + $0x80] sm:$0xff]
    %v113 = vld [vmem:[#allocation5 + $0x88] sm:$0xff]
    %v114 = vld [vmem:[#allocation5 + $0x90] sm:$0xff]
    %v115 = vld [vmem:[#allocation5 + $0x98] sm:$0xff]
    %v116 = vld [vmem:[#allocation5 + $0xa0] sm:$0xff]
    %v117 = vld [vmem:[#allocation5 + $0xa8] sm:$0xff]
    %v118 = vld [vmem:[#allocation5 + $0xb0] sm:$0xff]
    %v119 = vld [vmem:[#allocation5 + $0xb8] sm:$0xff]
    %v120 = vld [vmem:[#allocation5 + $0xc0] sm:$0xff]
    %v121 = vld [vmem:[#allocation5 + $0xc8] sm:$0xff]
    %v122 = vld [vmem:[#allocation5 + $0xd0] sm:$0xff]
    %v123 = vld [vmem:[#allocation5 + $0xd8] sm:$0xff]
    %v124 = vld [vmem:[#allocation5 + $0xe0] sm:$0xff]
    %v125 = vld [vmem:[#allocation5 + $0xe8] sm:$0xff]
    %v126 = vld [vmem:[#allocation5 + $0xf0] sm:$0xff]
    %v127 = vld [vmem:[#allocation5 + $0xf8] sm:$0xff]
    %v128 = vld [vmem:[#allocation5 + $0x100] sm:$0xff]
    %v129 = vld [vmem:[#allocation5 + $0x108] sm:$0xff]
    %v130 = vld [vmem:[#allocation5 + $0x110] sm:$0xff]
    %v131 = vld [vmem:[#allocation5 + $0x118] sm:$0xff]
    %v132 = vld [vmem:[#allocation5 + $0x120] sm:$0xff]
    %v133 = vld [vmem:[#allocation5 + $0x128] sm:$0xff]
    %v134 = vld [vmem:[#allocation5 + $0x130] sm:$0xff]
    %v135 = vld [vmem:[#allocation5 + $0x138] sm:$0xff]
    %v136 = vld [vmem:[#allocation5 + $0x140] sm:$0xff]
    %v137 = vld [vmem:[#allocation5 + $0x148] sm:$0xff]
    %v138 = vld [vmem:[#allocation5 + $0x150] sm:$0xff]
    %v139 = vld [vmem:[#allocation5 + $0x158] sm:$0xff]
    %v140 = vld [vmem:[#allocation5 + $0x160] sm:$0xff]
    %v141 = vld [vmem:[#allocation5 + $0x168] sm:$0xff]
    %v142 = vld [vmem:[#allocation5 + $0x170] sm:$0xff]
    %v143 = vld [vmem:[#allocation5 + $0x178] sm:$0xff]
    %v144 = vld [vmem:[#allocation5 + $0x180] sm:$0xff]
    %v145 = vld [vmem:[#allocation5 + $0x188] sm:$0xff]
    %v146 = vld [vmem:[#allocation5 + $0x190] sm:$0xff]
    %v147 = vld [vmem:[#allocation5 + $0x198] sm:$0xff]
    %v148 = vld [vmem:[#allocation5 + $0x1a0] sm:$0xff]
    %v149 = vld [vmem:[#allocation5 + $0x1a8] sm:$0xff]
    %v150 = vld [vmem:[#allocation5 + $0x1b0] sm:$0xff]
    %v151 = vld [vmem:[#allocation5 + $0x1b8] sm:$0xff]
    %v152 = vld [vmem:[#allocation5 + $0x1c0] sm:$0xff]
    %v153 = vld [vmem:[#allocation5 + $0x1c8] sm:$0xff]
    %v154 = vld [vmem:[#allocation5 + $0x1d0] sm:$0xff]
    %v155 = vld [vmem:[#allocation5 + $0x1d8] sm:$0xff]
    %v156 = vld [vmem:[#allocation5 + $0x1e0] sm:$0xff]
    %v157 = vld [vmem:[#allocation5 + $0x1e8] sm:$0xff]
    %v158 = vld [vmem:[#allocation5 + $0x1f0] sm:$0xff]
    %v159 = vld [vmem:[#allocation5 + $0x1f8] sm:$0xff]
    %v160 = vld [vmem:[#allocation5 + $0x200] sm:$0xff]
    %v161 = vld [vmem:[#allocation5 + $0x208] sm:$0xff]
    %v162 = vld [vmem:[#allocation5 + $0x210] sm:$0xff]
    %v163 = vld [vmem:[#allocation5 + $0x218] sm:$0xff]
    %v164 = vld [vmem:[#allocation5 + $0x220] sm:$0xff]
    %v165 = vld [vmem:[#allocation5 + $0x228] sm:$0xff]
    %v166 = vld [vmem:[#allocation5 + $0x230] sm:$0xff]
    %v167 = vld [vmem:[#allocation5 + $0x238] sm:$0xff]
    %v168 = vld [vmem:[#allocation5 + $0x240] sm:$0xff]
    %v169 = vld [vmem:[#allocation5 + $0x248] sm:$0xff]
    %v170 = vld [vmem:[#allocation5 + $0x250] sm:$0xff]
    %v171 = vld [vmem:[#allocation5 + $0x258] sm:$0xff]
    %v172 = vld [vmem:[#allocation5 + $0x260] sm:$0xff]
    %v173 = vld [vmem:[#allocation5 + $0x268] sm:$0xff]
    %v174 = vld [vmem:[#allocation5 + $0x270] sm:$0xff]
    %v175 = vld [vmem:[#allocation5 + $0x278] sm:$0xff]
    %v176 = vld [vmem:[#allocation5 + $0x280] sm:$0xff]
    %v177 = vld [vmem:[#allocation5 + $0x288] sm:$0xff]
    %v178 = vld [vmem:[#allocation5 + $0x290] sm:$0xff]
    %v179 = vld [vmem:[#allocation5 + $0x298] sm:$0xff]
    %v180 = vld [vmem:[#allocation5 + $0x2a0] sm:$0xff]
    %v181 = vld [vmem:[#allocation5 + $0x2a8] sm:$0xff]
    %v182 = vld [vmem:[#allocation5 + $0x2b0] sm:$0xff]
    %v183 = vld [vmem:[#allocation5 + $0x2b8] sm:$0xff]
    %v184 = vld [vmem:[#allocation5 + $0x2c0] sm:$0xff]
    %v185 = vld [vmem:[#allocation5 + $0x2c8] sm:$0xff]
    %v186 = vld [vmem:[#allocation5 + $0x2d0] sm:$0xff]
    %v187 = vld [vmem:[#allocation5 + $0x2d8] sm:$0xff]
    %v188 = vld [vmem:[#allocation5 + $0x2e0] sm:$0xff]
    %v189 = vld [vmem:[#allocation5 + $0x2e8] sm:$0xff]
    %v190 = vld [vmem:[#allocation5 + $0x2f0] sm:$0xff]
    %v191 = vld [vmem:[#allocation5 + $0x2f8] sm:$0xff]
    %v192 = vld [vmem:[#allocation5 + $0x300] sm:$0xff]
    %v193 = vld [vmem:[#allocation5 + $0x308] sm:$0xff]
    %v194 = vld [vmem:[#allocation5 + $0x310] sm:$0xff]
    %v195 = vld [vmem:[#allocation5 + $0x318] sm:$0xff]
    %v196 = vld [vmem:[#allocation5 + $0x320] sm:$0xff]
    %v197 = vld [vmem:[#allocation5 + $0x328] sm:$0xff]
    %v198 = vld [vmem:[#allocation5 + $0x330] sm:$0xff]
    %v199 = vld [vmem:[#allocation5 + $0x338] sm:$0xff]
    %v200 = vld [vmem:[#allocation5 + $0x340] sm:$0xff]
    %v201 = vld [vmem:[#allocation5 + $0x348] sm:$0xff]
    %v202 = vld [vmem:[#allocation5 + $0x350] sm:$0xff]
    %v203 = vld [vmem:[#allocation5 + $0x358] sm:$0xff]
    %v204 = vld [vmem:[#allocation5 + $0x360] sm:$0xff]
    %v205 = vld [vmem:[#allocation5 + $0x368] sm:$0xff]
    %v206 = vld [vmem:[#allocation5 + $0x370] sm:$0xff]
    %v207 = vld [vmem:[#allocation5 + $0x378] sm:$0xff]
    %v208 = vld [vmem:[#allocation5 + $0x380] sm:$0xff]
    %v209 = vld [vmem:[#allocation5 + $0x388] sm:$0xff]
    %v210 = vld [vmem:[#allocation5 + $0x390] sm:$0xff]
    %v211 = vld [vmem:[#allocation5 + $0x398] sm:$0xff]
    %v212 = vld [vmem:[#allocation5 + $0x3a0] sm:$0xff]
    %v213 = vld [vmem:[#allocation5 + $0x3a8] sm:$0xff]
    %v214 = vld [vmem:[#allocation5 + $0x3b0] sm:$0xff]
    %v215 = vld [vmem:[#allocation5 + $0x3b8] sm:$0xff]
    %v216 = vld [vmem:[#allocation5 + $0x3c0] sm:$0xff]
    %v217 = vld [vmem:[#allocation5 + $0x3c8] sm:$0xff]
    %v218 = vld [vmem:[#allocation5 + $0x3d0] sm:$0xff]
    %v219 = vld [vmem:[#allocation5 + $0x3d8] sm:$0xff]
    %v220 = vld [vmem:[#allocation5 + $0x3e0] sm:$0xff]
    %v221 = vld [vmem:[#allocation5 + $0x3e8] sm:$0xff]
    %v222 = vld [vmem:[#allocation5 + $0x3f0] sm:$0xff]
    %v223 = vld [vmem:[#allocation5 + $0x3f8] sm:$0xff]
    %v224 = vld [vmem:[#allocation5 + $0x400] sm:$0xff]
    %v225 = vld [vmem:[#allocation5 + $0x408] sm:$0xff]
    %v226 = vld [vmem:[#allocation5 + $0x410] sm:$0xff]
    %v227 = vld [vmem:[#allocation5 + $0x418] sm:$0xff]
    %v228 = vld [vmem:[#allocation5 + $0x420] sm:$0xff]
    %v229 = vld [vmem:[#allocation5 + $0x428] sm:$0xff]
    %v230 = vld [vmem:[#allocation5 + $0x430] sm:$0xff]
    %v231 = vld [vmem:[#allocation5 + $0x438] sm:$0xff]
    %v232 = vld [vmem:[#allocation5 + $0x440] sm:$0xff]
    %v233 = vld [vmem:[#allocation5 + $0x448] sm:$0xff]
    %v234 = vld [vmem:[#allocation5 + $0x450] sm:$0xff]
    %v235 = vld [vmem:[#allocation5 + $0x458] sm:$0xff]
    %v236 = vld [vmem:[#allocation5 + $0x460] sm:$0xff]
    %v237 = vld [vmem:[#allocation5 + $0x468] sm:$0xff]
    %v238 = vld [vmem:[#allocation5 + $0x470] sm:$0xff]
    %v239 = vld [vmem:[#allocation5 + $0x478] sm:$0xff]
    %v240 = vld [vmem:[#allocation5 + $0x480] sm:$0xff]
    %v241 = vld [vmem:[#allocation5 + $0x488] sm:$0xff]
    %v242 = vld [vmem:[#allocation5 + $0x490] sm:$0xff]
    %v243 = vld [vmem:[#allocation5 + $0x498] sm:$0xff]
    %v244 = vld [vmem:[#allocation5 + $0x4a0] sm:$0xff]
    %v245 = vld [vmem:[#allocation5 + $0x4a8] sm:$0xff]
    %v246 = vld [vmem:[#allocation5 + $0x4b0] sm:$0xff]
    %v247 = vld [vmem:[#allocation5 + $0x4b8] sm:$0xff]
    %v248 = vld [vmem:[#allocation5 + $0x4c0] sm:$0xff]
    %v249 = vld [vmem:[#allocation5 + $0x4c8] sm:$0xff]
    %v250 = vld [vmem:[#allocation5 + $0x4d0] sm:$0xff]
    %v251 = vld [vmem:[#allocation5 + $0x4d8] sm:$0xff]
    %v252 = vld [vmem:[#allocation5 + $0x4e0] sm:$0xff]
    %v253 = vld [vmem:[#allocation5 + $0x4e8] sm:$0xff]
    %v254 = vld [vmem:[#allocation5 + $0x4f0] sm:$0xff]
    %v255 = vld [vmem:[#allocation5 + $0x4f8] sm:$0xff]
    %v256 = vld [vmem:[#allocation5 + $0x500] sm:$0xff]
    %v257 = vld [vmem:[#allocation5 + $0x508] sm:$0xff]
    %v258 = vld [vmem:[#allocation5 + $0x510] sm:$0xff]
    %v259 = vld [vmem:[#allocation5 + $0x518] sm:$0xff]
    %v260 = vld [vmem:[#allocation5 + $0x520] sm:$0xff]
    %v261 = vld [vmem:[#allocation5 + $0x528] sm:$0xff]
    %v262 = vld [vmem:[#allocation5 + $0x530] sm:$0xff]
    %v263 = vld [vmem:[#allocation5 + $0x538] sm:$0xff]
    %v264 = vld [vmem:[#allocation5 + $0x540] sm:$0xff]
    %v265 = vld [vmem:[#allocation5 + $0x548] sm:$0xff]
    %v266 = vld [vmem:[#allocation5 + $0x550] sm:$0xff]
    %v267 = vld [vmem:[#allocation5 + $0x558] sm:$0xff]
    %v268 = vld [vmem:[#allocation5 + $0x560] sm:$0xff]
    %v269 = vld [vmem:[#allocation5 + $0x568] sm:$0xff]
    %v270 = vld [vmem:[#allocation5 + $0x570] sm:$0xff]
    %v271 = vld [vmem:[#allocation5 + $0x578] sm:$0xff]
    %v272 = vld [vmem:[#allocation5 + $0x580] sm:$0xff]
    %v273 = vld [vmem:[#allocation5 + $0x588] sm:$0xff]
    %v274 = vld [vmem:[#allocation5 + $0x590] sm:$0xff]
    %v275 = vld [vmem:[#allocation5 + $0x598] sm:$0xff]
    %v276 = vld [vmem:[#allocation5 + $0x5a0] sm:$0xff]
    %v277 = vld [vmem:[#allocation5 + $0x5a8] sm:$0xff]
    %v278 = vld [vmem:[#allocation5 + $0x5b0] sm:$0xff]
    %v279 = vld [vmem:[#allocation5 + $0x5b8] sm:$0xff]
    %v280 = vld [vmem:[#allocation5 + $0x5c0] sm:$0xff]
    %v281 = vld [vmem:[#allocation5 + $0x5c8] sm:$0xff]
    %v282 = vld [vmem:[#allocation5 + $0x5d0] sm:$0xff]
    %v283 = vld [vmem:[#allocation5 + $0x5d8] sm:$0xff]
    %v284 = vld [vmem:[#allocation5 + $0x5e0] sm:$0xff]
    %v285 = vld [vmem:[#allocation5 + $0x5e8] sm:$0xff]
    %v286 = vld [vmem:[#allocation5 + $0x5f0] sm:$0xff]
    %v287 = vld [vmem:[#allocation5 + $0x5f8] sm:$0xff]
    %v288 = vld [vmem:[#allocation5 + $0x600] sm:$0xff]
    %v289 = vld [vmem:[#allocation5 + $0x608] sm:$0xff]
    %v290 = vld [vmem:[#allocation5 + $0x610] sm:$0xff]
    %v291 = vld [vmem:[#allocation5 + $0x618] sm:$0xff]
    %v292 = vld [vmem:[#allocation5 + $0x620] sm:$0xff]
    %v293 = vld [vmem:[#allocation5 + $0x628] sm:$0xff]
    %v294 = vld [vmem:[#allocation5 + $0x630] sm:$0xff]
    %v295 = vld [vmem:[#allocation5 + $0x638] sm:$0xff]
    %v296 = vld [vmem:[#allocation5 + $0x640] sm:$0xff]
    %v297 = vld [vmem:[#allocation5 + $0x648] sm:$0xff]
    %v298 = vld [vmem:[#allocation5 + $0x650] sm:$0xff]
    %v299 = vld [vmem:[#allocation5 + $0x658] sm:$0xff]
    %v300 = vld [vmem:[#allocation5 + $0x660] sm:$0xff]
    %v301 = vld [vmem:[#allocation5 + $0x668] sm:$0xff]
    %v302 = vld [vmem:[#allocation5 + $0x670] sm:$0xff]
    %v303 = vld [vmem:[#allocation5 + $0x678] sm:$0xff]
    %v304 = vld [vmem:[#allocation5 + $0x680] sm:$0xff]
    %v305 = vld [vmem:[#allocation5 + $0x688] sm:$0xff]
    %v306 = vld [vmem:[#allocation5 + $0x690] sm:$0xff]
    %v307 = vld [vmem:[#allocation5 + $0x698] sm:$0xff]
    %v308 = vld [vmem:[#allocation5 + $0x6a0] sm:$0xff]
    %v309 = vld [vmem:[#allocation5 + $0x6a8] sm:$0xff]
    %v310 = vld [vmem:[#allocation5 + $0x6b0] sm:$0xff]
    %v311 = vld [vmem:[#allocation5 + $0x6b8] sm:$0xff]
    %v312 = vld [vmem:[#allocation5 + $0x6c0] sm:$0xff]
    %v313 = vld [vmem:[#allocation5 + $0x6c8] sm:$0xff]
    %v314 = vld [vmem:[#allocation5 + $0x6d0] sm:$0xff]
    %v315 = vld [vmem:[#allocation5 + $0x6d8] sm:$0xff]
    %v316 = vld [vmem:[#allocation5 + $0x6e0] sm:$0xff]
    %v317 = vld [vmem:[#allocation5 + $0x6e8] sm:$0xff]
    %v318 = vld [vmem:[#allocation5 + $0x6f0] sm:$0xff]
    %v319 = vld [vmem:[#allocation5 + $0x6f8] sm:$0xff]
    %v320 = vld [vmem:[#allocation5 + $0x700] sm:$0xff]
    %v321 = vld [vmem:[#allocation5 + $0x708] sm:$0xff]
    %v322 = vld [vmem:[#allocation5 + $0x710] sm:$0xff]
    %v323 = vld [vmem:[#allocation5 + $0x718] sm:$0xff]
    %v324 = vld [vmem:[#allocation5 + $0x720] sm:$0xff]
    %v325 = vld [vmem:[#allocation5 + $0x728] sm:$0xff]
    %v326 = vld [vmem:[#allocation5 + $0x730] sm:$0xff]
    %v327 = vld [vmem:[#allocation5 + $0x738] sm:$0xff]
    %v328 = vld [vmem:[#allocation5 + $0x740] sm:$0xff]
    %v329 = vld [vmem:[#allocation5 + $0x748] sm:$0xff]
    %v330 = vld [vmem:[#allocation5 + $0x750] sm:$0xff]
    %v331 = vld [vmem:[#allocation5 + $0x758] sm:$0xff]
    %v332 = vld [vmem:[#allocation5 + $0x760] sm:$0xff]
    %v333 = vld [vmem:[#allocation5 + $0x768] sm:$0xff]
    %v334 = vld [vmem:[#allocation5 + $0x770] sm:$0xff]
    %v335 = vld [vmem:[#allocation5 + $0x778] sm:$0xff]
    %v336 = vld [vmem:[#allocation5 + $0x780] sm:$0xff]
    %v337 = vld [vmem:[#allocation5 + $0x788] sm:$0xff]
    %v338 = vld [vmem:[#allocation5 + $0x790] sm:$0xff]
    %v339 = vld [vmem:[#allocation5 + $0x798] sm:$0xff]
    %v340 = vld [vmem:[#allocation5 + $0x7a0] sm:$0xff]
    %v341 = vld [vmem:[#allocation5 + $0x7a8] sm:$0xff]
    %v342 = vld [vmem:[#allocation5 + $0x7b0] sm:$0xff]
    %v343 = vld [vmem:[#allocation5 + $0x7b8] sm:$0xff]
    %v344 = vld [vmem:[#allocation5 + $0x7c0] sm:$0xff]
    %v345 = vld [vmem:[#allocation5 + $0x7c8] sm:$0xff]
    %v346 = vld [vmem:[#allocation5 + $0x7d0] sm:$0xff]
    %v347 = vld [vmem:[#allocation5 + $0x7d8] sm:$0xff]
    %v348 = vld [vmem:[#allocation5 + $0x7e0] sm:$0xff]
    %v349 = vld [vmem:[#allocation5 + $0x7e8] sm:$0xff]
    %v350 = vld [vmem:[#allocation5 + $0x7f0] sm:$0xff]
    %v351 = vld [vmem:[#allocation5 + $0x7f8] sm:$0xff]
    %v356 = vlaneseq
    %v357 = vshrl.u32 %v356, 7
    %v358 = vsub.s32 0, %v357
    %v359 = vrot.slane %v88, %v358
    %v360 = vlaneseq
    %v361 = vshrl.u32 %v360, 7
    %v362 = vsub.s32 4, %v361
    %v363 = vrot.slane %v88, %v362
    %v364 = vlaneseq
    %v365 = vshrl.u32 %v364, 7
    %v366 = vsub.s32 0, %v365
    %v367 = vrot.slane %v89, %v366
    %v368 = vlaneseq
    %v369 = vshrl.u32 %v368, 7
    %v370 = vsub.s32 4, %v369
    %v371 = vrot.slane %v89, %v370
    %v372 = vlaneseq
    %v373 = vshrl.u32 %v372, 7
    %v374 = vsub.s32 0, %v373
    %v375 = vrot.slane %v90, %v374
    %v376 = vlaneseq
    %v377 = vshrl.u32 %v376, 7
    %v378 = vsub.s32 4, %v377
    %v379 = vrot.slane %v90, %v378
    %v380 = vlaneseq
    %v381 = vshrl.u32 %v380, 7
    %v382 = vsub.s32 0, %v381
    %v383 = vrot.slane %v91, %v382
    %v384 = vlaneseq
    %v385 = vshrl.u32 %v384, 7
    %v386 = vsub.s32 4, %v385
    %v387 = vrot.slane %v91, %v386
    %v396 = vlaneseq
    %v397 = vshrl.u32 %v396, 7
    %v398 = vsub.s32 0, %v397
    %v399 = vrot.slane %v359, %v398
    %v400 = vlaneseq
    %v401 = vshrl.u32 %v400, 7
    %v402 = vsub.s32 0, %v401
    %v403 = vrot.slane %v363, %v402
    %v404 = vlaneseq
    %v405 = vshrl.u32 %v404, 7
    %v406 = vsub.s32 0, %v405
    %v407 = vrot.slane %v367, %v406
    %v408 = vlaneseq
    %v409 = vshrl.u32 %v408, 7
    %v410 = vsub.s32 0, %v409
    %v411 = vrot.slane %v371, %v410
    %v412 = vlaneseq
    %v413 = vshrl.u32 %v412, 7
    %v414 = vsub.s32 0, %v413
    %v415 = vrot.slane %v375, %v414
    %v416 = vlaneseq
    %v417 = vshrl.u32 %v416, 7
    %v418 = vsub.s32 0, %v417
    %v419 = vrot.slane %v379, %v418
    %v420 = vlaneseq
    %v421 = vshrl.u32 %v420, 7
    %v422 = vsub.s32 0, %v421
    %v423 = vrot.slane %v383, %v422
    %v424 = vlaneseq
    %v425 = vshrl.u32 %v424, 7
    %v426 = vsub.s32 0, %v425
    %v427 = vrot.slane %v387, %v426
    %v432 = vunpack.c.l.b16 %v92
    %v433 = vunpack.c.h.b16 %v92
    %v434 = vunpack.c.l.b16 %v93
    %v435 = vunpack.c.h.b16 %v93
    %v436 = vunpack.c.l.b16 %v94
    %v437 = vunpack.c.h.b16 %v94
    %v438 = vunpack.c.l.b16 %v95
    %v439 = vunpack.c.h.b16 %v95
    %v440 = vpack.c.b16 %v436, %v432
    %v441 = vpack.c.b16 %v437, %v433
    %v442 = vpack.c.b16 %v438, %v434
    %v443 = vpack.c.b16 %v439, %v435
    %v704 = vunpack.c.l.b16 %v96
    %v705 = vunpack.c.h.b16 %v96
    %v706 = vunpack.c.l.b16 %v97
    %v707 = vunpack.c.h.b16 %v97
    %v708 = vunpack.c.l.b16 %v98
    %v709 = vunpack.c.h.b16 %v98
    %v710 = vunpack.c.l.b16 %v99
    %v711 = vunpack.c.h.b16 %v99
    %v712 = vunpack.c.l.b16 %v100
    %v713 = vunpack.c.h.b16 %v100
    %v714 = vunpack.c.l.b16 %v101
    %v715 = vunpack.c.h.b16 %v101
    %v716 = vunpack.c.l.b16 %v102
    %v717 = vunpack.c.h.b16 %v102
    %v718 = vunpack.c.l.b16 %v103
    %v719 = vunpack.c.h.b16 %v103
    %v720 = vunpack.c.l.b16 %v104
    %v721 = vunpack.c.h.b16 %v104
    %v722 = vunpack.c.l.b16 %v105
    %v723 = vunpack.c.h.b16 %v105
    %v724 = vunpack.c.l.b16 %v106
    %v725 = vunpack.c.h.b16 %v106
    %v726 = vunpack.c.l.b16 %v107
    %v727 = vunpack.c.h.b16 %v107
    %v728 = vunpack.c.l.b16 %v108
    %v729 = vunpack.c.h.b16 %v108
    %v730 = vunpack.c.l.b16 %v109
    %v731 = vunpack.c.h.b16 %v109
    %v732 = vunpack.c.l.b16 %v110
    %v733 = vunpack.c.h.b16 %v110
    %v734 = vunpack.c.l.b16 %v111
    %v735 = vunpack.c.h.b16 %v111
    %v736 = vunpack.c.l.b16 %v112
    %v737 = vunpack.c.h.b16 %v112
    %v738 = vunpack.c.l.b16 %v113
    %v739 = vunpack.c.h.b16 %v113
    %v740 = vunpack.c.l.b16 %v114
    %v741 = vunpack.c.h.b16 %v114
    %v742 = vunpack.c.l.b16 %v115
    %v743 = vunpack.c.h.b16 %v115
    %v744 = vunpack.c.l.b16 %v116
    %v745 = vunpack.c.h.b16 %v116
    %v746 = vunpack.c.l.b16 %v117
    %v747 = vunpack.c.h.b16 %v117
    %v748 = vunpack.c.l.b16 %v118
    %v749 = vunpack.c.h.b16 %v118
    %v750 = vunpack.c.l.b16 %v119
    %v751 = vunpack.c.h.b16 %v119
    %v752 = vunpack.c.l.b16 %v120
    %v753 = vunpack.c.h.b16 %v120
    %v754 = vunpack.c.l.b16 %v121
    %v755 = vunpack.c.h.b16 %v121
    %v756 = vunpack.c.l.b16 %v122
    %v757 = vunpack.c.h.b16 %v122
    %v758 = vunpack.c.l.b16 %v123
    %v759 = vunpack.c.h.b16 %v123
    %v760 = vunpack.c.l.b16 %v124
    %v761 = vunpack.c.h.b16 %v124
    %v762 = vunpack.c.l.b16 %v125
    %v763 = vunpack.c.h.b16 %v125
    %v764 = vunpack.c.l.b16 %v126
    %v765 = vunpack.c.h.b16 %v126
    %v766 = vunpack.c.l.b16 %v127
    %v767 = vunpack.c.h.b16 %v127
    %v768 = vunpack.c.l.b16 %v128
    %v769 = vunpack.c.h.b16 %v128
    %v770 = vunpack.c.l.b16 %v129
    %v771 = vunpack.c.h.b16 %v129
    %v772 = vunpack.c.l.b16 %v130
    %v773 = vunpack.c.h.b16 %v130
    %v774 = vunpack.c.l.b16 %v131
    %v775 = vunpack.c.h.b16 %v131
    %v776 = vunpack.c.l.b16 %v132
    %v777 = vunpack.c.h.b16 %v132
    %v778 = vunpack.c.l.b16 %v133
    %v779 = vunpack.c.h.b16 %v133
    %v780 = vunpack.c.l.b16 %v134
    %v781 = vunpack.c.h.b16 %v134
    %v782 = vunpack.c.l.b16 %v135
    %v783 = vunpack.c.h.b16 %v135
    %v784 = vunpack.c.l.b16 %v136
    %v785 = vunpack.c.h.b16 %v136
    %v786 = vunpack.c.l.b16 %v137
    %v787 = vunpack.c.h.b16 %v137
    %v788 = vunpack.c.l.b16 %v138
    %v789 = vunpack.c.h.b16 %v138
    %v790 = vunpack.c.l.b16 %v139
    %v791 = vunpack.c.h.b16 %v139
    %v792 = vunpack.c.l.b16 %v140
    %v793 = vunpack.c.h.b16 %v140
    %v794 = vunpack.c.l.b16 %v141
    %v795 = vunpack.c.h.b16 %v141
    %v796 = vunpack.c.l.b16 %v142
    %v797 = vunpack.c.h.b16 %v142
    %v798 = vunpack.c.l.b16 %v143
    %v799 = vunpack.c.h.b16 %v143
    %v800 = vunpack.c.l.b16 %v144
    %v801 = vunpack.c.h.b16 %v144
    %v802 = vunpack.c.l.b16 %v145
    %v803 = vunpack.c.h.b16 %v145
    %v804 = vunpack.c.l.b16 %v146
    %v805 = vunpack.c.h.b16 %v146
    %v806 = vunpack.c.l.b16 %v147
    %v807 = vunpack.c.h.b16 %v147
    %v808 = vunpack.c.l.b16 %v148
    %v809 = vunpack.c.h.b16 %v148
    %v810 = vunpack.c.l.b16 %v149
    %v811 = vunpack.c.h.b16 %v149
    %v812 = vunpack.c.l.b16 %v150
    %v813 = vunpack.c.h.b16 %v150
    %v814 = vunpack.c.l.b16 %v151
    %v815 = vunpack.c.h.b16 %v151
    %v816 = vunpack.c.l.b16 %v152
    %v817 = vunpack.c.h.b16 %v152
    %v818 = vunpack.c.l.b16 %v153
    %v819 = vunpack.c.h.b16 %v153
    %v820 = vunpack.c.l.b16 %v154
    %v821 = vunpack.c.h.b16 %v154
    %v822 = vunpack.c.l.b16 %v155
    %v823 = vunpack.c.h.b16 %v155
    %v824 = vunpack.c.l.b16 %v156
    %v825 = vunpack.c.h.b16 %v156
    %v826 = vunpack.c.l.b16 %v157
    %v827 = vunpack.c.h.b16 %v157
    %v828 = vunpack.c.l.b16 %v158
    %v829 = vunpack.c.h.b16 %v158
    %v830 = vunpack.c.l.b16 %v159
    %v831 = vunpack.c.h.b16 %v159
    %v832 = vunpack.c.l.b16 %v160
    %v833 = vunpack.c.h.b16 %v160
    %v834 = vunpack.c.l.b16 %v161
    %v835 = vunpack.c.h.b16 %v161
    %v836 = vunpack.c.l.b16 %v162
    %v837 = vunpack.c.h.b16 %v162
    %v838 = vunpack.c.l.b16 %v163
    %v839 = vunpack.c.h.b16 %v163
    %v840 = vunpack.c.l.b16 %v164
    %v841 = vunpack.c.h.b16 %v164
    %v842 = vunpack.c.l.b16 %v165
    %v843 = vunpack.c.h.b16 %v165
    %v844 = vunpack.c.l.b16 %v166
    %v845 = vunpack.c.h.b16 %v166
    %v846 = vunpack.c.l.b16 %v167
    %v847 = vunpack.c.h.b16 %v167
    %v848 = vunpack.c.l.b16 %v168
    %v849 = vunpack.c.h.b16 %v168
    %v850 = vunpack.c.l.b16 %v169
    %v851 = vunpack.c.h.b16 %v169
    %v852 = vunpack.c.l.b16 %v170
    %v853 = vunpack.c.h.b16 %v170
    %v854 = vunpack.c.l.b16 %v171
    %v855 = vunpack.c.h.b16 %v171
    %v856 = vunpack.c.l.b16 %v172
    %v857 = vunpack.c.h.b16 %v172
    %v858 = vunpack.c.l.b16 %v173
    %v859 = vunpack.c.h.b16 %v173
    %v860 = vunpack.c.l.b16 %v174
    %v861 = vunpack.c.h.b16 %v174
    %v862 = vunpack.c.l.b16 %v175
    %v863 = vunpack.c.h.b16 %v175
    %v864 = vunpack.c.l.b16 %v176
    %v865 = vunpack.c.h.b16 %v176
    %v866 = vunpack.c.l.b16 %v177
    %v867 = vunpack.c.h.b16 %v177
    %v868 = vunpack.c.l.b16 %v178
    %v869 = vunpack.c.h.b16 %v178
    %v870 = vunpack.c.l.b16 %v179
    %v871 = vunpack.c.h.b16 %v179
    %v872 = vunpack.c.l.b16 %v180
    %v873 = vunpack.c.h.b16 %v180
    %v874 = vunpack.c.l.b16 %v181
    %v875 = vunpack.c.h.b16 %v181
    %v876 = vunpack.c.l.b16 %v182
    %v877 = vunpack.c.h.b16 %v182
    %v878 = vunpack.c.l.b16 %v183
    %v879 = vunpack.c.h.b16 %v183
    %v880 = vunpack.c.l.b16 %v184
    %v881 = vunpack.c.h.b16 %v184
    %v882 = vunpack.c.l.b16 %v185
    %v883 = vunpack.c.h.b16 %v185
    %v884 = vunpack.c.l.b16 %v186
    %v885 = vunpack.c.h.b16 %v186
    %v886 = vunpack.c.l.b16 %v187
    %v887 = vunpack.c.h.b16 %v187
    %v888 = vunpack.c.l.b16 %v188
    %v889 = vunpack.c.h.b16 %v188
    %v890 = vunpack.c.l.b16 %v189
    %v891 = vunpack.c.h.b16 %v189
    %v892 = vunpack.c.l.b16 %v190
    %v893 = vunpack.c.h.b16 %v190
    %v894 = vunpack.c.l.b16 %v191
    %v895 = vunpack.c.h.b16 %v191
    %v896 = vunpack.c.l.b16 %v192
    %v897 = vunpack.c.h.b16 %v192
    %v898 = vunpack.c.l.b16 %v193
    %v899 = vunpack.c.h.b16 %v193
    %v900 = vunpack.c.l.b16 %v194
    %v901 = vunpack.c.h.b16 %v194
    %v902 = vunpack.c.l.b16 %v195
    %v903 = vunpack.c.h.b16 %v195
    %v904 = vunpack.c.l.b16 %v196
    %v905 = vunpack.c.h.b16 %v196
    %v906 = vunpack.c.l.b16 %v197
    %v907 = vunpack.c.h.b16 %v197
    %v908 = vunpack.c.l.b16 %v198
    %v909 = vunpack.c.h.b16 %v198
    %v910 = vunpack.c.l.b16 %v199
    %v911 = vunpack.c.h.b16 %v199
    %v912 = vunpack.c.l.b16 %v200
    %v913 = vunpack.c.h.b16 %v200
    %v914 = vunpack.c.l.b16 %v201
    %v915 = vunpack.c.h.b16 %v201
    %v916 = vunpack.c.l.b16 %v202
    %v917 = vunpack.c.h.b16 %v202
    %v918 = vunpack.c.l.b16 %v203
    %v919 = vunpack.c.h.b16 %v203
    %v920 = vunpack.c.l.b16 %v204
    %v921 = vunpack.c.h.b16 %v204
    %v922 = vunpack.c.l.b16 %v205
    %v923 = vunpack.c.h.b16 %v205
    %v924 = vunpack.c.l.b16 %v206
    %v925 = vunpack.c.h.b16 %v206
    %v926 = vunpack.c.l.b16 %v207
    %v927 = vunpack.c.h.b16 %v207
    %v928 = vunpack.c.l.b16 %v208
    %v929 = vunpack.c.h.b16 %v208
    %v930 = vunpack.c.l.b16 %v209
    %v931 = vunpack.c.h.b16 %v209
    %v932 = vunpack.c.l.b16 %v210
    %v933 = vunpack.c.h.b16 %v210
    %v934 = vunpack.c.l.b16 %v211
    %v935 = vunpack.c.h.b16 %v211
    %v936 = vunpack.c.l.b16 %v212
    %v937 = vunpack.c.h.b16 %v212
    %v938 = vunpack.c.l.b16 %v213
    %v939 = vunpack.c.h.b16 %v213
    %v940 = vunpack.c.l.b16 %v214
    %v941 = vunpack.c.h.b16 %v214
    %v942 = vunpack.c.l.b16 %v215
    %v943 = vunpack.c.h.b16 %v215
    %v944 = vunpack.c.l.b16 %v216
    %v945 = vunpack.c.h.b16 %v216
    %v946 = vunpack.c.l.b16 %v217
    %v947 = vunpack.c.h.b16 %v217
    %v948 = vunpack.c.l.b16 %v218
    %v949 = vunpack.c.h.b16 %v218
    %v950 = vunpack.c.l.b16 %v219
    %v951 = vunpack.c.h.b16 %v219
    %v952 = vunpack.c.l.b16 %v220
    %v953 = vunpack.c.h.b16 %v220
    %v954 = vunpack.c.l.b16 %v221
    %v955 = vunpack.c.h.b16 %v221
    %v956 = vunpack.c.l.b16 %v222
    %v957 = vunpack.c.h.b16 %v222
    %v958 = vunpack.c.l.b16 %v223
    %v959 = vunpack.c.h.b16 %v223
    %v960 = vunpack.c.l.b16 %v224
    %v961 = vunpack.c.h.b16 %v224
    %v962 = vunpack.c.l.b16 %v225
    %v963 = vunpack.c.h.b16 %v225
    %v964 = vunpack.c.l.b16 %v226
    %v965 = vunpack.c.h.b16 %v226
    %v966 = vunpack.c.l.b16 %v227
    %v967 = vunpack.c.h.b16 %v227
    %v968 = vunpack.c.l.b16 %v228
    %v969 = vunpack.c.h.b16 %v228
    %v970 = vunpack.c.l.b16 %v229
    %v971 = vunpack.c.h.b16 %v229
    %v972 = vunpack.c.l.b16 %v230
    %v973 = vunpack.c.h.b16 %v230
    %v974 = vunpack.c.l.b16 %v231
    %v975 = vunpack.c.h.b16 %v231
    %v976 = vunpack.c.l.b16 %v232
    %v977 = vunpack.c.h.b16 %v232
    %v978 = vunpack.c.l.b16 %v233
    %v979 = vunpack.c.h.b16 %v233
    %v980 = vunpack.c.l.b16 %v234
    %v981 = vunpack.c.h.b16 %v234
    %v982 = vunpack.c.l.b16 %v235
    %v983 = vunpack.c.h.b16 %v235
    %v984 = vunpack.c.l.b16 %v236
    %v985 = vunpack.c.h.b16 %v236
    %v986 = vunpack.c.l.b16 %v237
    %v987 = vunpack.c.h.b16 %v237
    %v988 = vunpack.c.l.b16 %v238
    %v989 = vunpack.c.h.b16 %v238
    %v990 = vunpack.c.l.b16 %v239
    %v991 = vunpack.c.h.b16 %v239
    %v992 = vunpack.c.l.b16 %v240
    %v993 = vunpack.c.h.b16 %v240
    %v994 = vunpack.c.l.b16 %v241
    %v995 = vunpack.c.h.b16 %v241
    %v996 = vunpack.c.l.b16 %v242
    %v997 = vunpack.c.h.b16 %v242
    %v998 = vunpack.c.l.b16 %v243
    %v999 = vunpack.c.h.b16 %v243
    %v1000 = vunpack.c.l.b16 %v244
    %v1001 = vunpack.c.h.b16 %v244
    %v1002 = vunpack.c.l.b16 %v245
    %v1003 = vunpack.c.h.b16 %v245
    %v1004 = vunpack.c.l.b16 %v246
    %v1005 = vunpack.c.h.b16 %v246
    %v1006 = vunpack.c.l.b16 %v247
    %v1007 = vunpack.c.h.b16 %v247
    %v1008 = vunpack.c.l.b16 %v248
    %v1009 = vunpack.c.h.b16 %v248
    %v1010 = vunpack.c.l.b16 %v249
    %v1011 = vunpack.c.h.b16 %v249
    %v1012 = vunpack.c.l.b16 %v250
    %v1013 = vunpack.c.h.b16 %v250
    %v1014 = vunpack.c.l.b16 %v251
    %v1015 = vunpack.c.h.b16 %v251
    %v1016 = vunpack.c.l.b16 %v252
    %v1017 = vunpack.c.h.b16 %v252
    %v1018 = vunpack.c.l.b16 %v253
    %v1019 = vunpack.c.h.b16 %v253
    %v1020 = vunpack.c.l.b16 %v254
    %v1021 = vunpack.c.h.b16 %v254
    %v1022 = vunpack.c.l.b16 %v255
    %v1023 = vunpack.c.h.b16 %v255
    %v1024 = vunpack.c.l.b16 %v256
    %v1025 = vunpack.c.h.b16 %v256
    %v1026 = vunpack.c.l.b16 %v257
    %v1027 = vunpack.c.h.b16 %v257
    %v1028 = vunpack.c.l.b16 %v258
    %v1029 = vunpack.c.h.b16 %v258
    %v1030 = vunpack.c.l.b16 %v259
    %v1031 = vunpack.c.h.b16 %v259
    %v1032 = vunpack.c.l.b16 %v260
    %v1033 = vunpack.c.h.b16 %v260
    %v1034 = vunpack.c.l.b16 %v261
    %v1035 = vunpack.c.h.b16 %v261
    %v1036 = vunpack.c.l.b16 %v262
    %v1037 = vunpack.c.h.b16 %v262
    %v1038 = vunpack.c.l.b16 %v263
    %v1039 = vunpack.c.h.b16 %v263
    %v1040 = vunpack.c.l.b16 %v264
    %v1041 = vunpack.c.h.b16 %v264
    %v1042 = vunpack.c.l.b16 %v265
    %v1043 = vunpack.c.h.b16 %v265
    %v1044 = vunpack.c.l.b16 %v266
    %v1045 = vunpack.c.h.b16 %v266
    %v1046 = vunpack.c.l.b16 %v267
    %v1047 = vunpack.c.h.b16 %v267
    %v1048 = vunpack.c.l.b16 %v268
    %v1049 = vunpack.c.h.b16 %v268
    %v1050 = vunpack.c.l.b16 %v269
    %v1051 = vunpack.c.h.b16 %v269
    %v1052 = vunpack.c.l.b16 %v270
    %v1053 = vunpack.c.h.b16 %v270
    %v1054 = vunpack.c.l.b16 %v271
    %v1055 = vunpack.c.h.b16 %v271
    %v1056 = vunpack.c.l.b16 %v272
    %v1057 = vunpack.c.h.b16 %v272
    %v1058 = vunpack.c.l.b16 %v273
    %v1059 = vunpack.c.h.b16 %v273
    %v1060 = vunpack.c.l.b16 %v274
    %v1061 = vunpack.c.h.b16 %v274
    %v1062 = vunpack.c.l.b16 %v275
    %v1063 = vunpack.c.h.b16 %v275
    %v1064 = vunpack.c.l.b16 %v276
    %v1065 = vunpack.c.h.b16 %v276
    %v1066 = vunpack.c.l.b16 %v277
    %v1067 = vunpack.c.h.b16 %v277
    %v1068 = vunpack.c.l.b16 %v278
    %v1069 = vunpack.c.h.b16 %v278
    %v1070 = vunpack.c.l.b16 %v279
    %v1071 = vunpack.c.h.b16 %v279
    %v1072 = vunpack.c.l.b16 %v280
    %v1073 = vunpack.c.h.b16 %v280
    %v1074 = vunpack.c.l.b16 %v281
    %v1075 = vunpack.c.h.b16 %v281
    %v1076 = vunpack.c.l.b16 %v282
    %v1077 = vunpack.c.h.b16 %v282
    %v1078 = vunpack.c.l.b16 %v283
    %v1079 = vunpack.c.h.b16 %v283
    %v1080 = vunpack.c.l.b16 %v284
    %v1081 = vunpack.c.h.b16 %v284
    %v1082 = vunpack.c.l.b16 %v285
    %v1083 = vunpack.c.h.b16 %v285
    %v1084 = vunpack.c.l.b16 %v286
    %v1085 = vunpack.c.h.b16 %v286
    %v1086 = vunpack.c.l.b16 %v287
    %v1087 = vunpack.c.h.b16 %v287
    %v1088 = vunpack.c.l.b16 %v288
    %v1089 = vunpack.c.h.b16 %v288
    %v1090 = vunpack.c.l.b16 %v289
    %v1091 = vunpack.c.h.b16 %v289
    %v1092 = vunpack.c.l.b16 %v290
    %v1093 = vunpack.c.h.b16 %v290
    %v1094 = vunpack.c.l.b16 %v291
    %v1095 = vunpack.c.h.b16 %v291
    %v1096 = vunpack.c.l.b16 %v292
    %v1097 = vunpack.c.h.b16 %v292
    %v1098 = vunpack.c.l.b16 %v293
    %v1099 = vunpack.c.h.b16 %v293
    %v1100 = vunpack.c.l.b16 %v294
    %v1101 = vunpack.c.h.b16 %v294
    %v1102 = vunpack.c.l.b16 %v295
    %v1103 = vunpack.c.h.b16 %v295
    %v1104 = vunpack.c.l.b16 %v296
    %v1105 = vunpack.c.h.b16 %v296
    %v1106 = vunpack.c.l.b16 %v297
    %v1107 = vunpack.c.h.b16 %v297
    %v1108 = vunpack.c.l.b16 %v298
    %v1109 = vunpack.c.h.b16 %v298
    %v1110 = vunpack.c.l.b16 %v299
    %v1111 = vunpack.c.h.b16 %v299
    %v1112 = vunpack.c.l.b16 %v300
    %v1113 = vunpack.c.h.b16 %v300
    %v1114 = vunpack.c.l.b16 %v301
    %v1115 = vunpack.c.h.b16 %v301
    %v1116 = vunpack.c.l.b16 %v302
    %v1117 = vunpack.c.h.b16 %v302
    %v1118 = vunpack.c.l.b16 %v303
    %v1119 = vunpack.c.h.b16 %v303
    %v1120 = vunpack.c.l.b16 %v304
    %v1121 = vunpack.c.h.b16 %v304
    %v1122 = vunpack.c.l.b16 %v305
    %v1123 = vunpack.c.h.b16 %v305
    %v1124 = vunpack.c.l.b16 %v306
    %v1125 = vunpack.c.h.b16 %v306
    %v1126 = vunpack.c.l.b16 %v307
    %v1127 = vunpack.c.h.b16 %v307
    %v1128 = vunpack.c.l.b16 %v308
    %v1129 = vunpack.c.h.b16 %v308
    %v1130 = vunpack.c.l.b16 %v309
    %v1131 = vunpack.c.h.b16 %v309
    %v1132 = vunpack.c.l.b16 %v310
    %v1133 = vunpack.c.h.b16 %v310
    %v1134 = vunpack.c.l.b16 %v311
    %v1135 = vunpack.c.h.b16 %v311
    %v1136 = vunpack.c.l.b16 %v312
    %v1137 = vunpack.c.h.b16 %v312
    %v1138 = vunpack.c.l.b16 %v313
    %v1139 = vunpack.c.h.b16 %v313
    %v1140 = vunpack.c.l.b16 %v314
    %v1141 = vunpack.c.h.b16 %v314
    %v1142 = vunpack.c.l.b16 %v315
    %v1143 = vunpack.c.h.b16 %v315
    %v1144 = vunpack.c.l.b16 %v316
    %v1145 = vunpack.c.h.b16 %v316
    %v1146 = vunpack.c.l.b16 %v317
    %v1147 = vunpack.c.h.b16 %v317
    %v1148 = vunpack.c.l.b16 %v318
    %v1149 = vunpack.c.h.b16 %v318
    %v1150 = vunpack.c.l.b16 %v319
    %v1151 = vunpack.c.h.b16 %v319
    %v1152 = vunpack.c.l.b16 %v320
    %v1153 = vunpack.c.h.b16 %v320
    %v1154 = vunpack.c.l.b16 %v321
    %v1155 = vunpack.c.h.b16 %v321
    %v1156 = vunpack.c.l.b16 %v322
    %v1157 = vunpack.c.h.b16 %v322
    %v1158 = vunpack.c.l.b16 %v323
    %v1159 = vunpack.c.h.b16 %v323
    %v1160 = vunpack.c.l.b16 %v324
    %v1161 = vunpack.c.h.b16 %v324
    %v1162 = vunpack.c.l.b16 %v325
    %v1163 = vunpack.c.h.b16 %v325
    %v1164 = vunpack.c.l.b16 %v326
    %v1165 = vunpack.c.h.b16 %v326
    %v1166 = vunpack.c.l.b16 %v327
    %v1167 = vunpack.c.h.b16 %v327
    %v1168 = vunpack.c.l.b16 %v328
    %v1169 = vunpack.c.h.b16 %v328
    %v1170 = vunpack.c.l.b16 %v329
    %v1171 = vunpack.c.h.b16 %v329
    %v1172 = vunpack.c.l.b16 %v330
    %v1173 = vunpack.c.h.b16 %v330
    %v1174 = vunpack.c.l.b16 %v331
    %v1175 = vunpack.c.h.b16 %v331
    %v1176 = vunpack.c.l.b16 %v332
    %v1177 = vunpack.c.h.b16 %v332
    %v1178 = vunpack.c.l.b16 %v333
    %v1179 = vunpack.c.h.b16 %v333
    %v1180 = vunpack.c.l.b16 %v334
    %v1181 = vunpack.c.h.b16 %v334
    %v1182 = vunpack.c.l.b16 %v335
    %v1183 = vunpack.c.h.b16 %v335
    %v1184 = vunpack.c.l.b16 %v336
    %v1185 = vunpack.c.h.b16 %v336
    %v1186 = vunpack.c.l.b16 %v337
    %v1187 = vunpack.c.h.b16 %v337
    %v1188 = vunpack.c.l.b16 %v338
    %v1189 = vunpack.c.h.b16 %v338
    %v1190 = vunpack.c.l.b16 %v339
    %v1191 = vunpack.c.h.b16 %v339
    %v1192 = vunpack.c.l.b16 %v340
    %v1193 = vunpack.c.h.b16 %v340
    %v1194 = vunpack.c.l.b16 %v341
    %v1195 = vunpack.c.h.b16 %v341
    %v1196 = vunpack.c.l.b16 %v342
    %v1197 = vunpack.c.h.b16 %v342
    %v1198 = vunpack.c.l.b16 %v343
    %v1199 = vunpack.c.h.b16 %v343
    %v1200 = vunpack.c.l.b16 %v344
    %v1201 = vunpack.c.h.b16 %v344
    %v1202 = vunpack.c.l.b16 %v345
    %v1203 = vunpack.c.h.b16 %v345
    %v1204 = vunpack.c.l.b16 %v346
    %v1205 = vunpack.c.h.b16 %v346
    %v1206 = vunpack.c.l.b16 %v347
    %v1207 = vunpack.c.h.b16 %v347
    %v1208 = vunpack.c.l.b16 %v348
    %v1209 = vunpack.c.h.b16 %v348
    %v1210 = vunpack.c.l.b16 %v349
    %v1211 = vunpack.c.h.b16 %v349
    %v1212 = vunpack.c.l.b16 %v350
    %v1213 = vunpack.c.h.b16 %v350
    %v1214 = vunpack.c.l.b16 %v351
    %v1215 = vunpack.c.h.b16 %v351
    %v1216 = vpack.c.b16 %v712, %v704
    %v1217 = vpack.c.b16 %v713, %v705
    %v1218 = vpack.c.b16 %v714, %v706
    %v1219 = vpack.c.b16 %v715, %v707
    %v1220 = vpack.c.b16 %v716, %v708
    %v1221 = vpack.c.b16 %v717, %v709
    %v1222 = vpack.c.b16 %v718, %v710
    %v1223 = vpack.c.b16 %v719, %v711
    %v1224 = vpack.c.b16 %v728, %v720
    %v1225 = vpack.c.b16 %v729, %v721
    %v1226 = vpack.c.b16 %v730, %v722
    %v1227 = vpack.c.b16 %v731, %v723
    %v1228 = vpack.c.b16 %v732, %v724
    %v1229 = vpack.c.b16 %v733, %v725
    %v1230 = vpack.c.b16 %v734, %v726
    %v1231 = vpack.c.b16 %v735, %v727
    %v1232 = vpack.c.b16 %v744, %v736
    %v1233 = vpack.c.b16 %v745, %v737
    %v1234 = vpack.c.b16 %v746, %v738
    %v1235 = vpack.c.b16 %v747, %v739
    %v1236 = vpack.c.b16 %v748, %v740
    %v1237 = vpack.c.b16 %v749, %v741
    %v1238 = vpack.c.b16 %v750, %v742
    %v1239 = vpack.c.b16 %v751, %v743
    %v1240 = vpack.c.b16 %v760, %v752
    %v1241 = vpack.c.b16 %v761, %v753
    %v1242 = vpack.c.b16 %v762, %v754
    %v1243 = vpack.c.b16 %v763, %v755
    %v1244 = vpack.c.b16 %v764, %v756
    %v1245 = vpack.c.b16 %v765, %v757
    %v1246 = vpack.c.b16 %v766, %v758
    %v1247 = vpack.c.b16 %v767, %v759
    %v1248 = vpack.c.b16 %v776, %v768
    %v1249 = vpack.c.b16 %v777, %v769
    %v1250 = vpack.c.b16 %v778, %v770
    %v1251 = vpack.c.b16 %v779, %v771
    %v1252 = vpack.c.b16 %v780, %v772
    %v1253 = vpack.c.b16 %v781, %v773
    %v1254 = vpack.c.b16 %v782, %v774
    %v1255 = vpack.c.b16 %v783, %v775
    %v1256 = vpack.c.b16 %v792, %v784
    %v1257 = vpack.c.b16 %v793, %v785
    %v1258 = vpack.c.b16 %v794, %v786
    %v1259 = vpack.c.b16 %v795, %v787
    %v1260 = vpack.c.b16 %v796, %v788
    %v1261 = vpack.c.b16 %v797, %v789
    %v1262 = vpack.c.b16 %v798, %v790
    %v1263 = vpack.c.b16 %v799, %v791
    %v1264 = vpack.c.b16 %v808, %v800
    %v1265 = vpack.c.b16 %v809, %v801
    %v1266 = vpack.c.b16 %v810, %v802
    %v1267 = vpack.c.b16 %v811, %v803
    %v1268 = vpack.c.b16 %v812, %v804
    %v1269 = vpack.c.b16 %v813, %v805
    %v1270 = vpack.c.b16 %v814, %v806
    %v1271 = vpack.c.b16 %v815, %v807
    %v1272 = vpack.c.b16 %v824, %v816
    %v1273 = vpack.c.b16 %v825, %v817
    %v1274 = vpack.c.b16 %v826, %v818
    %v1275 = vpack.c.b16 %v827, %v819
    %v1276 = vpack.c.b16 %v828, %v820
    %v1277 = vpack.c.b16 %v829, %v821
    %v1278 = vpack.c.b16 %v830, %v822
    %v1279 = vpack.c.b16 %v831, %v823
    %v1280 = vpack.c.b16 %v840, %v832
    %v1281 = vpack.c.b16 %v841, %v833
    %v1282 = vpack.c.b16 %v842, %v834
    %v1283 = vpack.c.b16 %v843, %v835
    %v1284 = vpack.c.b16 %v844, %v836
    %v1285 = vpack.c.b16 %v845, %v837
    %v1286 = vpack.c.b16 %v846, %v838
    %v1287 = vpack.c.b16 %v847, %v839
    %v1288 = vpack.c.b16 %v856, %v848
    %v1289 = vpack.c.b16 %v857, %v849
    %v1290 = vpack.c.b16 %v858, %v850
    %v1291 = vpack.c.b16 %v859, %v851
    %v1292 = vpack.c.b16 %v860, %v852
    %v1293 = vpack.c.b16 %v861, %v853
    %v1294 = vpack.c.b16 %v862, %v854
    %v1295 = vpack.c.b16 %v863, %v855
    %v1296 = vpack.c.b16 %v872, %v864
    %v1297 = vpack.c.b16 %v873, %v865
    %v1298 = vpack.c.b16 %v874, %v866
    %v1299 = vpack.c.b16 %v875, %v867
    %v1300 = vpack.c.b16 %v876, %v868
    %v1301 = vpack.c.b16 %v877, %v869
    %v1302 = vpack.c.b16 %v878, %v870
    %v1303 = vpack.c.b16 %v879, %v871
    %v1304 = vpack.c.b16 %v888, %v880
    %v1305 = vpack.c.b16 %v889, %v881
    %v1306 = vpack.c.b16 %v890, %v882
    %v1307 = vpack.c.b16 %v891, %v883
    %v1308 = vpack.c.b16 %v892, %v884
    %v1309 = vpack.c.b16 %v893, %v885
    %v1310 = vpack.c.b16 %v894, %v886
    %v1311 = vpack.c.b16 %v895, %v887
    %v1312 = vpack.c.b16 %v904, %v896
    %v1313 = vpack.c.b16 %v905, %v897
    %v1314 = vpack.c.b16 %v906, %v898
    %v1315 = vpack.c.b16 %v907, %v899
    %v1316 = vpack.c.b16 %v908, %v900
    %v1317 = vpack.c.b16 %v909, %v901
    %v1318 = vpack.c.b16 %v910, %v902
    %v1319 = vpack.c.b16 %v911, %v903
    %v1320 = vpack.c.b16 %v920, %v912
    %v1321 = vpack.c.b16 %v921, %v913
    %v1322 = vpack.c.b16 %v922, %v914
    %v1323 = vpack.c.b16 %v923, %v915
    %v1324 = vpack.c.b16 %v924, %v916
    %v1325 = vpack.c.b16 %v925, %v917
    %v1326 = vpack.c.b16 %v926, %v918
    %v1327 = vpack.c.b16 %v927, %v919
    %v1328 = vpack.c.b16 %v936, %v928
    %v1329 = vpack.c.b16 %v937, %v929
    %v1330 = vpack.c.b16 %v938, %v930
    %v1331 = vpack.c.b16 %v939, %v931
    %v1332 = vpack.c.b16 %v940, %v932
    %v1333 = vpack.c.b16 %v941, %v933
    %v1334 = vpack.c.b16 %v942, %v934
    %v1335 = vpack.c.b16 %v943, %v935
    %v1336 = vpack.c.b16 %v952, %v944
    %v1337 = vpack.c.b16 %v953, %v945
    %v1338 = vpack.c.b16 %v954, %v946
    %v1339 = vpack.c.b16 %v955, %v947
    %v1340 = vpack.c.b16 %v956, %v948
    %v1341 = vpack.c.b16 %v957, %v949
    %v1342 = vpack.c.b16 %v958, %v950
    %v1343 = vpack.c.b16 %v959, %v951
    %v1344 = vpack.c.b16 %v968, %v960
    %v1345 = vpack.c.b16 %v969, %v961
    %v1346 = vpack.c.b16 %v970, %v962
    %v1347 = vpack.c.b16 %v971, %v963
    %v1348 = vpack.c.b16 %v972, %v964
    %v1349 = vpack.c.b16 %v973, %v965
    %v1350 = vpack.c.b16 %v974, %v966
    %v1351 = vpack.c.b16 %v975, %v967
    %v1352 = vpack.c.b16 %v984, %v976
    %v1353 = vpack.c.b16 %v985, %v977
    %v1354 = vpack.c.b16 %v986, %v978
    %v1355 = vpack.c.b16 %v987, %v979
    %v1356 = vpack.c.b16 %v988, %v980
    %v1357 = vpack.c.b16 %v989, %v981
    %v1358 = vpack.c.b16 %v990, %v982
    %v1359 = vpack.c.b16 %v991, %v983
    %v1360 = vpack.c.b16 %v1000, %v992
    %v1361 = vpack.c.b16 %v1001, %v993
    %v1362 = vpack.c.b16 %v1002, %v994
    %v1363 = vpack.c.b16 %v1003, %v995
    %v1364 = vpack.c.b16 %v1004, %v996
    %v1365 = vpack.c.b16 %v1005, %v997
    %v1366 = vpack.c.b16 %v1006, %v998
    %v1367 = vpack.c.b16 %v1007, %v999
    %v1368 = vpack.c.b16 %v1016, %v1008
    %v1369 = vpack.c.b16 %v1017, %v1009
    %v1370 = vpack.c.b16 %v1018, %v1010
    %v1371 = vpack.c.b16 %v1019, %v1011
    %v1372 = vpack.c.b16 %v1020, %v1012
    %v1373 = vpack.c.b16 %v1021, %v1013
    %v1374 = vpack.c.b16 %v1022, %v1014
    %v1375 = vpack.c.b16 %v1023, %v1015
    %v1376 = vpack.c.b16 %v1032, %v1024
    %v1377 = vpack.c.b16 %v1033, %v1025
    %v1378 = vpack.c.b16 %v1034, %v1026
    %v1379 = vpack.c.b16 %v1035, %v1027
    %v1380 = vpack.c.b16 %v1036, %v1028
    %v1381 = vpack.c.b16 %v1037, %v1029
    %v1382 = vpack.c.b16 %v1038, %v1030
    %v1383 = vpack.c.b16 %v1039, %v1031
    %v1384 = vpack.c.b16 %v1048, %v1040
    %v1385 = vpack.c.b16 %v1049, %v1041
    %v1386 = vpack.c.b16 %v1050, %v1042
    %v1387 = vpack.c.b16 %v1051, %v1043
    %v1388 = vpack.c.b16 %v1052, %v1044
    %v1389 = vpack.c.b16 %v1053, %v1045
    %v1390 = vpack.c.b16 %v1054, %v1046
    %v1391 = vpack.c.b16 %v1055, %v1047
    %v1392 = vpack.c.b16 %v1064, %v1056
    %v1393 = vpack.c.b16 %v1065, %v1057
    %v1394 = vpack.c.b16 %v1066, %v1058
    %v1395 = vpack.c.b16 %v1067, %v1059
    %v1396 = vpack.c.b16 %v1068, %v1060
    %v1397 = vpack.c.b16 %v1069, %v1061
    %v1398 = vpack.c.b16 %v1070, %v1062
    %v1399 = vpack.c.b16 %v1071, %v1063
    %v1400 = vpack.c.b16 %v1080, %v1072
    %v1401 = vpack.c.b16 %v1081, %v1073
    %v1402 = vpack.c.b16 %v1082, %v1074
    %v1403 = vpack.c.b16 %v1083, %v1075
    %v1404 = vpack.c.b16 %v1084, %v1076
    %v1405 = vpack.c.b16 %v1085, %v1077
    %v1406 = vpack.c.b16 %v1086, %v1078
    %v1407 = vpack.c.b16 %v1087, %v1079
    %v1408 = vpack.c.b16 %v1096, %v1088
    %v1409 = vpack.c.b16 %v1097, %v1089
    %v1410 = vpack.c.b16 %v1098, %v1090
    %v1411 = vpack.c.b16 %v1099, %v1091
    %v1412 = vpack.c.b16 %v1100, %v1092
    %v1413 = vpack.c.b16 %v1101, %v1093
    %v1414 = vpack.c.b16 %v1102, %v1094
    %v1415 = vpack.c.b16 %v1103, %v1095
    %v1416 = vpack.c.b16 %v1112, %v1104
    %v1417 = vpack.c.b16 %v1113, %v1105
    %v1418 = vpack.c.b16 %v1114, %v1106
    %v1419 = vpack.c.b16 %v1115, %v1107
    %v1420 = vpack.c.b16 %v1116, %v1108
    %v1421 = vpack.c.b16 %v1117, %v1109
    %v1422 = vpack.c.b16 %v1118, %v1110
    %v1423 = vpack.c.b16 %v1119, %v1111
    %v1424 = vpack.c.b16 %v1128, %v1120
    %v1425 = vpack.c.b16 %v1129, %v1121
    %v1426 = vpack.c.b16 %v1130, %v1122
    %v1427 = vpack.c.b16 %v1131, %v1123
    %v1428 = vpack.c.b16 %v1132, %v1124
    %v1429 = vpack.c.b16 %v1133, %v1125
    %v1430 = vpack.c.b16 %v1134, %v1126
    %v1431 = vpack.c.b16 %v1135, %v1127
    %v1432 = vpack.c.b16 %v1144, %v1136
    %v1433 = vpack.c.b16 %v1145, %v1137
    %v1434 = vpack.c.b16 %v1146, %v1138
    %v1435 = vpack.c.b16 %v1147, %v1139
    %v1436 = vpack.c.b16 %v1148, %v1140
    %v1437 = vpack.c.b16 %v1149, %v1141
    %v1438 = vpack.c.b16 %v1150, %v1142
    %v1439 = vpack.c.b16 %v1151, %v1143
    %v1440 = vpack.c.b16 %v1160, %v1152
    %v1441 = vpack.c.b16 %v1161, %v1153
    %v1442 = vpack.c.b16 %v1162, %v1154
    %v1443 = vpack.c.b16 %v1163, %v1155
    %v1444 = vpack.c.b16 %v1164, %v1156
    %v1445 = vpack.c.b16 %v1165, %v1157
    %v1446 = vpack.c.b16 %v1166, %v1158
    %v1447 = vpack.c.b16 %v1167, %v1159
    %v1448 = vpack.c.b16 %v1176, %v1168
    %v1449 = vpack.c.b16 %v1177, %v1169
    %v1450 = vpack.c.b16 %v1178, %v1170
    %v1451 = vpack.c.b16 %v1179, %v1171
    %v1452 = vpack.c.b16 %v1180, %v1172
    %v1453 = vpack.c.b16 %v1181, %v1173
    %v1454 = vpack.c.b16 %v1182, %v1174
    %v1455 = vpack.c.b16 %v1183, %v1175
    %v1456 = vpack.c.b16 %v1192, %v1184
    %v1457 = vpack.c.b16 %v1193, %v1185
    %v1458 = vpack.c.b16 %v1194, %v1186
    %v1459 = vpack.c.b16 %v1195, %v1187
    %v1460 = vpack.c.b16 %v1196, %v1188
    %v1461 = vpack.c.b16 %v1197, %v1189
    %v1462 = vpack.c.b16 %v1198, %v1190
    %v1463 = vpack.c.b16 %v1199, %v1191
    %v1464 = vpack.c.b16 %v1208, %v1200
    %v1465 = vpack.c.b16 %v1209, %v1201
    %v1466 = vpack.c.b16 %v1210, %v1202
    %v1467 = vpack.c.b16 %v1211, %v1203
    %v1468 = vpack.c.b16 %v1212, %v1204
    %v1469 = vpack.c.b16 %v1213, %v1205
    %v1470 = vpack.c.b16 %v1214, %v1206
    %v1471 = vpack.c.b16 %v1215, %v1207
    %1728 = vmatprep.subr.bf16.mxu0 %v1273
    %1729 = vmatpush1.bf16.msra.mxu0 %v1272
    %1730 = vmatprep.subr.bf16.mxu0 %v1265
    %1731 = vmatpush1.bf16.msra.mxu0 %v1264
    %1732 = vmatprep.subr.bf16.mxu0 %v1257
    %1733 = vmatpush1.bf16.msra.mxu0 %v1256
    %1734 = vmatprep.subr.bf16.mxu0 %v1249
    %1735 = vmatpush1.bf16.msra.mxu0 %v1248
    %1736 = vmatprep.subr.bf16.mxu0 %v1241
    %1737 = vmatpush1.bf16.msra.mxu0 %v1240
    %1738 = vmatprep.subr.bf16.mxu0 %v1233
    %1739 = vmatpush1.bf16.msra.mxu0 %v1232
    %1740 = vmatprep.subr.bf16.mxu0 %v1225
    %1741 = vmatpush1.bf16.msra.mxu0 %v1224
    %1742 = vmatprep.subr.bf16.mxu0 %v1217
    %1743 = vmatpush1.bf16.msra.mxu0 %v1216
    %1744 = vmatprep.subr.bf16.mxu0 %v1337
    %1745 = vmatpush2.bf16.msra.mxu0 %v1336
    %1746 = vmatprep.subr.bf16.mxu0 %v1329
    %1747 = vmatpush2.bf16.msra.mxu0 %v1328
    %1748 = vmatprep.subr.bf16.mxu0 %v1321
    %1749 = vmatpush2.bf16.msra.mxu0 %v1320
    %1750 = vmatprep.subr.bf16.mxu0 %v1313
    %1751 = vmatpush2.bf16.msra.mxu0 %v1312
    %1752 = vmatprep.subr.bf16.mxu0 %v1305
    %1753 = vmatpush2.bf16.msra.mxu0 %v1304
    %1754 = vmatprep.subr.bf16.mxu0 %v1297
    %1755 = vmatpush2.bf16.msra.mxu0 %v1296
    %1756 = vmatprep.subr.bf16.mxu0 %v1289
    %1757 = vmatpush2.bf16.msra.mxu0 %v1288
    %1758 = vmatprep.subr.bf16.mxu0 %v1281
    %1759 = vmatpush2.bf16.msra.mxu0 %v1280
    %1760 = vmatprep.mubr.bf16.mxu0 %v441
    %1761 = vmatmul.mubr.bf16.gmra.mxu0 %v440
    %v1762 = vpop.f32.mrf.mxu0
    %v1763 = vadd.f32 %v399, %v1762
    %v1764 = vpop.f32.mrf.mxu0
    %v1765 = vadd.f32 %v403, %v1764
    %v1766 = vpop.f32.mrf.mxu0
    %v1767 = vadd.f32 %v399, %v1766
    %v1768 = vpop.f32.mrf.mxu0
    %v1769 = vadd.f32 %v403, %v1768
    %1770 = vdwg.mxu0
    %1771 = vmatprep.subr.bf16.mxu0 %v1401
    %1772 = vmatpush1.bf16.msra.mxu0 %v1400
    %1773 = vmatprep.subr.bf16.mxu0 %v1393
    %1774 = vmatpush1.bf16.msra.mxu0 %v1392
    %1775 = vmatprep.subr.bf16.mxu0 %v1385
    %1776 = vmatpush1.bf16.msra.mxu0 %v1384
    %1777 = vmatprep.subr.bf16.mxu0 %v1377
    %1778 = vmatpush1.bf16.msra.mxu0 %v1376
    %1779 = vmatprep.subr.bf16.mxu0 %v1369
    %1780 = vmatpush1.bf16.msra.mxu0 %v1368
    %1781 = vmatprep.subr.bf16.mxu0 %v1361
    %1782 = vmatpush1.bf16.msra.mxu0 %v1360
    %1783 = vmatprep.subr.bf16.mxu0 %v1353
    %1784 = vmatpush1.bf16.msra.mxu0 %v1352
    %1785 = vmatprep.subr.bf16.mxu0 %v1345
    %1786 = vmatpush1.bf16.msra.mxu0 %v1344
    %1787 = vmatprep.subr.bf16.mxu0 %v1465
    %1788 = vmatpush2.bf16.msra.mxu0 %v1464
    %1789 = vmatprep.subr.bf16.mxu0 %v1457
    %1790 = vmatpush2.bf16.msra.mxu0 %v1456
    %1791 = vmatprep.subr.bf16.mxu0 %v1449
    %1792 = vmatpush2.bf16.msra.mxu0 %v1448
    %1793 = vmatprep.subr.bf16.mxu0 %v1441
    %1794 = vmatpush2.bf16.msra.mxu0 %v1440
    %1795 = vmatprep.subr.bf16.mxu0 %v1433
    %1796 = vmatpush2.bf16.msra.mxu0 %v1432
    %1797 = vmatprep.subr.bf16.mxu0 %v1425
    %1798 = vmatpush2.bf16.msra.mxu0 %v1424
    %1799 = vmatprep.subr.bf16.mxu0 %v1417
    %1800 = vmatpush2.bf16.msra.mxu0 %v1416
    %1801 = vmatprep.subr.bf16.mxu0 %v1409
    %1802 = vmatpush2.bf16.msra.mxu0 %v1408
    %1803 = vmatprep.mubr.bf16.mxu0 %v443
    %1804 = vmatmul.mubr.bf16.gmra.mxu0 %v442
    %v1805 = vpop.f32.mrf.mxu0
    %v1806 = vadd.f32 %v1763, %v1805
    %v1807 = vpop.f32.mrf.mxu0
    %v1808 = vadd.f32 %v1765, %v1807
    %v1809 = vpop.f32.mrf.mxu0
    %v1810 = vadd.f32 %v1767, %v1809
    %v1811 = vpop.f32.mrf.mxu0
    %v1812 = vadd.f32 %v1769, %v1811
    %1813 = vdwg.mxu0
    %1814 = vmatprep.subr.bf16.mxu0 %v1275
    %1815 = vmatpush1.bf16.msra.mxu0 %v1274
    %1816 = vmatprep.subr.bf16.mxu0 %v1267
    %1817 = vmatpush1.bf16.msra.mxu0 %v1266
    %1818 = vmatprep.subr.bf16.mxu0 %v1259
    %1819 = vmatpush1.bf16.msra.mxu0 %v1258
    %1820 = vmatprep.subr.bf16.mxu0 %v1251
    %1821 = vmatpush1.bf16.msra.mxu0 %v1250
    %1822 = vmatprep.subr.bf16.mxu0 %v1243
    %1823 = vmatpush1.bf16.msra.mxu0 %v1242
    %1824 = vmatprep.subr.bf16.mxu0 %v1235
    %1825 = vmatpush1.bf16.msra.mxu0 %v1234
    %1826 = vmatprep.subr.bf16.mxu0 %v1227
    %1827 = vmatpush1.bf16.msra.mxu0 %v1226
    %1828 = vmatprep.subr.bf16.mxu0 %v1219
    %1829 = vmatpush1.bf16.msra.mxu0 %v1218
    %1830 = vmatprep.subr.bf16.mxu0 %v1339
    %1831 = vmatpush2.bf16.msra.mxu0 %v1338
    %1832 = vmatprep.subr.bf16.mxu0 %v1331
    %1833 = vmatpush2.bf16.msra.mxu0 %v1330
    %1834 = vmatprep.subr.bf16.mxu0 %v1323
    %1835 = vmatpush2.bf16.msra.mxu0 %v1322
    %1836 = vmatprep.subr.bf16.mxu0 %v1315
    %1837 = vmatpush2.bf16.msra.mxu0 %v1314
    %1838 = vmatprep.subr.bf16.mxu0 %v1307
    %1839 = vmatpush2.bf16.msra.mxu0 %v1306
    %1840 = vmatprep.subr.bf16.mxu0 %v1299
    %1841 = vmatpush2.bf16.msra.mxu0 %v1298
    %1842 = vmatprep.subr.bf16.mxu0 %v1291
    %1843 = vmatpush2.bf16.msra.mxu0 %v1290
    %1844 = vmatprep.subr.bf16.mxu0 %v1283
    %1845 = vmatpush2.bf16.msra.mxu0 %v1282
    %1846 = vmatprep.mubr.bf16.mxu0 %v441
    %1847 = vmatmul.mubr.bf16.gmra.mxu0 %v440
    %v1848 = vpop.f32.mrf.mxu0
    %v1849 = vadd.f32 %v407, %v1848
    %v1850 = vpop.f32.mrf.mxu0
    %v1851 = vadd.f32 %v411, %v1850
    %v1852 = vpop.f32.mrf.mxu0
    %v1853 = vadd.f32 %v407, %v1852
    %v1854 = vpop.f32.mrf.mxu0
    %v1855 = vadd.f32 %v411, %v1854
    %1856 = vdwg.mxu0
    %1857 = vmatprep.subr.bf16.mxu0 %v1403
    %1858 = vmatpush1.bf16.msra.mxu0 %v1402
    %1859 = vmatprep.subr.bf16.mxu0 %v1395
    %1860 = vmatpush1.bf16.msra.mxu0 %v1394
    %1861 = vmatprep.subr.bf16.mxu0 %v1387
    %1862 = vmatpush1.bf16.msra.mxu0 %v1386
    %1863 = vmatprep.subr.bf16.mxu0 %v1379
    %1864 = vmatpush1.bf16.msra.mxu0 %v1378
    %1865 = vmatprep.subr.bf16.mxu0 %v1371
    %1866 = vmatpush1.bf16.msra.mxu0 %v1370
    %1867 = vmatprep.subr.bf16.mxu0 %v1363
    %1868 = vmatpush1.bf16.msra.mxu0 %v1362
    %1869 = vmatprep.subr.bf16.mxu0 %v1355
    %1870 = vmatpush1.bf16.msra.mxu0 %v1354
    %1871 = vmatprep.subr.bf16.mxu0 %v1347
    %1872 = vmatpush1.bf16.msra.mxu0 %v1346
    %1873 = vmatprep.subr.bf16.mxu0 %v1467
    %1874 = vmatpush2.bf16.msra.mxu0 %v1466
    %1875 = vmatprep.subr.bf16.mxu0 %v1459
    %1876 = vmatpush2.bf16.msra.mxu0 %v1458
    %1877 = vmatprep.subr.bf16.mxu0 %v1451
    %1878 = vmatpush2.bf16.msra.mxu0 %v1450
    %1879 = vmatprep.subr.bf16.mxu0 %v1443
    %1880 = vmatpush2.bf16.msra.mxu0 %v1442
    %1881 = vmatprep.subr.bf16.mxu0 %v1435
    %1882 = vmatpush2.bf16.msra.mxu0 %v1434
    %1883 = vmatprep.subr.bf16.mxu0 %v1427
    %1884 = vmatpush2.bf16.msra.mxu0 %v1426
    %1885 = vmatprep.subr.bf16.mxu0 %v1419
    %1886 = vmatpush2.bf16.msra.mxu0 %v1418
    %1887 = vmatprep.subr.bf16.mxu0 %v1411
    %1888 = vmatpush2.bf16.msra.mxu0 %v1410
    %1889 = vmatprep.mubr.bf16.mxu0 %v443
    %1890 = vmatmul.mubr.bf16.gmra.mxu0 %v442
    %v1891 = vpop.f32.mrf.mxu0
    %v1892 = vadd.f32 %v1849, %v1891
    %v1893 = vpop.f32.mrf.mxu0
    %v1894 = vadd.f32 %v1851, %v1893
    %v1895 = vpop.f32.mrf.mxu0
    %v1896 = vadd.f32 %v1853, %v1895
    %v1897 = vpop.f32.mrf.mxu0
    %v1898 = vadd.f32 %v1855, %v1897
    %1899 = vdwg.mxu0
    %1900 = vmatprep.subr.bf16.mxu0 %v1277
    %1901 = vmatpush1.bf16.msra.mxu0 %v1276
    %1902 = vmatprep.subr.bf16.mxu0 %v1269
    %1903 = vmatpush1.bf16.msra.mxu0 %v1268
    %1904 = vmatprep.subr.bf16.mxu0 %v1261
    %1905 = vmatpush1.bf16.msra.mxu0 %v1260
    %1906 = vmatprep.subr.bf16.mxu0 %v1253
    %1907 = vmatpush1.bf16.msra.mxu0 %v1252
    %1908 = vmatprep.subr.bf16.mxu0 %v1245
    %1909 = vmatpush1.bf16.msra.mxu0 %v1244
    %1910 = vmatprep.subr.bf16.mxu0 %v1237
    %1911 = vmatpush1.bf16.msra.mxu0 %v1236
    %1912 = vmatprep.subr.bf16.mxu0 %v1229
    %1913 = vmatpush1.bf16.msra.mxu0 %v1228
    %1914 = vmatprep.subr.bf16.mxu0 %v1221
    %1915 = vmatpush1.bf16.msra.mxu0 %v1220
    %1916 = vmatprep.subr.bf16.mxu0 %v1341
    %1917 = vmatpush2.bf16.msra.mxu0 %v1340
    %1918 = vmatprep.subr.bf16.mxu0 %v1333
    %1919 = vmatpush2.bf16.msra.mxu0 %v1332
    %1920 = vmatprep.subr.bf16.mxu0 %v1325
    %1921 = vmatpush2.bf16.msra.mxu0 %v1324
    %1922 = vmatprep.subr.bf16.mxu0 %v1317
    %1923 = vmatpush2.bf16.msra.mxu0 %v1316
    %1924 = vmatprep.subr.bf16.mxu0 %v1309
    %1925 = vmatpush2.bf16.msra.mxu0 %v1308
    %1926 = vmatprep.subr.bf16.mxu0 %v1301
    %1927 = vmatpush2.bf16.msra.mxu0 %v1300
    %1928 = vmatprep.subr.bf16.mxu0 %v1293
    %1929 = vmatpush2.bf16.msra.mxu0 %v1292
    %1930 = vmatprep.subr.bf16.mxu0 %v1285
    %1931 = vmatpush2.bf16.msra.mxu0 %v1284
    %1932 = vmatprep.mubr.bf16.mxu0 %v441
    %1933 = vmatmul.mubr.bf16.gmra.mxu0 %v440
    %v1934 = vpop.f32.mrf.mxu0
    %v1935 = vadd.f32 %v415, %v1934
    %v1936 = vpop.f32.mrf.mxu0
    %v1937 = vadd.f32 %v419, %v1936
    %v1938 = vpop.f32.mrf.mxu0
    %v1939 = vadd.f32 %v415, %v1938
    %v1940 = vpop.f32.mrf.mxu0
    %v1941 = vadd.f32 %v419, %v1940
    %1942 = vdwg.mxu0
    %1943 = vmatprep.subr.bf16.mxu0 %v1405
    %1944 = vmatpush1.bf16.msra.mxu0 %v1404
    %1945 = vmatprep.subr.bf16.mxu0 %v1397
    %1946 = vmatpush1.bf16.msra.mxu0 %v1396
    %1947 = vmatprep.subr.bf16.mxu0 %v1389
    %1948 = vmatpush1.bf16.msra.mxu0 %v1388
    %1949 = vmatprep.subr.bf16.mxu0 %v1381
    %1950 = vmatpush1.bf16.msra.mxu0 %v1380
    %1951 = vmatprep.subr.bf16.mxu0 %v1373
    %1952 = vmatpush1.bf16.msra.mxu0 %v1372
    %1953 = vmatprep.subr.bf16.mxu0 %v1365
    %1954 = vmatpush1.bf16.msra.mxu0 %v1364
    %1955 = vmatprep.subr.bf16.mxu0 %v1357
    %1956 = vmatpush1.bf16.msra.mxu0 %v1356
    %1957 = vmatprep.subr.bf16.mxu0 %v1349
    %1958 = vmatpush1.bf16.msra.mxu0 %v1348
    %1959 = vmatprep.subr.bf16.mxu0 %v1469
    %1960 = vmatpush2.bf16.msra.mxu0 %v1468
    %1961 = vmatprep.subr.bf16.mxu0 %v1461
    %1962 = vmatpush2.bf16.msra.mxu0 %v1460
    %1963 = vmatprep.subr.bf16.mxu0 %v1453
    %1964 = vmatpush2.bf16.msra.mxu0 %v1452
    %1965 = vmatprep.subr.bf16.mxu0 %v1445
    %1966 = vmatpush2.bf16.msra.mxu0 %v1444
    %1967 = vmatprep.subr.bf16.mxu0 %v1437
    %1968 = vmatpush2.bf16.msra.mxu0 %v1436
    %1969 = vmatprep.subr.bf16.mxu0 %v1429
    %1970 = vmatpush2.bf16.msra.mxu0 %v1428
    %1971 = vmatprep.subr.bf16.mxu0 %v1421
    %1972 = vmatpush2.bf16.msra.mxu0 %v1420
    %1973 = vmatprep.subr.bf16.mxu0 %v1413
    %1974 = vmatpush2.bf16.msra.mxu0 %v1412
    %1975 = vmatprep.mubr.bf16.mxu0 %v443
    %1976 = vmatmul.mubr.bf16.gmra.mxu0 %v442
    %v1977 = vpop.f32.mrf.mxu0
    %v1978 = vadd.f32 %v1935, %v1977
    %v1979 = vpop.f32.mrf.mxu0
    %v1980 = vadd.f32 %v1937, %v1979
    %v1981 = vpop.f32.mrf.mxu0
    %v1982 = vadd.f32 %v1939, %v1981
    %v1983 = vpop.f32.mrf.mxu0
    %v1984 = vadd.f32 %v1941, %v1983
    %1985 = vdwg.mxu0
    %1986 = vmatprep.subr.bf16.mxu0 %v1279
    %1987 = vmatpush1.bf16.msra.mxu0 %v1278
    %1988 = vmatprep.subr.bf16.mxu0 %v1271
    %1989 = vmatpush1.bf16.msra.mxu0 %v1270
    %1990 = vmatprep.subr.bf16.mxu0 %v1263
    %1991 = vmatpush1.bf16.msra.mxu0 %v1262
    %1992 = vmatprep.subr.bf16.mxu0 %v1255
    %1993 = vmatpush1.bf16.msra.mxu0 %v1254
    %1994 = vmatprep.subr.bf16.mxu0 %v1247
    %1995 = vmatpush1.bf16.msra.mxu0 %v1246
    %1996 = vmatprep.subr.bf16.mxu0 %v1239
    %1997 = vmatpush1.bf16.msra.mxu0 %v1238
    %1998 = vmatprep.subr.bf16.mxu0 %v1231
    %1999 = vmatpush1.bf16.msra.mxu0 %v1230
    %2000 = vmatprep.subr.bf16.mxu0 %v1223
    %2001 = vmatpush1.bf16.msra.mxu0 %v1222
    %2002 = vmatprep.subr.bf16.mxu0 %v1343
    %2003 = vmatpush2.bf16.msra.mxu0 %v1342
    %2004 = vmatprep.subr.bf16.mxu0 %v1335
    %2005 = vmatpush2.bf16.msra.mxu0 %v1334
    %2006 = vmatprep.subr.bf16.mxu0 %v1327
    %2007 = vmatpush2.bf16.msra.mxu0 %v1326
    %2008 = vmatprep.subr.bf16.mxu0 %v1319
    %2009 = vmatpush2.bf16.msra.mxu0 %v1318
    %2010 = vmatprep.subr.bf16.mxu0 %v1311
    %2011 = vmatpush2.bf16.msra.mxu0 %v1310
    %2012 = vmatprep.subr.bf16.mxu0 %v1303
    %2013 = vmatpush2.bf16.msra.mxu0 %v1302
    %2014 = vmatprep.subr.bf16.mxu0 %v1295
    %2015 = vmatpush2.bf16.msra.mxu0 %v1294
    %2016 = vmatprep.subr.bf16.mxu0 %v1287
    %2017 = vmatpush2.bf16.msra.mxu0 %v1286
    %2018 = vmatprep.mubr.bf16.mxu0 %v441
    %2019 = vmatmul.mubr.bf16.gmra.mxu0 %v440
    %v2020 = vpop.f32.mrf.mxu0
    %v2021 = vadd.f32 %v423, %v2020
    %v2022 = vpop.f32.mrf.mxu0
    %v2023 = vadd.f32 %v427, %v2022
    %v2024 = vpop.f32.mrf.mxu0
    %v2025 = vadd.f32 %v423, %v2024
    %v2026 = vpop.f32.mrf.mxu0
    %v2027 = vadd.f32 %v427, %v2026
    %2028 = vdwg.mxu0
    %2029 = vmatprep.subr.bf16.mxu0 %v1407
    %2030 = vmatpush1.bf16.msra.mxu0 %v1406
    %2031 = vmatprep.subr.bf16.mxu0 %v1399
    %2032 = vmatpush1.bf16.msra.mxu0 %v1398
    %2033 = vmatprep.subr.bf16.mxu0 %v1391
    %2034 = vmatpush1.bf16.msra.mxu0 %v1390
    %2035 = vmatprep.subr.bf16.mxu0 %v1383
    %2036 = vmatpush1.bf16.msra.mxu0 %v1382
    %2037 = vmatprep.subr.bf16.mxu0 %v1375
    %2038 = vmatpush1.bf16.msra.mxu0 %v1374
    %2039 = vmatprep.subr.bf16.mxu0 %v1367
    %2040 = vmatpush1.bf16.msra.mxu0 %v1366
    %2041 = vmatprep.subr.bf16.mxu0 %v1359
    %2042 = vmatpush1.bf16.msra.mxu0 %v1358
    %2043 = vmatprep.subr.bf16.mxu0 %v1351
    %2044 = vmatpush1.bf16.msra.mxu0 %v1350
    %2045 = vmatprep.subr.bf16.mxu0 %v1471
    %2046 = vmatpush2.bf16.msra.mxu0 %v1470
    %2047 = vmatprep.subr.bf16.mxu0 %v1463
    %2048 = vmatpush2.bf16.msra.mxu0 %v1462
    %2049 = vmatprep.subr.bf16.mxu0 %v1455
    %2050 = vmatpush2.bf16.msra.mxu0 %v1454
    %2051 = vmatprep.subr.bf16.mxu0 %v1447
    %2052 = vmatpush2.bf16.msra.mxu0 %v1446
    %2053 = vmatprep.subr.bf16.mxu0 %v1439
    %2054 = vmatpush2.bf16.msra.mxu0 %v1438
    %2055 = vmatprep.subr.bf16.mxu0 %v1431
    %2056 = vmatpush2.bf16.msra.mxu0 %v1430
    %2057 = vmatprep.subr.bf16.mxu0 %v1423
    %2058 = vmatpush2.bf16.msra.mxu0 %v1422
    %2059 = vmatprep.subr.bf16.mxu0 %v1415
    %2060 = vmatpush2.bf16.msra.mxu0 %v1414
    %2061 = vmatprep.mubr.bf16.mxu0 %v443
    %2062 = vmatmul.mubr.bf16.gmra.mxu0 %v442
    %v2063 = vpop.f32.mrf.mxu0
    %v2064 = vadd.f32 %v2021, %v2063
    %v2065 = vpop.f32.mrf.mxu0
    %v2066 = vadd.f32 %v2023, %v2065
    %v2067 = vpop.f32.mrf.mxu0
    %v2068 = vadd.f32 %v2025, %v2067
    %v2069 = vpop.f32.mrf.mxu0
    %v2070 = vadd.f32 %v2027, %v2069
    %2071 = vdwg.mxu0
    %vm2072 = vcmp.gt.f32.partialorder %v1806, 0.0
    %vm2073 = vcmp.gt.f32.partialorder %v1808, 0.0
    %vm2074 = vcmp.gt.f32.partialorder %v1892, 0.0
    %vm2075 = vcmp.gt.f32.partialorder %v1894, 0.0
    %vm2076 = vcmp.gt.f32.partialorder %v1978, 0.0
    %vm2077 = vcmp.gt.f32.partialorder %v1980, 0.0
    %vm2078 = vcmp.gt.f32.partialorder %v2064, 0.0
    %vm2079 = vcmp.gt.f32.partialorder %v2066, 0.0
    %vm2080 = vcmp.gt.f32.partialorder %v1810, 0.0
    %vm2081 = vcmp.gt.f32.partialorder %v1812, 0.0
    %vm2082 = vcmp.gt.f32.partialorder %v1896, 0.0
    %vm2083 = vcmp.gt.f32.partialorder %v1898, 0.0
    %vm2084 = vcmp.gt.f32.partialorder %v1982, 0.0
    %vm2085 = vcmp.gt.f32.partialorder %v1984, 0.0
    %vm2086 = vcmp.gt.f32.partialorder %v2068, 0.0
    %vm2087 = vcmp.gt.f32.partialorder %v2070, 0.0
    %v2088 = vmul.f32 %v1806, 0.01
    %v2089 = vmul.f32 %v1808, 0.01
    %v2090 = vmul.f32 %v1892, 0.01
    %v2091 = vmul.f32 %v1894, 0.01
    %v2092 = vmul.f32 %v1978, 0.01
    %v2093 = vmul.f32 %v1980, 0.01
    %v2094 = vmul.f32 %v2064, 0.01
    %v2095 = vmul.f32 %v2066, 0.01
    %v2096 = vmul.f32 %v1810, 0.01
    %v2097 = vmul.f32 %v1812, 0.01
    %v2098 = vmul.f32 %v1896, 0.01
    %v2099 = vmul.f32 %v1898, 0.01
    %v2100 = vmul.f32 %v1982, 0.01
    %v2101 = vmul.f32 %v1984, 0.01
    %v2102 = vmul.f32 %v2068, 0.01
    %v2103 = vmul.f32 %v2070, 0.01
    %v2104 = vsel %vm2072, %v1806, %v2088
    %v2105 = vsel %vm2073, %v1808, %v2089
    %v2106 = vsel %vm2074, %v1892, %v2090
    %v2107 = vsel %vm2075, %v1894, %v2091
    %v2108 = vsel %vm2076, %v1978, %v2092
    %v2109 = vsel %vm2077, %v1980, %v2093
    %v2110 = vsel %vm2078, %v2064, %v2094
    %v2111 = vsel %vm2079, %v2066, %v2095
    %v2112 = vsel %vm2080, %v1810, %v2096
    %v2113 = vsel %vm2081, %v1812, %v2097
    %v2114 = vsel %vm2082, %v1896, %v2098
    %v2115 = vsel %vm2083, %v1898, %v2099
    %v2116 = vsel %vm2084, %v1982, %v2100
    %v2117 = vsel %vm2085, %v1984, %v2101
    %v2118 = vsel %vm2086, %v2068, %v2102
    %v2119 = vsel %vm2087, %v2070, %v2103
    %v2120 = vpack.c.bf16 %v2112, %v2104
    %v2121 = vpack.c.bf16 %v2113, %v2105
    %v2122 = vpack.c.bf16 %v2114, %v2106
    %v2123 = vpack.c.bf16 %v2115, %v2107
    %v2124 = vpack.c.bf16 %v2116, %v2108
    %v2125 = vpack.c.bf16 %v2117, %v2109
    %v2126 = vpack.c.bf16 %v2118, %v2110
    %v2127 = vpack.c.bf16 %v2119, %v2111
    %v2128 = vld [vmem:[#allocation7] sm:$0xff]
    %v2129 = vld [vmem:[#allocation7 + $0x8] sm:$0xff]
    %v2130 = vld [vmem:[#allocation7 + $0x10] sm:$0xff]
    %v2131 = vld [vmem:[#allocation7 + $0x18] sm:$0xff]
    %v2132 = vld [vmem:[#allocation7 + $0x20] sm:$0xff]
    %v2133 = vld [vmem:[#allocation7 + $0x28] sm:$0xff]
    %v2134 = vld [vmem:[#allocation7 + $0x30] sm:$0xff]
    %v2135 = vld [vmem:[#allocation7 + $0x38] sm:$0xff]
    %v2136 = vld [vmem:[#allocation7 + $0x40] sm:$0xff]
    %v2137 = vld [vmem:[#allocation7 + $0x48] sm:$0xff]
    %v2138 = vld [vmem:[#allocation7 + $0x50] sm:$0xff]
    %v2139 = vld [vmem:[#allocation7 + $0x58] sm:$0xff]
    %v2140 = vld [vmem:[#allocation7 + $0x60] sm:$0xff]
    %v2141 = vld [vmem:[#allocation7 + $0x68] sm:$0xff]
    %v2142 = vld [vmem:[#allocation7 + $0x70] sm:$0xff]
    %v2143 = vld [vmem:[#allocation7 + $0x78] sm:$0xff]
    %v2144 = vld [vmem:[#allocation7 + $0x80] sm:$0xff]
    %v2145 = vld [vmem:[#allocation7 + $0x88] sm:$0xff]
    %v2146 = vld [vmem:[#allocation7 + $0x90] sm:$0xff]
    %v2147 = vld [vmem:[#allocation7 + $0x98] sm:$0xff]
    %v2148 = vld [vmem:[#allocation7 + $0xa0] sm:$0xff]
    %v2149 = vld [vmem:[#allocation7 + $0xa8] sm:$0xff]
    %v2150 = vld [vmem:[#allocation7 + $0xb0] sm:$0xff]
    %v2151 = vld [vmem:[#allocation7 + $0xb8] sm:$0xff]
    %v2152 = vld [vmem:[#allocation7 + $0xc0] sm:$0xff]
    %v2153 = vld [vmem:[#allocation7 + $0xc8] sm:$0xff]
    %v2154 = vld [vmem:[#allocation7 + $0xd0] sm:$0xff]
    %v2155 = vld [vmem:[#allocation7 + $0xd8] sm:$0xff]
    %v2156 = vld [vmem:[#allocation7 + $0xe0] sm:$0xff]
    %v2157 = vld [vmem:[#allocation7 + $0xe8] sm:$0xff]
    %v2158 = vld [vmem:[#allocation7 + $0xf0] sm:$0xff]
    %v2159 = vld [vmem:[#allocation7 + $0xf8] sm:$0xff]
    %v2160 = vld [vmem:[#allocation7 + $0x100] sm:$0xff]
    %v2161 = vld [vmem:[#allocation7 + $0x108] sm:$0xff]
    %v2162 = vld [vmem:[#allocation7 + $0x110] sm:$0xff]
    %v2163 = vld [vmem:[#allocation7 + $0x118] sm:$0xff]
    %v2164 = vld [vmem:[#allocation7 + $0x120] sm:$0xff]
    %v2165 = vld [vmem:[#allocation7 + $0x128] sm:$0xff]
    %v2166 = vld [vmem:[#allocation7 + $0x130] sm:$0xff]
    %v2167 = vld [vmem:[#allocation7 + $0x138] sm:$0xff]
    %v2168 = vld [vmem:[#allocation7 + $0x140] sm:$0xff]
    %v2169 = vld [vmem:[#allocation7 + $0x148] sm:$0xff]
    %v2170 = vld [vmem:[#allocation7 + $0x150] sm:$0xff]
    %v2171 = vld [vmem:[#allocation7 + $0x158] sm:$0xff]
    %v2172 = vld [vmem:[#allocation7 + $0x160] sm:$0xff]
    %v2173 = vld [vmem:[#allocation7 + $0x168] sm:$0xff]
    %v2174 = vld [vmem:[#allocation7 + $0x170] sm:$0xff]
    %v2175 = vld [vmem:[#allocation7 + $0x178] sm:$0xff]
    %v2176 = vld [vmem:[#allocation7 + $0x180] sm:$0xff]
    %v2177 = vld [vmem:[#allocation7 + $0x188] sm:$0xff]
    %v2178 = vld [vmem:[#allocation7 + $0x190] sm:$0xff]
    %v2179 = vld [vmem:[#allocation7 + $0x198] sm:$0xff]
    %v2180 = vld [vmem:[#allocation7 + $0x1a0] sm:$0xff]
    %v2181 = vld [vmem:[#allocation7 + $0x1a8] sm:$0xff]
    %v2182 = vld [vmem:[#allocation7 + $0x1b0] sm:$0xff]
    %v2183 = vld [vmem:[#allocation7 + $0x1b8] sm:$0xff]
    %v2184 = vld [vmem:[#allocation7 + $0x1c0] sm:$0xff]
    %v2185 = vld [vmem:[#allocation7 + $0x1c8] sm:$0xff]
    %v2186 = vld [vmem:[#allocation7 + $0x1d0] sm:$0xff]
    %v2187 = vld [vmem:[#allocation7 + $0x1d8] sm:$0xff]
    %v2188 = vld [vmem:[#allocation7 + $0x1e0] sm:$0xff]
    %v2189 = vld [vmem:[#allocation7 + $0x1e8] sm:$0xff]
    %v2190 = vld [vmem:[#allocation7 + $0x1f0] sm:$0xff]
    %v2191 = vld [vmem:[#allocation7 + $0x1f8] sm:$0xff]
    %v2192 = vld [vmem:[#allocation7 + $0x200] sm:$0xff]
    %v2193 = vld [vmem:[#allocation7 + $0x208] sm:$0xff]
    %v2194 = vld [vmem:[#allocation7 + $0x210] sm:$0xff]
    %v2195 = vld [vmem:[#allocation7 + $0x218] sm:$0xff]
    %v2196 = vld [vmem:[#allocation7 + $0x220] sm:$0xff]
    %v2197 = vld [vmem:[#allocation7 + $0x228] sm:$0xff]
    %v2198 = vld [vmem:[#allocation7 + $0x230] sm:$0xff]
    %v2199 = vld [vmem:[#allocation7 + $0x238] sm:$0xff]
    %v2200 = vld [vmem:[#allocation7 + $0x240] sm:$0xff]
    %v2201 = vld [vmem:[#allocation7 + $0x248] sm:$0xff]
    %v2202 = vld [vmem:[#allocation7 + $0x250] sm:$0xff]
    %v2203 = vld [vmem:[#allocation7 + $0x258] sm:$0xff]
    %v2204 = vld [vmem:[#allocation7 + $0x260] sm:$0xff]
    %v2205 = vld [vmem:[#allocation7 + $0x268] sm:$0xff]
    %v2206 = vld [vmem:[#allocation7 + $0x270] sm:$0xff]
    %v2207 = vld [vmem:[#allocation7 + $0x278] sm:$0xff]
    %v2208 = vld [vmem:[#allocation7 + $0x280] sm:$0xff]
    %v2209 = vld [vmem:[#allocation7 + $0x288] sm:$0xff]
    %v2210 = vld [vmem:[#allocation7 + $0x290] sm:$0xff]
    %v2211 = vld [vmem:[#allocation7 + $0x298] sm:$0xff]
    %v2212 = vld [vmem:[#allocation7 + $0x2a0] sm:$0xff]
    %v2213 = vld [vmem:[#allocation7 + $0x2a8] sm:$0xff]
    %v2214 = vld [vmem:[#allocation7 + $0x2b0] sm:$0xff]
    %v2215 = vld [vmem:[#allocation7 + $0x2b8] sm:$0xff]
    %v2216 = vld [vmem:[#allocation7 + $0x2c0] sm:$0xff]
    %v2217 = vld [vmem:[#allocation7 + $0x2c8] sm:$0xff]
    %v2218 = vld [vmem:[#allocation7 + $0x2d0] sm:$0xff]
    %v2219 = vld [vmem:[#allocation7 + $0x2d8] sm:$0xff]
    %v2220 = vld [vmem:[#allocation7 + $0x2e0] sm:$0xff]
    %v2221 = vld [vmem:[#allocation7 + $0x2e8] sm:$0xff]
    %v2222 = vld [vmem:[#allocation7 + $0x2f0] sm:$0xff]
    %v2223 = vld [vmem:[#allocation7 + $0x2f8] sm:$0xff]
    %v2224 = vld [vmem:[#allocation7 + $0x300] sm:$0xff]
    %v2225 = vld [vmem:[#allocation7 + $0x308] sm:$0xff]
    %v2226 = vld [vmem:[#allocation7 + $0x310] sm:$0xff]
    %v2227 = vld [vmem:[#allocation7 + $0x318] sm:$0xff]
    %v2228 = vld [vmem:[#allocation7 + $0x320] sm:$0xff]
    %v2229 = vld [vmem:[#allocation7 + $0x328] sm:$0xff]
    %v2230 = vld [vmem:[#allocation7 + $0x330] sm:$0xff]
    %v2231 = vld [vmem:[#allocation7 + $0x338] sm:$0xff]
    %v2232 = vld [vmem:[#allocation7 + $0x340] sm:$0xff]
    %v2233 = vld [vmem:[#allocation7 + $0x348] sm:$0xff]
    %v2234 = vld [vmem:[#allocation7 + $0x350] sm:$0xff]
    %v2235 = vld [vmem:[#allocation7 + $0x358] sm:$0xff]
    %v2236 = vld [vmem:[#allocation7 + $0x360] sm:$0xff]
    %v2237 = vld [vmem:[#allocation7 + $0x368] sm:$0xff]
    %v2238 = vld [vmem:[#allocation7 + $0x370] sm:$0xff]
    %v2239 = vld [vmem:[#allocation7 + $0x378] sm:$0xff]
    %v2240 = vld [vmem:[#allocation7 + $0x380] sm:$0xff]
    %v2241 = vld [vmem:[#allocation7 + $0x388] sm:$0xff]
    %v2242 = vld [vmem:[#allocation7 + $0x390] sm:$0xff]
    %v2243 = vld [vmem:[#allocation7 + $0x398] sm:$0xff]
    %v2244 = vld [vmem:[#allocation7 + $0x3a0] sm:$0xff]
    %v2245 = vld [vmem:[#allocation7 + $0x3a8] sm:$0xff]
    %v2246 = vld [vmem:[#allocation7 + $0x3b0] sm:$0xff]
    %v2247 = vld [vmem:[#allocation7 + $0x3b8] sm:$0xff]
    %v2248 = vld [vmem:[#allocation7 + $0x3c0] sm:$0xff]
    %v2249 = vld [vmem:[#allocation7 + $0x3c8] sm:$0xff]
    %v2250 = vld [vmem:[#allocation7 + $0x3d0] sm:$0xff]
    %v2251 = vld [vmem:[#allocation7 + $0x3d8] sm:$0xff]
    %v2252 = vld [vmem:[#allocation7 + $0x3e0] sm:$0xff]
    %v2253 = vld [vmem:[#allocation7 + $0x3e8] sm:$0xff]
    %v2254 = vld [vmem:[#allocation7 + $0x3f0] sm:$0xff]
    %v2255 = vld [vmem:[#allocation7 + $0x3f8] sm:$0xff]
    %v2256 = vld [vmem:[#allocation7 + $0x400] sm:$0xff]
    %v2257 = vld [vmem:[#allocation7 + $0x408] sm:$0xff]
    %v2258 = vld [vmem:[#allocation7 + $0x410] sm:$0xff]
    %v2259 = vld [vmem:[#allocation7 + $0x418] sm:$0xff]
    %v2260 = vld [vmem:[#allocation7 + $0x420] sm:$0xff]
    %v2261 = vld [vmem:[#allocation7 + $0x428] sm:$0xff]
    %v2262 = vld [vmem:[#allocation7 + $0x430] sm:$0xff]
    %v2263 = vld [vmem:[#allocation7 + $0x438] sm:$0xff]
    %v2264 = vld [vmem:[#allocation7 + $0x440] sm:$0xff]
    %v2265 = vld [vmem:[#allocation7 + $0x448] sm:$0xff]
    %v2266 = vld [vmem:[#allocation7 + $0x450] sm:$0xff]
    %v2267 = vld [vmem:[#allocation7 + $0x458] sm:$0xff]
    %v2268 = vld [vmem:[#allocation7 + $0x460] sm:$0xff]
    %v2269 = vld [vmem:[#allocation7 + $0x468] sm:$0xff]
    %v2270 = vld [vmem:[#allocation7 + $0x470] sm:$0xff]
    %v2271 = vld [vmem:[#allocation7 + $0x478] sm:$0xff]
    %v2272 = vld [vmem:[#allocation7 + $0x480] sm:$0xff]
    %v2273 = vld [vmem:[#allocation7 + $0x488] sm:$0xff]
    %v2274 = vld [vmem:[#allocation7 + $0x490] sm:$0xff]
    %v2275 = vld [vmem:[#allocation7 + $0x498] sm:$0xff]
    %v2276 = vld [vmem:[#allocation7 + $0x4a0] sm:$0xff]
    %v2277 = vld [vmem:[#allocation7 + $0x4a8] sm:$0xff]
    %v2278 = vld [vmem:[#allocation7 + $0x4b0] sm:$0xff]
    %v2279 = vld [vmem:[#allocation7 + $0x4b8] sm:$0xff]
    %v2280 = vld [vmem:[#allocation7 + $0x4c0] sm:$0xff]
    %v2281 = vld [vmem:[#allocation7 + $0x4c8] sm:$0xff]
    %v2282 = vld [vmem:[#allocation7 + $0x4d0] sm:$0xff]
    %v2283 = vld [vmem:[#allocation7 + $0x4d8] sm:$0xff]
    %v2284 = vld [vmem:[#allocation7 + $0x4e0] sm:$0xff]
    %v2285 = vld [vmem:[#allocation7 + $0x4e8] sm:$0xff]
    %v2286 = vld [vmem:[#allocation7 + $0x4f0] sm:$0xff]
    %v2287 = vld [vmem:[#allocation7 + $0x4f8] sm:$0xff]
    %v2288 = vld [vmem:[#allocation7 + $0x500] sm:$0xff]
    %v2289 = vld [vmem:[#allocation7 + $0x508] sm:$0xff]
    %v2290 = vld [vmem:[#allocation7 + $0x510] sm:$0xff]
    %v2291 = vld [vmem:[#allocation7 + $0x518] sm:$0xff]
    %v2292 = vld [vmem:[#allocation7 + $0x520] sm:$0xff]
    %v2293 = vld [vmem:[#allocation7 + $0x528] sm:$0xff]
    %v2294 = vld [vmem:[#allocation7 + $0x530] sm:$0xff]
    %v2295 = vld [vmem:[#allocation7 + $0x538] sm:$0xff]
    %v2296 = vld [vmem:[#allocation7 + $0x540] sm:$0xff]
    %v2297 = vld [vmem:[#allocation7 + $0x548] sm:$0xff]
    %v2298 = vld [vmem:[#allocation7 + $0x550] sm:$0xff]
    %v2299 = vld [vmem:[#allocation7 + $0x558] sm:$0xff]
    %v2300 = vld [vmem:[#allocation7 + $0x560] sm:$0xff]
    %v2301 = vld [vmem:[#allocation7 + $0x568] sm:$0xff]
    %v2302 = vld [vmem:[#allocation7 + $0x570] sm:$0xff]
    %v2303 = vld [vmem:[#allocation7 + $0x578] sm:$0xff]
    %v2304 = vld [vmem:[#allocation7 + $0x580] sm:$0xff]
    %v2305 = vld [vmem:[#allocation7 + $0x588] sm:$0xff]
    %v2306 = vld [vmem:[#allocation7 + $0x590] sm:$0xff]
    %v2307 = vld [vmem:[#allocation7 + $0x598] sm:$0xff]
    %v2308 = vld [vmem:[#allocation7 + $0x5a0] sm:$0xff]
    %v2309 = vld [vmem:[#allocation7 + $0x5a8] sm:$0xff]
    %v2310 = vld [vmem:[#allocation7 + $0x5b0] sm:$0xff]
    %v2311 = vld [vmem:[#allocation7 + $0x5b8] sm:$0xff]
    %v2312 = vld [vmem:[#allocation7 + $0x5c0] sm:$0xff]
    %v2313 = vld [vmem:[#allocation7 + $0x5c8] sm:$0xff]
    %v2314 = vld [vmem:[#allocation7 + $0x5d0] sm:$0xff]
    %v2315 = vld [vmem:[#allocation7 + $0x5d8] sm:$0xff]
    %v2316 = vld [vmem:[#allocation7 + $0x5e0] sm:$0xff]
    %v2317 = vld [vmem:[#allocation7 + $0x5e8] sm:$0xff]
    %v2318 = vld [vmem:[#allocation7 + $0x5f0] sm:$0xff]
    %v2319 = vld [vmem:[#allocation7 + $0x5f8] sm:$0xff]
    %v2320 = vld [vmem:[#allocation7 + $0x600] sm:$0xff]
    %v2321 = vld [vmem:[#allocation7 + $0x608] sm:$0xff]
    %v2322 = vld [vmem:[#allocation7 + $0x610] sm:$0xff]
    %v2323 = vld [vmem:[#allocation7 + $0x618] sm:$0xff]
    %v2324 = vld [vmem:[#allocation7 + $0x620] sm:$0xff]
    %v2325 = vld [vmem:[#allocation7 + $0x628] sm:$0xff]
    %v2326 = vld [vmem:[#allocation7 + $0x630] sm:$0xff]
    %v2327 = vld [vmem:[#allocation7 + $0x638] sm:$0xff]
    %v2328 = vld [vmem:[#allocation7 + $0x640] sm:$0xff]
    %v2329 = vld [vmem:[#allocation7 + $0x648] sm:$0xff]
    %v2330 = vld [vmem:[#allocation7 + $0x650] sm:$0xff]
    %v2331 = vld [vmem:[#allocation7 + $0x658] sm:$0xff]
    %v2332 = vld [vmem:[#allocation7 + $0x660] sm:$0xff]
    %v2333 = vld [vmem:[#allocation7 + $0x668] sm:$0xff]
    %v2334 = vld [vmem:[#allocation7 + $0x670] sm:$0xff]
    %v2335 = vld [vmem:[#allocation7 + $0x678] sm:$0xff]
    %v2336 = vld [vmem:[#allocation7 + $0x680] sm:$0xff]
    %v2337 = vld [vmem:[#allocation7 + $0x688] sm:$0xff]
    %v2338 = vld [vmem:[#allocation7 + $0x690] sm:$0xff]
    %v2339 = vld [vmem:[#allocation7 + $0x698] sm:$0xff]
    %v2340 = vld [vmem:[#allocation7 + $0x6a0] sm:$0xff]
    %v2341 = vld [vmem:[#allocation7 + $0x6a8] sm:$0xff]
    %v2342 = vld [vmem:[#allocation7 + $0x6b0] sm:$0xff]
    %v2343 = vld [vmem:[#allocation7 + $0x6b8] sm:$0xff]
    %v2344 = vld [vmem:[#allocation7 + $0x6c0] sm:$0xff]
    %v2345 = vld [vmem:[#allocation7 + $0x6c8] sm:$0xff]
    %v2346 = vld [vmem:[#allocation7 + $0x6d0] sm:$0xff]
    %v2347 = vld [vmem:[#allocation7 + $0x6d8] sm:$0xff]
    %v2348 = vld [vmem:[#allocation7 + $0x6e0] sm:$0xff]
    %v2349 = vld [vmem:[#allocation7 + $0x6e8] sm:$0xff]
    %v2350 = vld [vmem:[#allocation7 + $0x6f0] sm:$0xff]
    %v2351 = vld [vmem:[#allocation7 + $0x6f8] sm:$0xff]
    %v2352 = vld [vmem:[#allocation7 + $0x700] sm:$0xff]
    %v2353 = vld [vmem:[#allocation7 + $0x708] sm:$0xff]
    %v2354 = vld [vmem:[#allocation7 + $0x710] sm:$0xff]
    %v2355 = vld [vmem:[#allocation7 + $0x718] sm:$0xff]
    %v2356 = vld [vmem:[#allocation7 + $0x720] sm:$0xff]
    %v2357 = vld [vmem:[#allocation7 + $0x728] sm:$0xff]
    %v2358 = vld [vmem:[#allocation7 + $0x730] sm:$0xff]
    %v2359 = vld [vmem:[#allocation7 + $0x738] sm:$0xff]
    %v2360 = vld [vmem:[#allocation7 + $0x740] sm:$0xff]
    %v2361 = vld [vmem:[#allocation7 + $0x748] sm:$0xff]
    %v2362 = vld [vmem:[#allocation7 + $0x750] sm:$0xff]
    %v2363 = vld [vmem:[#allocation7 + $0x758] sm:$0xff]
    %v2364 = vld [vmem:[#allocation7 + $0x760] sm:$0xff]
    %v2365 = vld [vmem:[#allocation7 + $0x768] sm:$0xff]
    %v2366 = vld [vmem:[#allocation7 + $0x770] sm:$0xff]
    %v2367 = vld [vmem:[#allocation7 + $0x778] sm:$0xff]
    %v2368 = vld [vmem:[#allocation7 + $0x780] sm:$0xff]
    %v2369 = vld [vmem:[#allocation7 + $0x788] sm:$0xff]
    %v2370 = vld [vmem:[#allocation7 + $0x790] sm:$0xff]
    %v2371 = vld [vmem:[#allocation7 + $0x798] sm:$0xff]
    %v2372 = vld [vmem:[#allocation7 + $0x7a0] sm:$0xff]
    %v2373 = vld [vmem:[#allocation7 + $0x7a8] sm:$0xff]
    %v2374 = vld [vmem:[#allocation7 + $0x7b0] sm:$0xff]
    %v2375 = vld [vmem:[#allocation7 + $0x7b8] sm:$0xff]
    %v2376 = vld [vmem:[#allocation7 + $0x7c0] sm:$0xff]
    %v2377 = vld [vmem:[#allocation7 + $0x7c8] sm:$0xff]
    %v2378 = vld [vmem:[#allocation7 + $0x7d0] sm:$0xff]
    %v2379 = vld [vmem:[#allocation7 + $0x7d8] sm:$0xff]
    %v2380 = vld [vmem:[#allocation7 + $0x7e0] sm:$0xff]
    %v2381 = vld [vmem:[#allocation7 + $0x7e8] sm:$0xff]
    %v2382 = vld [vmem:[#allocation7 + $0x7f0] sm:$0xff]
    %v2383 = vld [vmem:[#allocation7 + $0x7f8] sm:$0xff]
    %v2384 = vlaneseq
    %v2385 = vshrl.u32 %v2384, 7
    %v2386 = vsub.s32 1, %v2385
    %v2387 = vrot.slane %v88, %v2386
    %v2388 = vlaneseq
    %v2389 = vshrl.u32 %v2388, 7
    %v2390 = vsub.s32 5, %v2389
    %v2391 = vrot.slane %v88, %v2390
    %v2392 = vlaneseq
    %v2393 = vshrl.u32 %v2392, 7
    %v2394 = vsub.s32 1, %v2393
    %v2395 = vrot.slane %v89, %v2394
    %v2396 = vlaneseq
    %v2397 = vshrl.u32 %v2396, 7
    %v2398 = vsub.s32 5, %v2397
    %v2399 = vrot.slane %v89, %v2398
    %v2404 = vlaneseq
    %v2405 = vshrl.u32 %v2404, 7
    %v2406 = vsub.s32 1, %v2405
    %v2407 = vrot.slane %v2387, %v2406
    %v2408 = vlaneseq
    %v2409 = vshrl.u32 %v2408, 7
    %v2410 = vsub.s32 1, %v2409
    %v2411 = vrot.slane %v2391, %v2410
    %v2412 = vlaneseq
    %v2413 = vshrl.u32 %v2412, 7
    %v2414 = vsub.s32 1, %v2413
    %v2415 = vrot.slane %v2395, %v2414
    %v2416 = vlaneseq
    %v2417 = vshrl.u32 %v2416, 7
    %v2418 = vsub.s32 1, %v2417
    %v2419 = vrot.slane %v2399, %v2418
    %v2676 = vunpack.c.l.b16 %v2128
    %v2677 = vunpack.c.h.b16 %v2128
    %v2678 = vunpack.c.l.b16 %v2129
    %v2679 = vunpack.c.h.b16 %v2129
    %v2680 = vunpack.c.l.b16 %v2130
    %v2681 = vunpack.c.h.b16 %v2130
    %v2682 = vunpack.c.l.b16 %v2131
    %v2683 = vunpack.c.h.b16 %v2131
    %v2684 = vunpack.c.l.b16 %v2132
    %v2685 = vunpack.c.h.b16 %v2132
    %v2686 = vunpack.c.l.b16 %v2133
    %v2687 = vunpack.c.h.b16 %v2133
    %v2688 = vunpack.c.l.b16 %v2134
    %v2689 = vunpack.c.h.b16 %v2134
    %v2690 = vunpack.c.l.b16 %v2135
    %v2691 = vunpack.c.h.b16 %v2135
    %v2692 = vunpack.c.l.b16 %v2136
    %v2693 = vunpack.c.h.b16 %v2136
    %v2694 = vunpack.c.l.b16 %v2137
    %v2695 = vunpack.c.h.b16 %v2137
    %v2696 = vunpack.c.l.b16 %v2138
    %v2697 = vunpack.c.h.b16 %v2138
    %v2698 = vunpack.c.l.b16 %v2139
    %v2699 = vunpack.c.h.b16 %v2139
    %v2700 = vunpack.c.l.b16 %v2140
    %v2701 = vunpack.c.h.b16 %v2140
    %v2702 = vunpack.c.l.b16 %v2141
    %v2703 = vunpack.c.h.b16 %v2141
    %v2704 = vunpack.c.l.b16 %v2142
    %v2705 = vunpack.c.h.b16 %v2142
    %v2706 = vunpack.c.l.b16 %v2143
    %v2707 = vunpack.c.h.b16 %v2143
    %v2708 = vunpack.c.l.b16 %v2144
    %v2709 = vunpack.c.h.b16 %v2144
    %v2710 = vunpack.c.l.b16 %v2145
    %v2711 = vunpack.c.h.b16 %v2145
    %v2712 = vunpack.c.l.b16 %v2146
    %v2713 = vunpack.c.h.b16 %v2146
    %v2714 = vunpack.c.l.b16 %v2147
    %v2715 = vunpack.c.h.b16 %v2147
    %v2716 = vunpack.c.l.b16 %v2148
    %v2717 = vunpack.c.h.b16 %v2148
    %v2718 = vunpack.c.l.b16 %v2149
    %v2719 = vunpack.c.h.b16 %v2149
    %v2720 = vunpack.c.l.b16 %v2150
    %v2721 = vunpack.c.h.b16 %v2150
    %v2722 = vunpack.c.l.b16 %v2151
    %v2723 = vunpack.c.h.b16 %v2151
    %v2724 = vunpack.c.l.b16 %v2152
    %v2725 = vunpack.c.h.b16 %v2152
    %v2726 = vunpack.c.l.b16 %v2153
    %v2727 = vunpack.c.h.b16 %v2153
    %v2728 = vunpack.c.l.b16 %v2154
    %v2729 = vunpack.c.h.b16 %v2154
    %v2730 = vunpack.c.l.b16 %v2155
    %v2731 = vunpack.c.h.b16 %v2155
    %v2732 = vunpack.c.l.b16 %v2156
    %v2733 = vunpack.c.h.b16 %v2156
    %v2734 = vunpack.c.l.b16 %v2157
    %v2735 = vunpack.c.h.b16 %v2157
    %v2736 = vunpack.c.l.b16 %v2158
    %v2737 = vunpack.c.h.b16 %v2158
    %v2738 = vunpack.c.l.b16 %v2159
    %v2739 = vunpack.c.h.b16 %v2159
    %v2740 = vunpack.c.l.b16 %v2160
    %v2741 = vunpack.c.h.b16 %v2160
    %v2742 = vunpack.c.l.b16 %v2161
    %v2743 = vunpack.c.h.b16 %v2161
    %v2744 = vunpack.c.l.b16 %v2162
    %v2745 = vunpack.c.h.b16 %v2162
    %v2746 = vunpack.c.l.b16 %v2163
    %v2747 = vunpack.c.h.b16 %v2163
    %v2748 = vunpack.c.l.b16 %v2164
    %v2749 = vunpack.c.h.b16 %v2164
    %v2750 = vunpack.c.l.b16 %v2165
    %v2751 = vunpack.c.h.b16 %v2165
    %v2752 = vunpack.c.l.b16 %v2166
    %v2753 = vunpack.c.h.b16 %v2166
    %v2754 = vunpack.c.l.b16 %v2167
    %v2755 = vunpack.c.h.b16 %v2167
    %v2756 = vunpack.c.l.b16 %v2168
    %v2757 = vunpack.c.h.b16 %v2168
    %v2758 = vunpack.c.l.b16 %v2169
    %v2759 = vunpack.c.h.b16 %v2169
    %v2760 = vunpack.c.l.b16 %v2170
    %v2761 = vunpack.c.h.b16 %v2170
    %v2762 = vunpack.c.l.b16 %v2171
    %v2763 = vunpack.c.h.b16 %v2171
    %v2764 = vunpack.c.l.b16 %v2172
    %v2765 = vunpack.c.h.b16 %v2172
    %v2766 = vunpack.c.l.b16 %v2173
    %v2767 = vunpack.c.h.b16 %v2173
    %v2768 = vunpack.c.l.b16 %v2174
    %v2769 = vunpack.c.h.b16 %v2174
    %v2770 = vunpack.c.l.b16 %v2175
    %v2771 = vunpack.c.h.b16 %v2175
    %v2772 = vunpack.c.l.b16 %v2176
    %v2773 = vunpack.c.h.b16 %v2176
    %v2774 = vunpack.c.l.b16 %v2177
    %v2775 = vunpack.c.h.b16 %v2177
    %v2776 = vunpack.c.l.b16 %v2178
    %v2777 = vunpack.c.h.b16 %v2178
    %v2778 = vunpack.c.l.b16 %v2179
    %v2779 = vunpack.c.h.b16 %v2179
    %v2780 = vunpack.c.l.b16 %v2180
    %v2781 = vunpack.c.h.b16 %v2180
    %v2782 = vunpack.c.l.b16 %v2181
    %v2783 = vunpack.c.h.b16 %v2181
    %v2784 = vunpack.c.l.b16 %v2182
    %v2785 = vunpack.c.h.b16 %v2182
    %v2786 = vunpack.c.l.b16 %v2183
    %v2787 = vunpack.c.h.b16 %v2183
    %v2788 = vunpack.c.l.b16 %v2184
    %v2789 = vunpack.c.h.b16 %v2184
    %v2790 = vunpack.c.l.b16 %v2185
    %v2791 = vunpack.c.h.b16 %v2185
    %v2792 = vunpack.c.l.b16 %v2186
    %v2793 = vunpack.c.h.b16 %v2186
    %v2794 = vunpack.c.l.b16 %v2187
    %v2795 = vunpack.c.h.b16 %v2187
    %v2796 = vunpack.c.l.b16 %v2188
    %v2797 = vunpack.c.h.b16 %v2188
    %v2798 = vunpack.c.l.b16 %v2189
    %v2799 = vunpack.c.h.b16 %v2189
    %v2800 = vunpack.c.l.b16 %v2190
    %v2801 = vunpack.c.h.b16 %v2190
    %v2802 = vunpack.c.l.b16 %v2191
    %v2803 = vunpack.c.h.b16 %v2191
    %v2804 = vunpack.c.l.b16 %v2192
    %v2805 = vunpack.c.h.b16 %v2192
    %v2806 = vunpack.c.l.b16 %v2193
    %v2807 = vunpack.c.h.b16 %v2193
    %v2808 = vunpack.c.l.b16 %v2194
    %v2809 = vunpack.c.h.b16 %v2194
    %v2810 = vunpack.c.l.b16 %v2195
    %v2811 = vunpack.c.h.b16 %v2195
    %v2812 = vunpack.c.l.b16 %v2196
    %v2813 = vunpack.c.h.b16 %v2196
    %v2814 = vunpack.c.l.b16 %v2197
    %v2815 = vunpack.c.h.b16 %v2197
    %v2816 = vunpack.c.l.b16 %v2198
    %v2817 = vunpack.c.h.b16 %v2198
    %v2818 = vunpack.c.l.b16 %v2199
    %v2819 = vunpack.c.h.b16 %v2199
    %v2820 = vunpack.c.l.b16 %v2200
    %v2821 = vunpack.c.h.b16 %v2200
    %v2822 = vunpack.c.l.b16 %v2201
    %v2823 = vunpack.c.h.b16 %v2201
    %v2824 = vunpack.c.l.b16 %v2202
    %v2825 = vunpack.c.h.b16 %v2202
    %v2826 = vunpack.c.l.b16 %v2203
    %v2827 = vunpack.c.h.b16 %v2203
    %v2828 = vunpack.c.l.b16 %v2204
    %v2829 = vunpack.c.h.b16 %v2204
    %v2830 = vunpack.c.l.b16 %v2205
    %v2831 = vunpack.c.h.b16 %v2205
    %v2832 = vunpack.c.l.b16 %v2206
    %v2833 = vunpack.c.h.b16 %v2206
    %v2834 = vunpack.c.l.b16 %v2207
    %v2835 = vunpack.c.h.b16 %v2207
    %v2836 = vunpack.c.l.b16 %v2208
    %v2837 = vunpack.c.h.b16 %v2208
    %v2838 = vunpack.c.l.b16 %v2209
    %v2839 = vunpack.c.h.b16 %v2209
    %v2840 = vunpack.c.l.b16 %v2210
    %v2841 = vunpack.c.h.b16 %v2210
    %v2842 = vunpack.c.l.b16 %v2211
    %v2843 = vunpack.c.h.b16 %v2211
    %v2844 = vunpack.c.l.b16 %v2212
    %v2845 = vunpack.c.h.b16 %v2212
    %v2846 = vunpack.c.l.b16 %v2213
    %v2847 = vunpack.c.h.b16 %v2213
    %v2848 = vunpack.c.l.b16 %v2214
    %v2849 = vunpack.c.h.b16 %v2214
    %v2850 = vunpack.c.l.b16 %v2215
    %v2851 = vunpack.c.h.b16 %v2215
    %v2852 = vunpack.c.l.b16 %v2216
    %v2853 = vunpack.c.h.b16 %v2216
    %v2854 = vunpack.c.l.b16 %v2217
    %v2855 = vunpack.c.h.b16 %v2217
    %v2856 = vunpack.c.l.b16 %v2218
    %v2857 = vunpack.c.h.b16 %v2218
    %v2858 = vunpack.c.l.b16 %v2219
    %v2859 = vunpack.c.h.b16 %v2219
    %v2860 = vunpack.c.l.b16 %v2220
    %v2861 = vunpack.c.h.b16 %v2220
    %v2862 = vunpack.c.l.b16 %v2221
    %v2863 = vunpack.c.h.b16 %v2221
    %v2864 = vunpack.c.l.b16 %v2222
    %v2865 = vunpack.c.h.b16 %v2222
    %v2866 = vunpack.c.l.b16 %v2223
    %v2867 = vunpack.c.h.b16 %v2223
    %v2868 = vunpack.c.l.b16 %v2224
    %v2869 = vunpack.c.h.b16 %v2224
    %v2870 = vunpack.c.l.b16 %v2225
    %v2871 = vunpack.c.h.b16 %v2225
    %v2872 = vunpack.c.l.b16 %v2226
    %v2873 = vunpack.c.h.b16 %v2226
    %v2874 = vunpack.c.l.b16 %v2227
    %v2875 = vunpack.c.h.b16 %v2227
    %v2876 = vunpack.c.l.b16 %v2228
    %v2877 = vunpack.c.h.b16 %v2228
    %v2878 = vunpack.c.l.b16 %v2229
    %v2879 = vunpack.c.h.b16 %v2229
    %v2880 = vunpack.c.l.b16 %v2230
    %v2881 = vunpack.c.h.b16 %v2230
    %v2882 = vunpack.c.l.b16 %v2231
    %v2883 = vunpack.c.h.b16 %v2231
    %v2884 = vunpack.c.l.b16 %v2232
    %v2885 = vunpack.c.h.b16 %v2232
    %v2886 = vunpack.c.l.b16 %v2233
    %v2887 = vunpack.c.h.b16 %v2233
    %v2888 = vunpack.c.l.b16 %v2234
    %v2889 = vunpack.c.h.b16 %v2234
    %v2890 = vunpack.c.l.b16 %v2235
    %v2891 = vunpack.c.h.b16 %v2235
    %v2892 = vunpack.c.l.b16 %v2236
    %v2893 = vunpack.c.h.b16 %v2236
    %v2894 = vunpack.c.l.b16 %v2237
    %v2895 = vunpack.c.h.b16 %v2237
    %v2896 = vunpack.c.l.b16 %v2238
    %v2897 = vunpack.c.h.b16 %v2238
    %v2898 = vunpack.c.l.b16 %v2239
    %v2899 = vunpack.c.h.b16 %v2239
    %v2900 = vunpack.c.l.b16 %v2240
    %v2901 = vunpack.c.h.b16 %v2240
    %v2902 = vunpack.c.l.b16 %v2241
    %v2903 = vunpack.c.h.b16 %v2241
    %v2904 = vunpack.c.l.b16 %v2242
    %v2905 = vunpack.c.h.b16 %v2242
    %v2906 = vunpack.c.l.b16 %v2243
    %v2907 = vunpack.c.h.b16 %v2243
    %v2908 = vunpack.c.l.b16 %v2244
    %v2909 = vunpack.c.h.b16 %v2244
    %v2910 = vunpack.c.l.b16 %v2245
    %v2911 = vunpack.c.h.b16 %v2245
    %v2912 = vunpack.c.l.b16 %v2246
    %v2913 = vunpack.c.h.b16 %v2246
    %v2914 = vunpack.c.l.b16 %v2247
    %v2915 = vunpack.c.h.b16 %v2247
    %v2916 = vunpack.c.l.b16 %v2248
    %v2917 = vunpack.c.h.b16 %v2248
    %v2918 = vunpack.c.l.b16 %v2249
    %v2919 = vunpack.c.h.b16 %v2249
    %v2920 = vunpack.c.l.b16 %v2250
    %v2921 = vunpack.c.h.b16 %v2250
    %v2922 = vunpack.c.l.b16 %v2251
    %v2923 = vunpack.c.h.b16 %v2251
    %v2924 = vunpack.c.l.b16 %v2252
    %v2925 = vunpack.c.h.b16 %v2252
    %v2926 = vunpack.c.l.b16 %v2253
    %v2927 = vunpack.c.h.b16 %v2253
    %v2928 = vunpack.c.l.b16 %v2254
    %v2929 = vunpack.c.h.b16 %v2254
    %v2930 = vunpack.c.l.b16 %v2255
    %v2931 = vunpack.c.h.b16 %v2255
    %v2932 = vunpack.c.l.b16 %v2256
    %v2933 = vunpack.c.h.b16 %v2256
    %v2934 = vunpack.c.l.b16 %v2257
    %v2935 = vunpack.c.h.b16 %v2257
    %v2936 = vunpack.c.l.b16 %v2258
    %v2937 = vunpack.c.h.b16 %v2258
    %v2938 = vunpack.c.l.b16 %v2259
    %v2939 = vunpack.c.h.b16 %v2259
    %v2940 = vunpack.c.l.b16 %v2260
    %v2941 = vunpack.c.h.b16 %v2260
    %v2942 = vunpack.c.l.b16 %v2261
    %v2943 = vunpack.c.h.b16 %v2261
    %v2944 = vunpack.c.l.b16 %v2262
    %v2945 = vunpack.c.h.b16 %v2262
    %v2946 = vunpack.c.l.b16 %v2263
    %v2947 = vunpack.c.h.b16 %v2263
    %v2948 = vunpack.c.l.b16 %v2264
    %v2949 = vunpack.c.h.b16 %v2264
    %v2950 = vunpack.c.l.b16 %v2265
    %v2951 = vunpack.c.h.b16 %v2265
    %v2952 = vunpack.c.l.b16 %v2266
    %v2953 = vunpack.c.h.b16 %v2266
    %v2954 = vunpack.c.l.b16 %v2267
    %v2955 = vunpack.c.h.b16 %v2267
    %v2956 = vunpack.c.l.b16 %v2268
    %v2957 = vunpack.c.h.b16 %v2268
    %v2958 = vunpack.c.l.b16 %v2269
    %v2959 = vunpack.c.h.b16 %v2269
    %v2960 = vunpack.c.l.b16 %v2270
    %v2961 = vunpack.c.h.b16 %v2270
    %v2962 = vunpack.c.l.b16 %v2271
    %v2963 = vunpack.c.h.b16 %v2271
    %v2964 = vunpack.c.l.b16 %v2272
    %v2965 = vunpack.c.h.b16 %v2272
    %v2966 = vunpack.c.l.b16 %v2273
    %v2967 = vunpack.c.h.b16 %v2273
    %v2968 = vunpack.c.l.b16 %v2274
    %v2969 = vunpack.c.h.b16 %v2274
    %v2970 = vunpack.c.l.b16 %v2275
    %v2971 = vunpack.c.h.b16 %v2275
    %v2972 = vunpack.c.l.b16 %v2276
    %v2973 = vunpack.c.h.b16 %v2276
    %v2974 = vunpack.c.l.b16 %v2277
    %v2975 = vunpack.c.h.b16 %v2277
    %v2976 = vunpack.c.l.b16 %v2278
    %v2977 = vunpack.c.h.b16 %v2278
    %v2978 = vunpack.c.l.b16 %v2279
    %v2979 = vunpack.c.h.b16 %v2279
    %v2980 = vunpack.c.l.b16 %v2280
    %v2981 = vunpack.c.h.b16 %v2280
    %v2982 = vunpack.c.l.b16 %v2281
    %v2983 = vunpack.c.h.b16 %v2281
    %v2984 = vunpack.c.l.b16 %v2282
    %v2985 = vunpack.c.h.b16 %v2282
    %v2986 = vunpack.c.l.b16 %v2283
    %v2987 = vunpack.c.h.b16 %v2283
    %v2988 = vunpack.c.l.b16 %v2284
    %v2989 = vunpack.c.h.b16 %v2284
    %v2990 = vunpack.c.l.b16 %v2285
    %v2991 = vunpack.c.h.b16 %v2285
    %v2992 = vunpack.c.l.b16 %v2286
    %v2993 = vunpack.c.h.b16 %v2286
    %v2994 = vunpack.c.l.b16 %v2287
    %v2995 = vunpack.c.h.b16 %v2287
    %v2996 = vunpack.c.l.b16 %v2288
    %v2997 = vunpack.c.h.b16 %v2288
    %v2998 = vunpack.c.l.b16 %v2289
    %v2999 = vunpack.c.h.b16 %v2289
    %v3000 = vunpack.c.l.b16 %v2290
    %v3001 = vunpack.c.h.b16 %v2290
    %v3002 = vunpack.c.l.b16 %v2291
    %v3003 = vunpack.c.h.b16 %v2291
    %v3004 = vunpack.c.l.b16 %v2292
    %v3005 = vunpack.c.h.b16 %v2292
    %v3006 = vunpack.c.l.b16 %v2293
    %v3007 = vunpack.c.h.b16 %v2293
    %v3008 = vunpack.c.l.b16 %v2294
    %v3009 = vunpack.c.h.b16 %v2294
    %v3010 = vunpack.c.l.b16 %v2295
    %v3011 = vunpack.c.h.b16 %v2295
    %v3012 = vunpack.c.l.b16 %v2296
    %v3013 = vunpack.c.h.b16 %v2296
    %v3014 = vunpack.c.l.b16 %v2297
    %v3015 = vunpack.c.h.b16 %v2297
    %v3016 = vunpack.c.l.b16 %v2298
    %v3017 = vunpack.c.h.b16 %v2298
    %v3018 = vunpack.c.l.b16 %v2299
    %v3019 = vunpack.c.h.b16 %v2299
    %v3020 = vunpack.c.l.b16 %v2300
    %v3021 = vunpack.c.h.b16 %v2300
    %v3022 = vunpack.c.l.b16 %v2301
    %v3023 = vunpack.c.h.b16 %v2301
    %v3024 = vunpack.c.l.b16 %v2302
    %v3025 = vunpack.c.h.b16 %v2302
    %v3026 = vunpack.c.l.b16 %v2303
    %v3027 = vunpack.c.h.b16 %v2303
    %v3028 = vunpack.c.l.b16 %v2304
    %v3029 = vunpack.c.h.b16 %v2304
    %v3030 = vunpack.c.l.b16 %v2305
    %v3031 = vunpack.c.h.b16 %v2305
    %v3032 = vunpack.c.l.b16 %v2306
    %v3033 = vunpack.c.h.b16 %v2306
    %v3034 = vunpack.c.l.b16 %v2307
    %v3035 = vunpack.c.h.b16 %v2307
    %v3036 = vunpack.c.l.b16 %v2308
    %v3037 = vunpack.c.h.b16 %v2308
    %v3038 = vunpack.c.l.b16 %v2309
    %v3039 = vunpack.c.h.b16 %v2309
    %v3040 = vunpack.c.l.b16 %v2310
    %v3041 = vunpack.c.h.b16 %v2310
    %v3042 = vunpack.c.l.b16 %v2311
    %v3043 = vunpack.c.h.b16 %v2311
    %v3044 = vunpack.c.l.b16 %v2312
    %v3045 = vunpack.c.h.b16 %v2312
    %v3046 = vunpack.c.l.b16 %v2313
    %v3047 = vunpack.c.h.b16 %v2313
    %v3048 = vunpack.c.l.b16 %v2314
    %v3049 = vunpack.c.h.b16 %v2314
    %v3050 = vunpack.c.l.b16 %v2315
    %v3051 = vunpack.c.h.b16 %v2315
    %v3052 = vunpack.c.l.b16 %v2316
    %v3053 = vunpack.c.h.b16 %v2316
    %v3054 = vunpack.c.l.b16 %v2317
    %v3055 = vunpack.c.h.b16 %v2317
    %v3056 = vunpack.c.l.b16 %v2318
    %v3057 = vunpack.c.h.b16 %v2318
    %v3058 = vunpack.c.l.b16 %v2319
    %v3059 = vunpack.c.h.b16 %v2319
    %v3060 = vunpack.c.l.b16 %v2320
    %v3061 = vunpack.c.h.b16 %v2320
    %v3062 = vunpack.c.l.b16 %v2321
    %v3063 = vunpack.c.h.b16 %v2321
    %v3064 = vunpack.c.l.b16 %v2322
    %v3065 = vunpack.c.h.b16 %v2322
    %v3066 = vunpack.c.l.b16 %v2323
    %v3067 = vunpack.c.h.b16 %v2323
    %v3068 = vunpack.c.l.b16 %v2324
    %v3069 = vunpack.c.h.b16 %v2324
    %v3070 = vunpack.c.l.b16 %v2325
    %v3071 = vunpack.c.h.b16 %v2325
    %v3072 = vunpack.c.l.b16 %v2326
    %v3073 = vunpack.c.h.b16 %v2326
    %v3074 = vunpack.c.l.b16 %v2327
    %v3075 = vunpack.c.h.b16 %v2327
    %v3076 = vunpack.c.l.b16 %v2328
    %v3077 = vunpack.c.h.b16 %v2328
    %v3078 = vunpack.c.l.b16 %v2329
    %v3079 = vunpack.c.h.b16 %v2329
    %v3080 = vunpack.c.l.b16 %v2330
    %v3081 = vunpack.c.h.b16 %v2330
    %v3082 = vunpack.c.l.b16 %v2331
    %v3083 = vunpack.c.h.b16 %v2331
    %v3084 = vunpack.c.l.b16 %v2332
    %v3085 = vunpack.c.h.b16 %v2332
    %v3086 = vunpack.c.l.b16 %v2333
    %v3087 = vunpack.c.h.b16 %v2333
    %v3088 = vunpack.c.l.b16 %v2334
    %v3089 = vunpack.c.h.b16 %v2334
    %v3090 = vunpack.c.l.b16 %v2335
    %v3091 = vunpack.c.h.b16 %v2335
    %v3092 = vunpack.c.l.b16 %v2336
    %v3093 = vunpack.c.h.b16 %v2336
    %v3094 = vunpack.c.l.b16 %v2337
    %v3095 = vunpack.c.h.b16 %v2337
    %v3096 = vunpack.c.l.b16 %v2338
    %v3097 = vunpack.c.h.b16 %v2338
    %v3098 = vunpack.c.l.b16 %v2339
    %v3099 = vunpack.c.h.b16 %v2339
    %v3100 = vunpack.c.l.b16 %v2340
    %v3101 = vunpack.c.h.b16 %v2340
    %v3102 = vunpack.c.l.b16 %v2341
    %v3103 = vunpack.c.h.b16 %v2341
    %v3104 = vunpack.c.l.b16 %v2342
    %v3105 = vunpack.c.h.b16 %v2342
    %v3106 = vunpack.c.l.b16 %v2343
    %v3107 = vunpack.c.h.b16 %v2343
    %v3108 = vunpack.c.l.b16 %v2344
    %v3109 = vunpack.c.h.b16 %v2344
    %v3110 = vunpack.c.l.b16 %v2345
    %v3111 = vunpack.c.h.b16 %v2345
    %v3112 = vunpack.c.l.b16 %v2346
    %v3113 = vunpack.c.h.b16 %v2346
    %v3114 = vunpack.c.l.b16 %v2347
    %v3115 = vunpack.c.h.b16 %v2347
    %v3116 = vunpack.c.l.b16 %v2348
    %v3117 = vunpack.c.h.b16 %v2348
    %v3118 = vunpack.c.l.b16 %v2349
    %v3119 = vunpack.c.h.b16 %v2349
    %v3120 = vunpack.c.l.b16 %v2350
    %v3121 = vunpack.c.h.b16 %v2350
    %v3122 = vunpack.c.l.b16 %v2351
    %v3123 = vunpack.c.h.b16 %v2351
    %v3124 = vunpack.c.l.b16 %v2352
    %v3125 = vunpack.c.h.b16 %v2352
    %v3126 = vunpack.c.l.b16 %v2353
    %v3127 = vunpack.c.h.b16 %v2353
    %v3128 = vunpack.c.l.b16 %v2354
    %v3129 = vunpack.c.h.b16 %v2354
    %v3130 = vunpack.c.l.b16 %v2355
    %v3131 = vunpack.c.h.b16 %v2355
    %v3132 = vunpack.c.l.b16 %v2356
    %v3133 = vunpack.c.h.b16 %v2356
    %v3134 = vunpack.c.l.b16 %v2357
    %v3135 = vunpack.c.h.b16 %v2357
    %v3136 = vunpack.c.l.b16 %v2358
    %v3137 = vunpack.c.h.b16 %v2358
    %v3138 = vunpack.c.l.b16 %v2359
    %v3139 = vunpack.c.h.b16 %v2359
    %v3140 = vunpack.c.l.b16 %v2360
    %v3141 = vunpack.c.h.b16 %v2360
    %v3142 = vunpack.c.l.b16 %v2361
    %v3143 = vunpack.c.h.b16 %v2361
    %v3144 = vunpack.c.l.b16 %v2362
    %v3145 = vunpack.c.h.b16 %v2362
    %v3146 = vunpack.c.l.b16 %v2363
    %v3147 = vunpack.c.h.b16 %v2363
    %v3148 = vunpack.c.l.b16 %v2364
    %v3149 = vunpack.c.h.b16 %v2364
    %v3150 = vunpack.c.l.b16 %v2365
    %v3151 = vunpack.c.h.b16 %v2365
    %v3152 = vunpack.c.l.b16 %v2366
    %v3153 = vunpack.c.h.b16 %v2366
    %v3154 = vunpack.c.l.b16 %v2367
    %v3155 = vunpack.c.h.b16 %v2367
    %v3156 = vunpack.c.l.b16 %v2368
    %v3157 = vunpack.c.h.b16 %v2368
    %v3158 = vunpack.c.l.b16 %v2369
    %v3159 = vunpack.c.h.b16 %v2369
    %v3160 = vunpack.c.l.b16 %v2370
    %v3161 = vunpack.c.h.b16 %v2370
    %v3162 = vunpack.c.l.b16 %v2371
    %v3163 = vunpack.c.h.b16 %v2371
    %v3164 = vunpack.c.l.b16 %v2372
    %v3165 = vunpack.c.h.b16 %v2372
    %v3166 = vunpack.c.l.b16 %v2373
    %v3167 = vunpack.c.h.b16 %v2373
    %v3168 = vunpack.c.l.b16 %v2374
    %v3169 = vunpack.c.h.b16 %v2374
    %v3170 = vunpack.c.l.b16 %v2375
    %v3171 = vunpack.c.h.b16 %v2375
    %v3172 = vunpack.c.l.b16 %v2376
    %v3173 = vunpack.c.h.b16 %v2376
    %v3174 = vunpack.c.l.b16 %v2377
    %v3175 = vunpack.c.h.b16 %v2377
    %v3176 = vunpack.c.l.b16 %v2378
    %v3177 = vunpack.c.h.b16 %v2378
    %v3178 = vunpack.c.l.b16 %v2379
    %v3179 = vunpack.c.h.b16 %v2379
    %v3180 = vunpack.c.l.b16 %v2380
    %v3181 = vunpack.c.h.b16 %v2380
    %v3182 = vunpack.c.l.b16 %v2381
    %v3183 = vunpack.c.h.b16 %v2381
    %v3184 = vunpack.c.l.b16 %v2382
    %v3185 = vunpack.c.h.b16 %v2382
    %v3186 = vunpack.c.l.b16 %v2383
    %v3187 = vunpack.c.h.b16 %v2383
    %v3188 = vpack.c.b16 %v2680, %v2676
    %v3189 = vpack.c.b16 %v2681, %v2677
    %v3190 = vpack.c.b16 %v2682, %v2678
    %v3191 = vpack.c.b16 %v2683, %v2679
    %v3192 = vpack.c.b16 %v2688, %v2684
    %v3193 = vpack.c.b16 %v2689, %v2685
    %v3194 = vpack.c.b16 %v2690, %v2686
    %v3195 = vpack.c.b16 %v2691, %v2687
    %v3196 = vpack.c.b16 %v2696, %v2692
    %v3197 = vpack.c.b16 %v2697, %v2693
    %v3198 = vpack.c.b16 %v2698, %v2694
    %v3199 = vpack.c.b16 %v2699, %v2695
    %v3200 = vpack.c.b16 %v2704, %v2700
    %v3201 = vpack.c.b16 %v2705, %v2701
    %v3202 = vpack.c.b16 %v2706, %v2702
    %v3203 = vpack.c.b16 %v2707, %v2703
    %v3204 = vpack.c.b16 %v2712, %v2708
    %v3205 = vpack.c.b16 %v2713, %v2709
    %v3206 = vpack.c.b16 %v2714, %v2710
    %v3207 = vpack.c.b16 %v2715, %v2711
    %v3208 = vpack.c.b16 %v2720, %v2716
    %v3209 = vpack.c.b16 %v2721, %v2717
    %v3210 = vpack.c.b16 %v2722, %v2718
    %v3211 = vpack.c.b16 %v2723, %v2719
    %v3212 = vpack.c.b16 %v2728, %v2724
    %v3213 = vpack.c.b16 %v2729, %v2725
    %v3214 = vpack.c.b16 %v2730, %v2726
    %v3215 = vpack.c.b16 %v2731, %v2727
    %v3216 = vpack.c.b16 %v2736, %v2732
    %v3217 = vpack.c.b16 %v2737, %v2733
    %v3218 = vpack.c.b16 %v2738, %v2734
    %v3219 = vpack.c.b16 %v2739, %v2735
    %v3220 = vpack.c.b16 %v2744, %v2740
    %v3221 = vpack.c.b16 %v2745, %v2741
    %v3222 = vpack.c.b16 %v2746, %v2742
    %v3223 = vpack.c.b16 %v2747, %v2743
    %v3224 = vpack.c.b16 %v2752, %v2748
    %v3225 = vpack.c.b16 %v2753, %v2749
    %v3226 = vpack.c.b16 %v2754, %v2750
    %v3227 = vpack.c.b16 %v2755, %v2751
    %v3228 = vpack.c.b16 %v2760, %v2756
    %v3229 = vpack.c.b16 %v2761, %v2757
    %v3230 = vpack.c.b16 %v2762, %v2758
    %v3231 = vpack.c.b16 %v2763, %v2759
    %v3232 = vpack.c.b16 %v2768, %v2764
    %v3233 = vpack.c.b16 %v2769, %v2765
    %v3234 = vpack.c.b16 %v2770, %v2766
    %v3235 = vpack.c.b16 %v2771, %v2767
    %v3236 = vpack.c.b16 %v2776, %v2772
    %v3237 = vpack.c.b16 %v2777, %v2773
    %v3238 = vpack.c.b16 %v2778, %v2774
    %v3239 = vpack.c.b16 %v2779, %v2775
    %v3240 = vpack.c.b16 %v2784, %v2780
    %v3241 = vpack.c.b16 %v2785, %v2781
    %v3242 = vpack.c.b16 %v2786, %v2782
    %v3243 = vpack.c.b16 %v2787, %v2783
    %v3244 = vpack.c.b16 %v2792, %v2788
    %v3245 = vpack.c.b16 %v2793, %v2789
    %v3246 = vpack.c.b16 %v2794, %v2790
    %v3247 = vpack.c.b16 %v2795, %v2791
    %v3248 = vpack.c.b16 %v2800, %v2796
    %v3249 = vpack.c.b16 %v2801, %v2797
    %v3250 = vpack.c.b16 %v2802, %v2798
    %v3251 = vpack.c.b16 %v2803, %v2799
    %v3252 = vpack.c.b16 %v2808, %v2804
    %v3253 = vpack.c.b16 %v2809, %v2805
    %v3254 = vpack.c.b16 %v2810, %v2806
    %v3255 = vpack.c.b16 %v2811, %v2807
    %v3256 = vpack.c.b16 %v2816, %v2812
    %v3257 = vpack.c.b16 %v2817, %v2813
    %v3258 = vpack.c.b16 %v2818, %v2814
    %v3259 = vpack.c.b16 %v2819, %v2815
    %v3260 = vpack.c.b16 %v2824, %v2820
    %v3261 = vpack.c.b16 %v2825, %v2821
    %v3262 = vpack.c.b16 %v2826, %v2822
    %v3263 = vpack.c.b16 %v2827, %v2823
    %v3264 = vpack.c.b16 %v2832, %v2828
    %v3265 = vpack.c.b16 %v2833, %v2829
    %v3266 = vpack.c.b16 %v2834, %v2830
    %v3267 = vpack.c.b16 %v2835, %v2831
    %v3268 = vpack.c.b16 %v2840, %v2836
    %v3269 = vpack.c.b16 %v2841, %v2837
    %v3270 = vpack.c.b16 %v2842, %v2838
    %v3271 = vpack.c.b16 %v2843, %v2839
    %v3272 = vpack.c.b16 %v2848, %v2844
    %v3273 = vpack.c.b16 %v2849, %v2845
    %v3274 = vpack.c.b16 %v2850, %v2846
    %v3275 = vpack.c.b16 %v2851, %v2847
    %v3276 = vpack.c.b16 %v2856, %v2852
    %v3277 = vpack.c.b16 %v2857, %v2853
    %v3278 = vpack.c.b16 %v2858, %v2854
    %v3279 = vpack.c.b16 %v2859, %v2855
    %v3280 = vpack.c.b16 %v2864, %v2860
    %v3281 = vpack.c.b16 %v2865, %v2861
    %v3282 = vpack.c.b16 %v2866, %v2862
    %v3283 = vpack.c.b16 %v2867, %v2863
    %v3284 = vpack.c.b16 %v2872, %v2868
    %v3285 = vpack.c.b16 %v2873, %v2869
    %v3286 = vpack.c.b16 %v2874, %v2870
    %v3287 = vpack.c.b16 %v2875, %v2871
    %v3288 = vpack.c.b16 %v2880, %v2876
    %v3289 = vpack.c.b16 %v2881, %v2877
    %v3290 = vpack.c.b16 %v2882, %v2878
    %v3291 = vpack.c.b16 %v2883, %v2879
    %v3292 = vpack.c.b16 %v2888, %v2884
    %v3293 = vpack.c.b16 %v2889, %v2885
    %v3294 = vpack.c.b16 %v2890, %v2886
    %v3295 = vpack.c.b16 %v2891, %v2887
    %v3296 = vpack.c.b16 %v2896, %v2892
    %v3297 = vpack.c.b16 %v2897, %v2893
    %v3298 = vpack.c.b16 %v2898, %v2894
    %v3299 = vpack.c.b16 %v2899, %v2895
    %v3300 = vpack.c.b16 %v2904, %v2900
    %v3301 = vpack.c.b16 %v2905, %v2901
    %v3302 = vpack.c.b16 %v2906, %v2902
    %v3303 = vpack.c.b16 %v2907, %v2903
    %v3304 = vpack.c.b16 %v2912, %v2908
    %v3305 = vpack.c.b16 %v2913, %v2909
    %v3306 = vpack.c.b16 %v2914, %v2910
    %v3307 = vpack.c.b16 %v2915, %v2911
    %v3308 = vpack.c.b16 %v2920, %v2916
    %v3309 = vpack.c.b16 %v2921, %v2917
    %v3310 = vpack.c.b16 %v2922, %v2918
    %v3311 = vpack.c.b16 %v2923, %v2919
    %v3312 = vpack.c.b16 %v2928, %v2924
    %v3313 = vpack.c.b16 %v2929, %v2925
    %v3314 = vpack.c.b16 %v2930, %v2926
    %v3315 = vpack.c.b16 %v2931, %v2927
    %v3316 = vpack.c.b16 %v2936, %v2932
    %v3317 = vpack.c.b16 %v2937, %v2933
    %v3318 = vpack.c.b16 %v2938, %v2934
    %v3319 = vpack.c.b16 %v2939, %v2935
    %v3320 = vpack.c.b16 %v2944, %v2940
    %v3321 = vpack.c.b16 %v2945, %v2941
    %v3322 = vpack.c.b16 %v2946, %v2942
    %v3323 = vpack.c.b16 %v2947, %v2943
    %v3324 = vpack.c.b16 %v2952, %v2948
    %v3325 = vpack.c.b16 %v2953, %v2949
    %v3326 = vpack.c.b16 %v2954, %v2950
    %v3327 = vpack.c.b16 %v2955, %v2951
    %v3328 = vpack.c.b16 %v2960, %v2956
    %v3329 = vpack.c.b16 %v2961, %v2957
    %v3330 = vpack.c.b16 %v2962, %v2958
    %v3331 = vpack.c.b16 %v2963, %v2959
    %v3332 = vpack.c.b16 %v2968, %v2964
    %v3333 = vpack.c.b16 %v2969, %v2965
    %v3334 = vpack.c.b16 %v2970, %v2966
    %v3335 = vpack.c.b16 %v2971, %v2967
    %v3336 = vpack.c.b16 %v2976, %v2972
    %v3337 = vpack.c.b16 %v2977, %v2973
    %v3338 = vpack.c.b16 %v2978, %v2974
    %v3339 = vpack.c.b16 %v2979, %v2975
    %v3340 = vpack.c.b16 %v2984, %v2980
    %v3341 = vpack.c.b16 %v2985, %v2981
    %v3342 = vpack.c.b16 %v2986, %v2982
    %v3343 = vpack.c.b16 %v2987, %v2983
    %v3344 = vpack.c.b16 %v2992, %v2988
    %v3345 = vpack.c.b16 %v2993, %v2989
    %v3346 = vpack.c.b16 %v2994, %v2990
    %v3347 = vpack.c.b16 %v2995, %v2991
    %v3348 = vpack.c.b16 %v3000, %v2996
    %v3349 = vpack.c.b16 %v3001, %v2997
    %v3350 = vpack.c.b16 %v3002, %v2998
    %v3351 = vpack.c.b16 %v3003, %v2999
    %v3352 = vpack.c.b16 %v3008, %v3004
    %v3353 = vpack.c.b16 %v3009, %v3005
    %v3354 = vpack.c.b16 %v3010, %v3006
    %v3355 = vpack.c.b16 %v3011, %v3007
    %v3356 = vpack.c.b16 %v3016, %v3012
    %v3357 = vpack.c.b16 %v3017, %v3013
    %v3358 = vpack.c.b16 %v3018, %v3014
    %v3359 = vpack.c.b16 %v3019, %v3015
    %v3360 = vpack.c.b16 %v3024, %v3020
    %v3361 = vpack.c.b16 %v3025, %v3021
    %v3362 = vpack.c.b16 %v3026, %v3022
    %v3363 = vpack.c.b16 %v3027, %v3023
    %v3364 = vpack.c.b16 %v3032, %v3028
    %v3365 = vpack.c.b16 %v3033, %v3029
    %v3366 = vpack.c.b16 %v3034, %v3030
    %v3367 = vpack.c.b16 %v3035, %v3031
    %v3368 = vpack.c.b16 %v3040, %v3036
    %v3369 = vpack.c.b16 %v3041, %v3037
    %v3370 = vpack.c.b16 %v3042, %v3038
    %v3371 = vpack.c.b16 %v3043, %v3039
    %v3372 = vpack.c.b16 %v3048, %v3044
    %v3373 = vpack.c.b16 %v3049, %v3045
    %v3374 = vpack.c.b16 %v3050, %v3046
    %v3375 = vpack.c.b16 %v3051, %v3047
    %v3376 = vpack.c.b16 %v3056, %v3052
    %v3377 = vpack.c.b16 %v3057, %v3053
    %v3378 = vpack.c.b16 %v3058, %v3054
    %v3379 = vpack.c.b16 %v3059, %v3055
    %v3380 = vpack.c.b16 %v3064, %v3060
    %v3381 = vpack.c.b16 %v3065, %v3061
    %v3382 = vpack.c.b16 %v3066, %v3062
    %v3383 = vpack.c.b16 %v3067, %v3063
    %v3384 = vpack.c.b16 %v3072, %v3068
    %v3385 = vpack.c.b16 %v3073, %v3069
    %v3386 = vpack.c.b16 %v3074, %v3070
    %v3387 = vpack.c.b16 %v3075, %v3071
    %v3388 = vpack.c.b16 %v3080, %v3076
    %v3389 = vpack.c.b16 %v3081, %v3077
    %v3390 = vpack.c.b16 %v3082, %v3078
    %v3391 = vpack.c.b16 %v3083, %v3079
    %v3392 = vpack.c.b16 %v3088, %v3084
    %v3393 = vpack.c.b16 %v3089, %v3085
    %v3394 = vpack.c.b16 %v3090, %v3086
    %v3395 = vpack.c.b16 %v3091, %v3087
    %v3396 = vpack.c.b16 %v3096, %v3092
    %v3397 = vpack.c.b16 %v3097, %v3093
    %v3398 = vpack.c.b16 %v3098, %v3094
    %v3399 = vpack.c.b16 %v3099, %v3095
    %v3400 = vpack.c.b16 %v3104, %v3100
    %v3401 = vpack.c.b16 %v3105, %v3101
    %v3402 = vpack.c.b16 %v3106, %v3102
    %v3403 = vpack.c.b16 %v3107, %v3103
    %v3404 = vpack.c.b16 %v3112, %v3108
    %v3405 = vpack.c.b16 %v3113, %v3109
    %v3406 = vpack.c.b16 %v3114, %v3110
    %v3407 = vpack.c.b16 %v3115, %v3111
    %v3408 = vpack.c.b16 %v3120, %v3116
    %v3409 = vpack.c.b16 %v3121, %v3117
    %v3410 = vpack.c.b16 %v3122, %v3118
    %v3411 = vpack.c.b16 %v3123, %v3119
    %v3412 = vpack.c.b16 %v3128, %v3124
    %v3413 = vpack.c.b16 %v3129, %v3125
    %v3414 = vpack.c.b16 %v3130, %v3126
    %v3415 = vpack.c.b16 %v3131, %v3127
    %v3416 = vpack.c.b16 %v3136, %v3132
    %v3417 = vpack.c.b16 %v3137, %v3133
    %v3418 = vpack.c.b16 %v3138, %v3134
    %v3419 = vpack.c.b16 %v3139, %v3135
    %v3420 = vpack.c.b16 %v3144, %v3140
    %v3421 = vpack.c.b16 %v3145, %v3141
    %v3422 = vpack.c.b16 %v3146, %v3142
    %v3423 = vpack.c.b16 %v3147, %v3143
    %v3424 = vpack.c.b16 %v3152, %v3148
    %v3425 = vpack.c.b16 %v3153, %v3149
    %v3426 = vpack.c.b16 %v3154, %v3150
    %v3427 = vpack.c.b16 %v3155, %v3151
    %v3428 = vpack.c.b16 %v3160, %v3156
    %v3429 = vpack.c.b16 %v3161, %v3157
    %v3430 = vpack.c.b16 %v3162, %v3158
    %v3431 = vpack.c.b16 %v3163, %v3159
    %v3432 = vpack.c.b16 %v3168, %v3164
    %v3433 = vpack.c.b16 %v3169, %v3165
    %v3434 = vpack.c.b16 %v3170, %v3166
    %v3435 = vpack.c.b16 %v3171, %v3167
    %v3436 = vpack.c.b16 %v3176, %v3172
    %v3437 = vpack.c.b16 %v3177, %v3173
    %v3438 = vpack.c.b16 %v3178, %v3174
    %v3439 = vpack.c.b16 %v3179, %v3175
    %v3440 = vpack.c.b16 %v3184, %v3180
    %v3441 = vpack.c.b16 %v3185, %v3181
    %v3442 = vpack.c.b16 %v3186, %v3182
    %v3443 = vpack.c.b16 %v3187, %v3183
    %3700 = vmatprep.subr.bf16.mxu0 %v3217
    %3701 = vmatpush1.bf16.msra.mxu0 %v3216
    %3702 = vmatprep.subr.bf16.mxu0 %v3213
    %3703 = vmatpush1.bf16.msra.mxu0 %v3212
    %3704 = vmatprep.subr.bf16.mxu0 %v3209
    %3705 = vmatpush1.bf16.msra.mxu0 %v3208
    %3706 = vmatprep.subr.bf16.mxu0 %v3205
    %3707 = vmatpush1.bf16.msra.mxu0 %v3204
    %3708 = vmatprep.subr.bf16.mxu0 %v3201
    %3709 = vmatpush1.bf16.msra.mxu0 %v3200
    %3710 = vmatprep.subr.bf16.mxu0 %v3197
    %3711 = vmatpush1.bf16.msra.mxu0 %v3196
    %3712 = vmatprep.subr.bf16.mxu0 %v3193
    %3713 = vmatpush1.bf16.msra.mxu0 %v3192
    %3714 = vmatprep.subr.bf16.mxu0 %v3189
    %3715 = vmatpush1.bf16.msra.mxu0 %v3188
    %3716 = vmatprep.subr.bf16.mxu0 %v3249
    %3717 = vmatpush2.bf16.msra.mxu0 %v3248
    %3718 = vmatprep.subr.bf16.mxu0 %v3245
    %3719 = vmatpush2.bf16.msra.mxu0 %v3244
    %3720 = vmatprep.subr.bf16.mxu0 %v3241
    %3721 = vmatpush2.bf16.msra.mxu0 %v3240
    %3722 = vmatprep.subr.bf16.mxu0 %v3237
    %3723 = vmatpush2.bf16.msra.mxu0 %v3236
    %3724 = vmatprep.subr.bf16.mxu0 %v3233
    %3725 = vmatpush2.bf16.msra.mxu0 %v3232
    %3726 = vmatprep.subr.bf16.mxu0 %v3229
    %3727 = vmatpush2.bf16.msra.mxu0 %v3228
    %3728 = vmatprep.subr.bf16.mxu0 %v3225
    %3729 = vmatpush2.bf16.msra.mxu0 %v3224
    %3730 = vmatprep.subr.bf16.mxu0 %v3221
    %3731 = vmatpush2.bf16.msra.mxu0 %v3220
    %3732 = vmatprep.mubr.bf16.mxu0 %v2121
    %3733 = vmatmul.mubr.bf16.gmra.mxu0 %v2120
    %v3734 = vpop.f32.mrf.mxu0
    %v3735 = vadd.f32 %v2407, %v3734
    %v3736 = vpop.f32.mrf.mxu0
    %v3737 = vadd.f32 %v2411, %v3736
    %v3738 = vpop.f32.mrf.mxu0
    %v3739 = vadd.f32 %v2407, %v3738
    %v3740 = vpop.f32.mrf.mxu0
    %v3741 = vadd.f32 %v2411, %v3740
    %3742 = vdwg.mxu0
    %3743 = vmatprep.subr.bf16.mxu0 %v3281
    %3744 = vmatpush1.bf16.msra.mxu0 %v3280
    %3745 = vmatprep.subr.bf16.mxu0 %v3277
    %3746 = vmatpush1.bf16.msra.mxu0 %v3276
    %3747 = vmatprep.subr.bf16.mxu0 %v3273
    %3748 = vmatpush1.bf16.msra.mxu0 %v3272
    %3749 = vmatprep.subr.bf16.mxu0 %v3269
    %3750 = vmatpush1.bf16.msra.mxu0 %v3268
    %3751 = vmatprep.subr.bf16.mxu0 %v3265
    %3752 = vmatpush1.bf16.msra.mxu0 %v3264
    %3753 = vmatprep.subr.bf16.mxu0 %v3261
    %3754 = vmatpush1.bf16.msra.mxu0 %v3260
    %3755 = vmatprep.subr.bf16.mxu0 %v3257
    %3756 = vmatpush1.bf16.msra.mxu0 %v3256
    %3757 = vmatprep.subr.bf16.mxu0 %v3253
    %3758 = vmatpush1.bf16.msra.mxu0 %v3252
    %3759 = vmatprep.subr.bf16.mxu0 %v3313
    %3760 = vmatpush2.bf16.msra.mxu0 %v3312
    %3761 = vmatprep.subr.bf16.mxu0 %v3309
    %3762 = vmatpush2.bf16.msra.mxu0 %v3308
    %3763 = vmatprep.subr.bf16.mxu0 %v3305
    %3764 = vmatpush2.bf16.msra.mxu0 %v3304
    %3765 = vmatprep.subr.bf16.mxu0 %v3301
    %3766 = vmatpush2.bf16.msra.mxu0 %v3300
    %3767 = vmatprep.subr.bf16.mxu0 %v3297
    %3768 = vmatpush2.bf16.msra.mxu0 %v3296
    %3769 = vmatprep.subr.bf16.mxu0 %v3293
    %3770 = vmatpush2.bf16.msra.mxu0 %v3292
    %3771 = vmatprep.subr.bf16.mxu0 %v3289
    %3772 = vmatpush2.bf16.msra.mxu0 %v3288
    %3773 = vmatprep.subr.bf16.mxu0 %v3285
    %3774 = vmatpush2.bf16.msra.mxu0 %v3284
    %3775 = vmatprep.mubr.bf16.mxu0 %v2123
    %3776 = vmatmul.mubr.bf16.gmra.mxu0 %v2122
    %v3777 = vpop.f32.mrf.mxu0
    %v3778 = vadd.f32 %v3735, %v3777
    %v3779 = vpop.f32.mrf.mxu0
    %v3780 = vadd.f32 %v3737, %v3779
    %v3781 = vpop.f32.mrf.mxu0
    %v3782 = vadd.f32 %v3739, %v3781
    %v3783 = vpop.f32.mrf.mxu0
    %v3784 = vadd.f32 %v3741, %v3783
    %3785 = vdwg.mxu0
    %3786 = vmatprep.subr.bf16.mxu0 %v3345
    %3787 = vmatpush1.bf16.msra.mxu0 %v3344
    %3788 = vmatprep.subr.bf16.mxu0 %v3341
    %3789 = vmatpush1.bf16.msra.mxu0 %v3340
    %3790 = vmatprep.subr.bf16.mxu0 %v3337
    %3791 = vmatpush1.bf16.msra.mxu0 %v3336
    %3792 = vmatprep.subr.bf16.mxu0 %v3333
    %3793 = vmatpush1.bf16.msra.mxu0 %v3332
    %3794 = vmatprep.subr.bf16.mxu0 %v3329
    %3795 = vmatpush1.bf16.msra.mxu0 %v3328
    %3796 = vmatprep.subr.bf16.mxu0 %v3325
    %3797 = vmatpush1.bf16.msra.mxu0 %v3324
    %3798 = vmatprep.subr.bf16.mxu0 %v3321
    %3799 = vmatpush1.bf16.msra.mxu0 %v3320
    %3800 = vmatprep.subr.bf16.mxu0 %v3317
    %3801 = vmatpush1.bf16.msra.mxu0 %v3316
    %3802 = vmatprep.subr.bf16.mxu0 %v3377
    %3803 = vmatpush2.bf16.msra.mxu0 %v3376
    %3804 = vmatprep.subr.bf16.mxu0 %v3373
    %3805 = vmatpush2.bf16.msra.mxu0 %v3372
    %3806 = vmatprep.subr.bf16.mxu0 %v3369
    %3807 = vmatpush2.bf16.msra.mxu0 %v3368
    %3808 = vmatprep.subr.bf16.mxu0 %v3365
    %3809 = vmatpush2.bf16.msra.mxu0 %v3364
    %3810 = vmatprep.subr.bf16.mxu0 %v3361
    %3811 = vmatpush2.bf16.msra.mxu0 %v3360
    %3812 = vmatprep.subr.bf16.mxu0 %v3357
    %3813 = vmatpush2.bf16.msra.mxu0 %v3356
    %3814 = vmatprep.subr.bf16.mxu0 %v3353
    %3815 = vmatpush2.bf16.msra.mxu0 %v3352
    %3816 = vmatprep.subr.bf16.mxu0 %v3349
    %3817 = vmatpush2.bf16.msra.mxu0 %v3348
    %3818 = vmatprep.mubr.bf16.mxu0 %v2125
    %3819 = vmatmul.mubr.bf16.gmra.mxu0 %v2124
    %v3820 = vpop.f32.mrf.mxu0
    %v3821 = vadd.f32 %v3778, %v3820
    %v3822 = vpop.f32.mrf.mxu0
    %v3823 = vadd.f32 %v3780, %v3822
    %v3824 = vpop.f32.mrf.mxu0
    %v3825 = vadd.f32 %v3782, %v3824
    %v3826 = vpop.f32.mrf.mxu0
    %v3827 = vadd.f32 %v3784, %v3826
    %3828 = vdwg.mxu0
    %3829 = vmatprep.subr.bf16.mxu0 %v3409
    %3830 = vmatpush1.bf16.msra.mxu0 %v3408
    %3831 = vmatprep.subr.bf16.mxu0 %v3405
    %3832 = vmatpush1.bf16.msra.mxu0 %v3404
    %3833 = vmatprep.subr.bf16.mxu0 %v3401
    %3834 = vmatpush1.bf16.msra.mxu0 %v3400
    %3835 = vmatprep.subr.bf16.mxu0 %v3397
    %3836 = vmatpush1.bf16.msra.mxu0 %v3396
    %3837 = vmatprep.subr.bf16.mxu0 %v3393
    %3838 = vmatpush1.bf16.msra.mxu0 %v3392
    %3839 = vmatprep.subr.bf16.mxu0 %v3389
    %3840 = vmatpush1.bf16.msra.mxu0 %v3388
    %3841 = vmatprep.subr.bf16.mxu0 %v3385
    %3842 = vmatpush1.bf16.msra.mxu0 %v3384
    %3843 = vmatprep.subr.bf16.mxu0 %v3381
    %3844 = vmatpush1.bf16.msra.mxu0 %v3380
    %3845 = vmatprep.subr.bf16.mxu0 %v3441
    %3846 = vmatpush2.bf16.msra.mxu0 %v3440
    %3847 = vmatprep.subr.bf16.mxu0 %v3437
    %3848 = vmatpush2.bf16.msra.mxu0 %v3436
    %3849 = vmatprep.subr.bf16.mxu0 %v3433
    %3850 = vmatpush2.bf16.msra.mxu0 %v3432
    %3851 = vmatprep.subr.bf16.mxu0 %v3429
    %3852 = vmatpush2.bf16.msra.mxu0 %v3428
    %3853 = vmatprep.subr.bf16.mxu0 %v3425
    %3854 = vmatpush2.bf16.msra.mxu0 %v3424
    %3855 = vmatprep.subr.bf16.mxu0 %v3421
    %3856 = vmatpush2.bf16.msra.mxu0 %v3420
    %3857 = vmatprep.subr.bf16.mxu0 %v3417
    %3858 = vmatpush2.bf16.msra.mxu0 %v3416
    %3859 = vmatprep.subr.bf16.mxu0 %v3413
    %3860 = vmatpush2.bf16.msra.mxu0 %v3412
    %3861 = vmatprep.mubr.bf16.mxu0 %v2127
    %3862 = vmatmul.mubr.bf16.gmra.mxu0 %v2126
    %v3863 = vpop.f32.mrf.mxu0
    %v3864 = vadd.f32 %v3821, %v3863
    %v3865 = vpop.f32.mrf.mxu0
    %v3866 = vadd.f32 %v3823, %v3865
    %v3867 = vpop.f32.mrf.mxu0
    %v3868 = vadd.f32 %v3825, %v3867
    %v3869 = vpop.f32.mrf.mxu0
    %v3870 = vadd.f32 %v3827, %v3869
    %3871 = vdwg.mxu0
    %3872 = vmatprep.subr.bf16.mxu0 %v3219
    %3873 = vmatpush1.bf16.msra.mxu0 %v3218
    %3874 = vmatprep.subr.bf16.mxu0 %v3215
    %3875 = vmatpush1.bf16.msra.mxu0 %v3214
    %3876 = vmatprep.subr.bf16.mxu0 %v3211
    %3877 = vmatpush1.bf16.msra.mxu0 %v3210
    %3878 = vmatprep.subr.bf16.mxu0 %v3207
    %3879 = vmatpush1.bf16.msra.mxu0 %v3206
    %3880 = vmatprep.subr.bf16.mxu0 %v3203
    %3881 = vmatpush1.bf16.msra.mxu0 %v3202
    %3882 = vmatprep.subr.bf16.mxu0 %v3199
    %3883 = vmatpush1.bf16.msra.mxu0 %v3198
    %3884 = vmatprep.subr.bf16.mxu0 %v3195
    %3885 = vmatpush1.bf16.msra.mxu0 %v3194
    %3886 = vmatprep.subr.bf16.mxu0 %v3191
    %3887 = vmatpush1.bf16.msra.mxu0 %v3190
    %3888 = vmatprep.subr.bf16.mxu0 %v3251
    %3889 = vmatpush2.bf16.msra.mxu0 %v3250
    %3890 = vmatprep.subr.bf16.mxu0 %v3247
    %3891 = vmatpush2.bf16.msra.mxu0 %v3246
    %3892 = vmatprep.subr.bf16.mxu0 %v3243
    %3893 = vmatpush2.bf16.msra.mxu0 %v3242
    %3894 = vmatprep.subr.bf16.mxu0 %v3239
    %3895 = vmatpush2.bf16.msra.mxu0 %v3238
    %3896 = vmatprep.subr.bf16.mxu0 %v3235
    %3897 = vmatpush2.bf16.msra.mxu0 %v3234
    %3898 = vmatprep.subr.bf16.mxu0 %v3231
    %3899 = vmatpush2.bf16.msra.mxu0 %v3230
    %3900 = vmatprep.subr.bf16.mxu0 %v3227
    %3901 = vmatpush2.bf16.msra.mxu0 %v3226
    %3902 = vmatprep.subr.bf16.mxu0 %v3223
    %3903 = vmatpush2.bf16.msra.mxu0 %v3222
    %3904 = vmatprep.mubr.bf16.mxu0 %v2121
    %3905 = vmatmul.mubr.bf16.gmra.mxu0 %v2120
    %v3906 = vpop.f32.mrf.mxu0
    %v3907 = vadd.f32 %v2415, %v3906
    %v3908 = vpop.f32.mrf.mxu0
    %v3909 = vadd.f32 %v2419, %v3908
    %v3910 = vpop.f32.mrf.mxu0
    %v3911 = vadd.f32 %v2415, %v3910
    %v3912 = vpop.f32.mrf.mxu0
    %v3913 = vadd.f32 %v2419, %v3912
    %3914 = vdwg.mxu0
    %3915 = vmatprep.subr.bf16.mxu0 %v3283
    %3916 = vmatpush1.bf16.msra.mxu0 %v3282
    %3917 = vmatprep.subr.bf16.mxu0 %v3279
    %3918 = vmatpush1.bf16.msra.mxu0 %v3278
    %3919 = vmatprep.subr.bf16.mxu0 %v3275
    %3920 = vmatpush1.bf16.msra.mxu0 %v3274
    %3921 = vmatprep.subr.bf16.mxu0 %v3271
    %3922 = vmatpush1.bf16.msra.mxu0 %v3270
    %3923 = vmatprep.subr.bf16.mxu0 %v3267
    %3924 = vmatpush1.bf16.msra.mxu0 %v3266
    %3925 = vmatprep.subr.bf16.mxu0 %v3263
    %3926 = vmatpush1.bf16.msra.mxu0 %v3262
    %3927 = vmatprep.subr.bf16.mxu0 %v3259
    %3928 = vmatpush1.bf16.msra.mxu0 %v3258
    %3929 = vmatprep.subr.bf16.mxu0 %v3255
    %3930 = vmatpush1.bf16.msra.mxu0 %v3254
    %3931 = vmatprep.subr.bf16.mxu0 %v3315
    %3932 = vmatpush2.bf16.msra.mxu0 %v3314
    %3933 = vmatprep.subr.bf16.mxu0 %v3311
    %3934 = vmatpush2.bf16.msra.mxu0 %v3310
    %3935 = vmatprep.subr.bf16.mxu0 %v3307
    %3936 = vmatpush2.bf16.msra.mxu0 %v3306
    %3937 = vmatprep.subr.bf16.mxu0 %v3303
    %3938 = vmatpush2.bf16.msra.mxu0 %v3302
    %3939 = vmatprep.subr.bf16.mxu0 %v3299
    %3940 = vmatpush2.bf16.msra.mxu0 %v3298
    %3941 = vmatprep.subr.bf16.mxu0 %v3295
    %3942 = vmatpush2.bf16.msra.mxu0 %v3294
    %3943 = vmatprep.subr.bf16.mxu0 %v3291
    %3944 = vmatpush2.bf16.msra.mxu0 %v3290
    %3945 = vmatprep.subr.bf16.mxu0 %v3287
    %3946 = vmatpush2.bf16.msra.mxu0 %v3286
    %3947 = vmatprep.mubr.bf16.mxu0 %v2123
    %3948 = vmatmul.mubr.bf16.gmra.mxu0 %v2122
    %v3949 = vpop.f32.mrf.mxu0
    %v3950 = vadd.f32 %v3907, %v3949
    %v3951 = vpop.f32.mrf.mxu0
    %v3952 = vadd.f32 %v3909, %v3951
    %v3953 = vpop.f32.mrf.mxu0
    %v3954 = vadd.f32 %v3911, %v3953
    %v3955 = vpop.f32.mrf.mxu0
    %v3956 = vadd.f32 %v3913, %v3955
    %3957 = vdwg.mxu0
    %3958 = vmatprep.subr.bf16.mxu0 %v3347
    %3959 = vmatpush1.bf16.msra.mxu0 %v3346
    %3960 = vmatprep.subr.bf16.mxu0 %v3343
    %3961 = vmatpush1.bf16.msra.mxu0 %v3342
    %3962 = vmatprep.subr.bf16.mxu0 %v3339
    %3963 = vmatpush1.bf16.msra.mxu0 %v3338
    %3964 = vmatprep.subr.bf16.mxu0 %v3335
    %3965 = vmatpush1.bf16.msra.mxu0 %v3334
    %3966 = vmatprep.subr.bf16.mxu0 %v3331
    %3967 = vmatpush1.bf16.msra.mxu0 %v3330
    %3968 = vmatprep.subr.bf16.mxu0 %v3327
    %3969 = vmatpush1.bf16.msra.mxu0 %v3326
    %3970 = vmatprep.subr.bf16.mxu0 %v3323
    %3971 = vmatpush1.bf16.msra.mxu0 %v3322
    %3972 = vmatprep.subr.bf16.mxu0 %v3319
    %3973 = vmatpush1.bf16.msra.mxu0 %v3318
    %3974 = vmatprep.subr.bf16.mxu0 %v3379
    %3975 = vmatpush2.bf16.msra.mxu0 %v3378
    %3976 = vmatprep.subr.bf16.mxu0 %v3375
    %3977 = vmatpush2.bf16.msra.mxu0 %v3374
    %3978 = vmatprep.subr.bf16.mxu0 %v3371
    %3979 = vmatpush2.bf16.msra.mxu0 %v3370
    %3980 = vmatprep.subr.bf16.mxu0 %v3367
    %3981 = vmatpush2.bf16.msra.mxu0 %v3366
    %3982 = vmatprep.subr.bf16.mxu0 %v3363
    %3983 = vmatpush2.bf16.msra.mxu0 %v3362
    %3984 = vmatprep.subr.bf16.mxu0 %v3359
    %3985 = vmatpush2.bf16.msra.mxu0 %v3358
    %3986 = vmatprep.subr.bf16.mxu0 %v3355
    %3987 = vmatpush2.bf16.msra.mxu0 %v3354
    %3988 = vmatprep.subr.bf16.mxu0 %v3351
    %3989 = vmatpush2.bf16.msra.mxu0 %v3350
    %3990 = vmatprep.mubr.bf16.mxu0 %v2125
    %3991 = vmatmul.mubr.bf16.gmra.mxu0 %v2124
    %v3992 = vpop.f32.mrf.mxu0
    %v3993 = vadd.f32 %v3950, %v3992
    %v3994 = vpop.f32.mrf.mxu0
    %v3995 = vadd.f32 %v3952, %v3994
    %v3996 = vpop.f32.mrf.mxu0
    %v3997 = vadd.f32 %v3954, %v3996
    %v3998 = vpop.f32.mrf.mxu0
    %v3999 = vadd.f32 %v3956, %v3998
    %4000 = vdwg.mxu0
    %4001 = vmatprep.subr.bf16.mxu0 %v3411
    %4002 = vmatpush1.bf16.msra.mxu0 %v3410
    %4003 = vmatprep.subr.bf16.mxu0 %v3407
    %4004 = vmatpush1.bf16.msra.mxu0 %v3406
    %4005 = vmatprep.subr.bf16.mxu0 %v3403
    %4006 = vmatpush1.bf16.msra.mxu0 %v3402
    %4007 = vmatprep.subr.bf16.mxu0 %v3399
    %4008 = vmatpush1.bf16.msra.mxu0 %v3398
    %4009 = vmatprep.subr.bf16.mxu0 %v3395
    %4010 = vmatpush1.bf16.msra.mxu0 %v3394
    %4011 = vmatprep.subr.bf16.mxu0 %v3391
    %4012 = vmatpush1.bf16.msra.mxu0 %v3390
    %4013 = vmatprep.subr.bf16.mxu0 %v3387
    %4014 = vmatpush1.bf16.msra.mxu0 %v3386
    %4015 = vmatprep.subr.bf16.mxu0 %v3383
    %4016 = vmatpush1.bf16.msra.mxu0 %v3382
    %4017 = vmatprep.subr.bf16.mxu0 %v3443
    %4018 = vmatpush2.bf16.msra.mxu0 %v3442
    %4019 = vmatprep.subr.bf16.mxu0 %v3439
    %4020 = vmatpush2.bf16.msra.mxu0 %v3438
    %4021 = vmatprep.subr.bf16.mxu0 %v3435
    %4022 = vmatpush2.bf16.msra.mxu0 %v3434
    %4023 = vmatprep.subr.bf16.mxu0 %v3431
    %4024 = vmatpush2.bf16.msra.mxu0 %v3430
    %4025 = vmatprep.subr.bf16.mxu0 %v3427
    %4026 = vmatpush2.bf16.msra.mxu0 %v3426
    %4027 = vmatprep.subr.bf16.mxu0 %v3423
    %4028 = vmatpush2.bf16.msra.mxu0 %v3422
    %4029 = vmatprep.subr.bf16.mxu0 %v3419
    %4030 = vmatpush2.bf16.msra.mxu0 %v3418
    %4031 = vmatprep.subr.bf16.mxu0 %v3415
    %4032 = vmatpush2.bf16.msra.mxu0 %v3414
    %4033 = vmatprep.mubr.bf16.mxu0 %v2127
    %4034 = vmatmul.mubr.bf16.gmra.mxu0 %v2126
    %v4035 = vpop.f32.mrf.mxu0
    %v4036 = vadd.f32 %v3993, %v4035
    %v4037 = vpop.f32.mrf.mxu0
    %v4038 = vadd.f32 %v3995, %v4037
    %v4039 = vpop.f32.mrf.mxu0
    %v4040 = vadd.f32 %v3997, %v4039
    %v4041 = vpop.f32.mrf.mxu0
    %v4042 = vadd.f32 %v3999, %v4041
    %4043 = vdwg.mxu0
    %vm4044 = vcmp.gt.f32.partialorder %v3864, 0.0
    %vm4045 = vcmp.gt.f32.partialorder %v3866, 0.0
    %vm4046 = vcmp.gt.f32.partialorder %v4036, 0.0
    %vm4047 = vcmp.gt.f32.partialorder %v4038, 0.0
    %vm4048 = vcmp.gt.f32.partialorder %v3868, 0.0
    %vm4049 = vcmp.gt.f32.partialorder %v3870, 0.0
    %vm4050 = vcmp.gt.f32.partialorder %v4040, 0.0
    %vm4051 = vcmp.gt.f32.partialorder %v4042, 0.0
    %v4052 = vmul.f32 %v3864, 0.01
    %v4053 = vmul.f32 %v3866, 0.01
    %v4054 = vmul.f32 %v4036, 0.01
    %v4055 = vmul.f32 %v4038, 0.01
    %v4056 = vmul.f32 %v3868, 0.01
    %v4057 = vmul.f32 %v3870, 0.01
    %v4058 = vmul.f32 %v4040, 0.01
    %v4059 = vmul.f32 %v4042, 0.01
    %v4060 = vsel %vm4044, %v3864, %v4052
    %v4061 = vsel %vm4045, %v3866, %v4053
    %v4062 = vsel %vm4046, %v4036, %v4054
    %v4063 = vsel %vm4047, %v4038, %v4055
    %v4064 = vsel %vm4048, %v3868, %v4056
    %v4065 = vsel %vm4049, %v3870, %v4057
    %v4066 = vsel %vm4050, %v4040, %v4058
    %v4067 = vsel %vm4051, %v4042, %v4059
    %v4068 = vpack.c.bf16 %v4064, %v4060
    %v4069 = vpack.c.bf16 %v4065, %v4061
    %v4070 = vpack.c.bf16 %v4066, %v4062
    %v4071 = vpack.c.bf16 %v4067, %v4063
    %v4072 = vld [vmem:[#allocation8] sm:$0xf]
    %v4073 = vld [vmem:[#allocation8 + $0x4] sm:$0xf]
    %v4074 = vld [vmem:[#allocation8 + $0x8] sm:$0xf]
    %v4075 = vld [vmem:[#allocation8 + $0xc] sm:$0xf]
    %v4076 = vld [vmem:[#allocation8 + $0x10] sm:$0xf]
    %v4077 = vld [vmem:[#allocation8 + $0x14] sm:$0xf]
    %v4078 = vld [vmem:[#allocation8 + $0x18] sm:$0xf]
    %v4079 = vld [vmem:[#allocation8 + $0x1c] sm:$0xf]
    %v4080 = vld [vmem:[#allocation8 + $0x20] sm:$0xf]
    %v4081 = vld [vmem:[#allocation8 + $0x24] sm:$0xf]
    %v4082 = vld [vmem:[#allocation8 + $0x28] sm:$0xf]
    %v4083 = vld [vmem:[#allocation8 + $0x2c] sm:$0xf]
    %v4084 = vld [vmem:[#allocation8 + $0x30] sm:$0xf]
    %v4085 = vld [vmem:[#allocation8 + $0x34] sm:$0xf]
    %v4086 = vld [vmem:[#allocation8 + $0x38] sm:$0xf]
    %v4087 = vld [vmem:[#allocation8 + $0x3c] sm:$0xf]
    %v4088 = vld [vmem:[#allocation8 + $0x40] sm:$0xf]
    %v4089 = vld [vmem:[#allocation8 + $0x44] sm:$0xf]
    %v4090 = vld [vmem:[#allocation8 + $0x48] sm:$0xf]
    %v4091 = vld [vmem:[#allocation8 + $0x4c] sm:$0xf]
    %v4092 = vld [vmem:[#allocation8 + $0x50] sm:$0xf]
    %v4093 = vld [vmem:[#allocation8 + $0x54] sm:$0xf]
    %v4094 = vld [vmem:[#allocation8 + $0x58] sm:$0xf]
    %v4095 = vld [vmem:[#allocation8 + $0x5c] sm:$0xf]
    %v4096 = vld [vmem:[#allocation8 + $0x60] sm:$0xf]
    %v4097 = vld [vmem:[#allocation8 + $0x64] sm:$0xf]
    %v4098 = vld [vmem:[#allocation8 + $0x68] sm:$0xf]
    %v4099 = vld [vmem:[#allocation8 + $0x6c] sm:$0xf]
    %v4100 = vld [vmem:[#allocation8 + $0x70] sm:$0xf]
    %v4101 = vld [vmem:[#allocation8 + $0x74] sm:$0xf]
    %v4102 = vld [vmem:[#allocation8 + $0x78] sm:$0xf]
    %v4103 = vld [vmem:[#allocation8 + $0x7c] sm:$0xf]
    %v4104 = vld [vmem:[#allocation8 + $0x80] sm:$0xf]
    %v4105 = vld [vmem:[#allocation8 + $0x84] sm:$0xf]
    %v4106 = vld [vmem:[#allocation8 + $0x88] sm:$0xf]
    %v4107 = vld [vmem:[#allocation8 + $0x8c] sm:$0xf]
    %v4108 = vld [vmem:[#allocation8 + $0x90] sm:$0xf]
    %v4109 = vld [vmem:[#allocation8 + $0x94] sm:$0xf]
    %v4110 = vld [vmem:[#allocation8 + $0x98] sm:$0xf]
    %v4111 = vld [vmem:[#allocation8 + $0x9c] sm:$0xf]
    %v4112 = vld [vmem:[#allocation8 + $0xa0] sm:$0xf]
    %v4113 = vld [vmem:[#allocation8 + $0xa4] sm:$0xf]
    %v4114 = vld [vmem:[#allocation8 + $0xa8] sm:$0xf]
    %v4115 = vld [vmem:[#allocation8 + $0xac] sm:$0xf]
    %v4116 = vld [vmem:[#allocation8 + $0xb0] sm:$0xf]
    %v4117 = vld [vmem:[#allocation8 + $0xb4] sm:$0xf]
    %v4118 = vld [vmem:[#allocation8 + $0xb8] sm:$0xf]
    %v4119 = vld [vmem:[#allocation8 + $0xbc] sm:$0xf]
    %v4120 = vld [vmem:[#allocation8 + $0xc0] sm:$0xf]
    %v4121 = vld [vmem:[#allocation8 + $0xc4] sm:$0xf]
    %v4122 = vld [vmem:[#allocation8 + $0xc8] sm:$0xf]
    %v4123 = vld [vmem:[#allocation8 + $0xcc] sm:$0xf]
    %v4124 = vld [vmem:[#allocation8 + $0xd0] sm:$0xf]
    %v4125 = vld [vmem:[#allocation8 + $0xd4] sm:$0xf]
    %v4126 = vld [vmem:[#allocation8 + $0xd8] sm:$0xf]
    %v4127 = vld [vmem:[#allocation8 + $0xdc] sm:$0xf]
    %v4128 = vld [vmem:[#allocation8 + $0xe0] sm:$0xf]
    %v4129 = vld [vmem:[#allocation8 + $0xe4] sm:$0xf]
    %v4130 = vld [vmem:[#allocation8 + $0xe8] sm:$0xf]
    %v4131 = vld [vmem:[#allocation8 + $0xec] sm:$0xf]
    %v4132 = vld [vmem:[#allocation8 + $0xf0] sm:$0xf]
    %v4133 = vld [vmem:[#allocation8 + $0xf4] sm:$0xf]
    %v4134 = vld [vmem:[#allocation8 + $0xf8] sm:$0xf]
    %v4135 = vld [vmem:[#allocation8 + $0xfc] sm:$0xf]
    %v4136 = vlaneseq
    %v4137 = vshrl.u32 %v4136, 7
    %v4138 = vsub.s32 2, %v4137
    %v4139 = vrot.slane %v88, %v4138
    %v4204 = vunpack.c.l.b16 %v4072
    %v4205 = vunpack.c.l.b16 %v4073
    %v4206 = vunpack.c.l.b16 %v4074
    %v4207 = vunpack.c.l.b16 %v4075
    %v4208 = vunpack.c.l.b16 %v4076
    %v4209 = vunpack.c.l.b16 %v4077
    %v4210 = vunpack.c.l.b16 %v4078
    %v4211 = vunpack.c.l.b16 %v4079
    %v4212 = vunpack.c.l.b16 %v4080
    %v4213 = vunpack.c.l.b16 %v4081
    %v4214 = vunpack.c.l.b16 %v4082
    %v4215 = vunpack.c.l.b16 %v4083
    %v4216 = vunpack.c.l.b16 %v4084
    %v4217 = vunpack.c.l.b16 %v4085
    %v4218 = vunpack.c.l.b16 %v4086
    %v4219 = vunpack.c.l.b16 %v4087
    %v4220 = vunpack.c.l.b16 %v4088
    %v4221 = vunpack.c.l.b16 %v4089
    %v4222 = vunpack.c.l.b16 %v4090
    %v4223 = vunpack.c.l.b16 %v4091
    %v4224 = vunpack.c.l.b16 %v4092
    %v4225 = vunpack.c.l.b16 %v4093
    %v4226 = vunpack.c.l.b16 %v4094
    %v4227 = vunpack.c.l.b16 %v4095
    %v4228 = vunpack.c.l.b16 %v4096
    %v4229 = vunpack.c.l.b16 %v4097
    %v4230 = vunpack.c.l.b16 %v4098
    %v4231 = vunpack.c.l.b16 %v4099
    %v4232 = vunpack.c.l.b16 %v4100
    %v4233 = vunpack.c.l.b16 %v4101
    %v4234 = vunpack.c.l.b16 %v4102
    %v4235 = vunpack.c.l.b16 %v4103
    %v4236 = vunpack.c.l.b16 %v4104
    %v4237 = vunpack.c.l.b16 %v4105
    %v4238 = vunpack.c.l.b16 %v4106
    %v4239 = vunpack.c.l.b16 %v4107
    %v4240 = vunpack.c.l.b16 %v4108
    %v4241 = vunpack.c.l.b16 %v4109
    %v4242 = vunpack.c.l.b16 %v4110
    %v4243 = vunpack.c.l.b16 %v4111
    %v4244 = vunpack.c.l.b16 %v4112
    %v4245 = vunpack.c.l.b16 %v4113
    %v4246 = vunpack.c.l.b16 %v4114
    %v4247 = vunpack.c.l.b16 %v4115
    %v4248 = vunpack.c.l.b16 %v4116
    %v4249 = vunpack.c.l.b16 %v4117
    %v4250 = vunpack.c.l.b16 %v4118
    %v4251 = vunpack.c.l.b16 %v4119
    %v4252 = vunpack.c.l.b16 %v4120
    %v4253 = vunpack.c.l.b16 %v4121
    %v4254 = vunpack.c.l.b16 %v4122
    %v4255 = vunpack.c.l.b16 %v4123
    %v4256 = vunpack.c.l.b16 %v4124
    %v4257 = vunpack.c.l.b16 %v4125
    %v4258 = vunpack.c.l.b16 %v4126
    %v4259 = vunpack.c.l.b16 %v4127
    %v4260 = vunpack.c.l.b16 %v4128
    %v4261 = vunpack.c.l.b16 %v4129
    %v4262 = vunpack.c.l.b16 %v4130
    %v4263 = vunpack.c.l.b16 %v4131
    %v4264 = vunpack.c.l.b16 %v4132
    %v4265 = vunpack.c.l.b16 %v4133
    %v4266 = vunpack.c.l.b16 %v4134
    %v4267 = vunpack.c.l.b16 %v4135
    %v4268 = vpack.c.b16 %v4205, %v4204
    %v4269 = vpack.c.b16 %v4207, %v4206
    %v4270 = vpack.c.b16 %v4209, %v4208
    %v4271 = vpack.c.b16 %v4211, %v4210
    %v4272 = vpack.c.b16 %v4213, %v4212
    %v4273 = vpack.c.b16 %v4215, %v4214
    %v4274 = vpack.c.b16 %v4217, %v4216
    %v4275 = vpack.c.b16 %v4219, %v4218
    %v4276 = vpack.c.b16 %v4221, %v4220
    %v4277 = vpack.c.b16 %v4223, %v4222
    %v4278 = vpack.c.b16 %v4225, %v4224
    %v4279 = vpack.c.b16 %v4227, %v4226
    %v4280 = vpack.c.b16 %v4229, %v4228
    %v4281 = vpack.c.b16 %v4231, %v4230
    %v4282 = vpack.c.b16 %v4233, %v4232
    %v4283 = vpack.c.b16 %v4235, %v4234
    %v4284 = vpack.c.b16 %v4237, %v4236
    %v4285 = vpack.c.b16 %v4239, %v4238
    %v4286 = vpack.c.b16 %v4241, %v4240
    %v4287 = vpack.c.b16 %v4243, %v4242
    %v4288 = vpack.c.b16 %v4245, %v4244
    %v4289 = vpack.c.b16 %v4247, %v4246
    %v4290 = vpack.c.b16 %v4249, %v4248
    %v4291 = vpack.c.b16 %v4251, %v4250
    %v4292 = vpack.c.b16 %v4253, %v4252
    %v4293 = vpack.c.b16 %v4255, %v4254
    %v4294 = vpack.c.b16 %v4257, %v4256
    %v4295 = vpack.c.b16 %v4259, %v4258
    %v4296 = vpack.c.b16 %v4261, %v4260
    %v4297 = vpack.c.b16 %v4263, %v4262
    %v4298 = vpack.c.b16 %v4265, %v4264
    %v4299 = vpack.c.b16 %v4267, %v4266
    %4332 = vmatprep.subr.bf16.mxu0 0
    %4333 = vmatpush1.bf16.msra.mxu0 %v4275
    %4334 = vmatprep.subr.bf16.mxu0 0
    %4335 = vmatpush1.bf16.msra.mxu0 %v4274
    %4336 = vmatprep.subr.bf16.mxu0 0
    %4337 = vmatpush1.bf16.msra.mxu0 %v4273
    %4338 = vmatprep.subr.bf16.mxu0 0
    %4339 = vmatpush1.bf16.msra.mxu0 %v4272
    %4340 = vmatprep.subr.bf16.mxu0 0
    %4341 = vmatpush1.bf16.msra.mxu0 %v4271
    %4342 = vmatprep.subr.bf16.mxu0 0
    %4343 = vmatpush1.bf16.msra.mxu0 %v4270
    %4344 = vmatprep.subr.bf16.mxu0 0
    %4345 = vmatpush1.bf16.msra.mxu0 %v4269
    %4346 = vmatprep.subr.bf16.mxu0 0
    %4347 = vmatpush1.bf16.msra.mxu0 %v4268
    %4348 = vmatprep.subr.bf16.mxu0 0
    %4349 = vmatpush2.bf16.msra.mxu0 %v4283
    %4350 = vmatprep.subr.bf16.mxu0 0
    %4351 = vmatpush2.bf16.msra.mxu0 %v4282
    %4352 = vmatprep.subr.bf16.mxu0 0
    %4353 = vmatpush2.bf16.msra.mxu0 %v4281
    %4354 = vmatprep.subr.bf16.mxu0 0
    %4355 = vmatpush2.bf16.msra.mxu0 %v4280
    %4356 = vmatprep.subr.bf16.mxu0 0
    %4357 = vmatpush2.bf16.msra.mxu0 %v4279
    %4358 = vmatprep.subr.bf16.mxu0 0
    %4359 = vmatpush2.bf16.msra.mxu0 %v4278
    %4360 = vmatprep.subr.bf16.mxu0 0
    %4361 = vmatpush2.bf16.msra.mxu0 %v4277
    %4362 = vmatprep.subr.bf16.mxu0 0
    %4363 = vmatpush2.bf16.msra.mxu0 %v4276
    %4364 = vmatprep.mubr.bf16.mxu0 %v4069
    %4365 = vmatmul.mubr.bf16.gmra.mxu0 %v4068
    %v4366 = vpop.f32.mrf.mxu0
    %v4367 = vadd.f32 %v4139, %v4366
    %v4368 = vpop.f32.mrf.mxu0
    %v4369 = vpop.f32.mrf.mxu0
    %v4370 = vadd.f32 %v4139, %v4369
    %v4371 = vpop.f32.mrf.mxu0
    %4372 = vdwg.mxu0
    %4373 = vmatprep.subr.bf16.mxu0 0
    %4374 = vmatpush1.bf16.msra.mxu0 %v4291
    %4375 = vmatprep.subr.bf16.mxu0 0
    %4376 = vmatpush1.bf16.msra.mxu0 %v4290
    %4377 = vmatprep.subr.bf16.mxu0 0
    %4378 = vmatpush1.bf16.msra.mxu0 %v4289
    %4379 = vmatprep.subr.bf16.mxu0 0
    %4380 = vmatpush1.bf16.msra.mxu0 %v4288
    %4381 = vmatprep.subr.bf16.mxu0 0
    %4382 = vmatpush1.bf16.msra.mxu0 %v4287
    %4383 = vmatprep.subr.bf16.mxu0 0
    %4384 = vmatpush1.bf16.msra.mxu0 %v4286
    %4385 = vmatprep.subr.bf16.mxu0 0
    %4386 = vmatpush1.bf16.msra.mxu0 %v4285
    %4387 = vmatprep.subr.bf16.mxu0 0
    %4388 = vmatpush1.bf16.msra.mxu0 %v4284
    %4389 = vmatprep.subr.bf16.mxu0 0
    %4390 = vmatpush2.bf16.msra.mxu0 %v4299
    %4391 = vmatprep.subr.bf16.mxu0 0
    %4392 = vmatpush2.bf16.msra.mxu0 %v4298
    %4393 = vmatprep.subr.bf16.mxu0 0
    %4394 = vmatpush2.bf16.msra.mxu0 %v4297
    %4395 = vmatprep.subr.bf16.mxu0 0
    %4396 = vmatpush2.bf16.msra.mxu0 %v4296
    %4397 = vmatprep.subr.bf16.mxu0 0
    %4398 = vmatpush2.bf16.msra.mxu0 %v4295
    %4399 = vmatprep.subr.bf16.mxu0 0
    %4400 = vmatpush2.bf16.msra.mxu0 %v4294
    %4401 = vmatprep.subr.bf16.mxu0 0
    %4402 = vmatpush2.bf16.msra.mxu0 %v4293
    %4403 = vmatprep.subr.bf16.mxu0 0
    %4404 = vmatpush2.bf16.msra.mxu0 %v4292
    %4405 = vmatprep.mubr.bf16.mxu0 %v4071
    %4406 = vmatmul.mubr.bf16.gmra.mxu0 %v4070
    %v4407 = vpop.f32.mrf.mxu0
    %v4408 = vadd.f32 %v4367, %v4407
    %v4409 = vpop.f32.mrf.mxu0
    %v4410 = vpop.f32.mrf.mxu0
    %v4411 = vadd.f32 %v4370, %v4410
    %v4412 = vpop.f32.mrf.mxu0
    %4413 = vdwg.mxu0
    %vm4414 = vcmp.gt.f32.partialorder %v4408, 0.0
    %vm4415 = vcmp.gt.f32.partialorder %v4411, 0.0
    %v4416 = vmul.f32 %v4408, 0.01
    %v4417 = vmul.f32 %v4411, 0.01
    %v4418 = vsel %vm4414, %v4408, %v4416
    %v4419 = vsel %vm4415, %v4411, %v4417
    %4420 = vst [vmem:[#allocation11] sm:$0xff] %v4418
    %4421 = vst [vmem:[#allocation11 + $0x8] sm:$0xff] %v4419
    // Predicated region
    $region42: #{tpu_custom_call.1} parent=1 // pred_check
      _
    $region43: #{tpu_custom_call.1} parent=1 // pred_check_branch
      %4423 = sbr.rel (0) target = $region45
    $region44: #{tpu_custom_call.1} parent=1 // pred_region
      %s4425 = ssub.s32 256, 256
      %4426 = vsyncadd [#allocation4], %s4425
      %s4427 = sshll.u32 [#allocation11], 4
      %s4428 = int_to_ptr.vmem [resolvable:$true] %s4427
      %4433 = dma.vmem_to_hbm [thread:$0]  %s4428, 256, %s5, [#allocation4], 128, 128, 8
    $region45: #{tpu_custom_call.1} parent=1 // pred_fallthru
      _
    // Predicated region
    $region46: #{tpu_custom_call.1} parent=1 // pred_check
      _
    $region47: #{tpu_custom_call.1} parent=1 // pred_check_branch
      %4435 = sbr.rel (0) target = $region49
    $region48: #{tpu_custom_call.1} parent=1 // pred_region
      %4436 = dma.done [#allocation4], 256
    $region49: #{tpu_custom_call.1} parent=1 // pred_fallthru
      _
    %4437 = vsyncpa [#allocation3], 1
    %4438 = vsyncpa [#allocation6], 1
    %4439 = vsyncpa [#allocation9], 1
    %4440 = vsyncpa [#allocation4], 1

</llo_original>
